<compile_context>
chip_gen: v6e
topology: v6e:2x2x1
jax: 0.10.0
libtpu: 0.0.40
codegen_flags: <defaults>
</compile_context>

<pallas_src>
import jax
import jax.numpy as jnp
from jax.experimental import pallas as pl
from jax.experimental.pallas import tpu as pltpu


# ----------------------------------------------------------------------------
# One-time parameter preprocessing (pure JAX, runs once, not per forward).
# ----------------------------------------------------------------------------
def _row_conv_weights(w, wi):
    """w: (Cout, Cin, Kh, Kw) -> (Kh, Wi*Cin, Wo*Cout) banded weight slabs.

    Column layout is channels-last: input column = w_in*Cin + ci,
    output column = w_out*Cout + co, so that
        out[h, w_out*Cout+co] = sum_di  x[h+di, :] @ slab[di]
    reproduces a stride-1 VALID conv on (H, W*C) activations.
    """
    cout, cin, kh, kw = w.shape
    wo = wi - kw + 1
    idx = jnp.arange(wo)
    mats = []
    for di in range(kh):
        m = jnp.zeros((wi, cin, wo, cout), jnp.float32)
        for dj in range(kw):
            # m[w_out + dj, ci, w_out, co] = w[co, ci, di, dj]
            m = m.at[idx + dj, :, idx, :].add(w[:, :, di, dj].T)
        mats.append(m.reshape(wi * cin, wo * cout))
    return jnp.stack(mats, axis=0)


def _pool_matrices(h, w, c):
    """AvgPool2d(2,2) as two matmuls on (H, W*C) slabs: left (H/2,H), right (W*C, W/2*C)."""
    h2, w2 = h // 2, w // 2
    r = jnp.arange(h2)
    ph = jnp.zeros((h2, h), jnp.float32)
    ph = ph.at[r, 2 * r].set(0.5).at[r, 2 * r + 1].set(0.5)

    q = jnp.arange(w2)
    eye = 0.5 * jnp.eye(c, dtype=jnp.float32)
    pw = jnp.zeros((w, c, w2, c), jnp.float32)
    pw = pw.at[2 * q, :, q, :].add(eye)
    pw = pw.at[2 * q + 1, :, q, :].add(eye)
    return ph, pw.reshape(w * c, w2 * c)


def prepare_params(p):
    """Transform PyTorch-layout LeNet params into kernel-ready VMEM slabs (once)."""
    fp = {
        "w1": _row_conv_weights(p["conv1_w"], 32),      # (5, 32, 168)
        "b1": jnp.tile(p["conv1_b"], 28)[None, :],       # (1, 168)
        "w2": _row_conv_weights(p["conv2_w"], 14),       # (5, 84, 160)
        "b2": jnp.tile(p["conv2_b"], 10)[None, :],        # (1, 160)
        "w3": _row_conv_weights(p["conv3_w"], 5),         # (5, 80, 120)
        "b3": p["conv3_b"][None, :],                      # (1, 120)
        "l1w": p["lin1_w"].T,                             # (120, 84)
        "l1b": p["lin1_b"][None, :],                      # (1, 84)
        "l2w": p["lin2_w"].T,                             # (84, 10)
        "l2b": p["lin2_b"][None, :],                      # (1, 10)
    }
    fp["p1h"], fp["p1w"] = _pool_matrices(28, 28, 6)      # (14, 28), (168, 84)
    fp["p2h"], fp["p2w"] = _pool_matrices(10, 10, 16)     # (5, 10),  (160, 80)
    return fp


_WEIGHT_ORDER = ("w1", "b1", "p1h", "p1w",
                 "w2", "b2", "p2h", "p2w",
                 "w3", "b3", "l1w", "l1b", "l2w", "l2b")


# ----------------------------------------------------------------------------
# Fused kernel: one grid step == one batch element; everything stays in VMEM.
# ----------------------------------------------------------------------------
def _lenet_kernel(x_ref,
                  w1_ref, b1_ref, p1h_ref, p1w_ref,
                  w2_ref, b2_ref, p2h_ref, p2w_ref,
                  w3_ref, b3_ref,
                  l1w_ref, l1b_ref, l2w_ref, l2b_ref,
                  out_ref,
                  a1p_ref, a2p_ref):
    def row_conv_relu(read_rows, w_ref, b_ref):
        # read_rows(di) -> (Ho, Wi*Cin) slab of input rows [di, di+Ho).
        acc = jnp.dot(read_rows(0), w_ref[0], preferred_element_type=jnp.float32)
        for di in range(1, w_ref.shape[0]):
            acc = acc + jnp.dot(read_rows(di), w_ref[di],
                                preferred_element_type=jnp.float32)
        return jnp.maximum(acc + b_ref[...], 0.0)

    def avg_pool(a, ph_ref, pw_ref):
        t = jnp.dot(ph_ref[...], a, preferred_element_type=jnp.float32)
        return jnp.dot(t, pw_ref[...], preferred_element_type=jnp.float32)

    # conv1 + relu: (32, 32) -> (28, 168); pool -> (14, 84) kept in VMEM scratch.
    a1 = row_conv_relu(lambda di: x_ref[0, di:di + 28, :], w1_ref, b1_ref)
    a1p_ref[...] = avg_pool(a1, p1h_ref, p1w_ref)

    # conv2 + relu: (14, 84) -> (10, 160); pool -> (5, 80) kept in VMEM scratch.
    a2 = row_conv_relu(lambda di: a1p_ref[di:di + 10, :], w2_ref, b2_ref)
    a2p_ref[...] = avg_pool(a2, p2h_ref, p2w_ref)

    # conv3 + relu: 5x5x16 window == whole input -> (1, 120)  (== flatten + FC).
    a3 = row_conv_relu(lambda di: a2p_ref[di:di + 1, :], w3_ref, b3_ref)

    # linear1 + relu, linear2 -> logits (1, 10); only HBM write of the kernel.
    h1 = jnp.maximum(
        jnp.dot(a3, l1w_ref[...], preferred_element_type=jnp.float32) + l1b_ref[...],
        0.0)
    out_ref[0] = (jnp.dot(h1, l2w_ref[...], preferred_element_type=jnp.float32)
                  + l2b_ref[...])


def _const_index_map(ndim):
    def index_map(i):
        return (0,) * ndim
    return index_map


@jax.jit
def lenet_forward(x, fp):
    n, c, h, w = x.shape
    assert c == 1, "LeNet expects a single input channel"
    x2 = x.reshape(n, h, w * c)          # NCHW with C==1 -> per-batch (H, W*C)
    weights = [fp[k] for k in _WEIGHT_ORDER]
    out = pl.pallas_call(
        _lenet_kernel,
        out_shape=jax.ShapeDtypeStruct((n, 1, 10), jnp.float32),
        grid=(n,),
        in_specs=[pl.BlockSpec((1, h, w * c), lambda i: (i, 0, 0))]
                 + [pl.BlockSpec(arr.shape, _const_index_map(arr.ndim))
                    for arr in weights],
        out_specs=pl.BlockSpec((1, 1, 10), lambda i: (i, 0, 0)),
        scratch_shapes=[pltpu.VMEM((14, 84), jnp.float32),
                        pltpu.VMEM((5, 80), jnp.float32)],
        compiler_params=pltpu.CompilerParams(
            dimension_semantics=("parallel",)),   # v7x: batch split across 2 TCs
    )(x2, *weights)
    return out.reshape(n, 10)


# ----------------------------------------------------------------------------
# Deterministic parameter init (PyTorch-default-style uniform bounds)
# ----------------------------------------------------------------------------
def init_params(key):
    def uconv(k, co, ci, kh, kw):
        bound = 1.0 / (ci * kh * kw) ** 0.5
        k1, k2 = jax.random.split(k)
        return (jax.random.uniform(k1, (co, ci, kh, kw), jnp.float32, -bound, bound),
                jax.random.uniform(k2, (co,), jnp.float32, -bound, bound))

    def ulin(k, out_f, in_f):
        bound = 1.0 / in_f ** 0.5
        k1, k2 = jax.random.split(k)
        return (jax.random.uniform(k1, (out_f, in_f), jnp.float32, -bound, bound),
                jax.random.uniform(k2, (out_f,), jnp.float32, -bound, bound))

    keys = jax.random.split(key, 5)
    p = {}
    p["conv1_w"], p["conv1_b"] = uconv(keys[0], 6, 1, 5, 5)
    p["conv2_w"], p["conv2_b"] = uconv(keys[1], 16, 6, 5, 5)
    p["conv3_w"], p["conv3_b"] = uconv(keys[2], 120, 16, 5, 5)
    p["lin1_w"], p["lin1_b"] = ulin(keys[3], 84, 120)
    p["lin2_w"], p["lin2_b"] = ulin(keys[4], 10, 84)
    return p


# ----------------------------------------------------------------------------
# Pure-JAX reference for correctness check
# ----------------------------------------------------------------------------
def lenet_reference(x, p):
    def conv(x, w, b):
        y = jax.lax.conv_general_dilated(
            x, w, (1, 1), "VALID", dimension_numbers=("NCHW", "OIHW", "NCHW"))
        return jnp.maximum(y + b[None, :, None, None], 0.0)

    def pool(x):
        return jax.lax.reduce_window(
            x, 0.0, jax.lax.add, (1, 1, 2, 2), (1, 1, 2, 2), "VALID") / 4.0

    x = pool(conv(x, p["conv1_w"], p["conv1_b"]))
    x = pool(conv(x, p["conv2_w"], p["conv2_b"]))
    x = conv(x, p["conv3_w"], p["conv3_b"])
    x = x.reshape(x.shape[0], -1)
    x = jnp.maximum(x @ p["lin1_w"].T + p["lin1_b"], 0.0)
    x = x @ p["lin2_w"].T + p["lin2_b"]
    return x


if __name__ == "__main__":
    key = jax.random.PRNGKey(0)
    k_x, k_p = jax.random.split(key)
    # classic LeNet input: batch=2, 1 channel, 32x32
    x = jax.random.normal(k_x, (2, 1, 32, 32), dtype=jnp.float32)
    params = init_params(k_p)
    fused_params = prepare_params(params)   # one-time weight transform

    out = jax.block_until_ready(lenet_forward(x, fused_params))
    assert out.shape == (2, 10), out.shape

    ref = jax.block_until_ready(lenet_reference(x, params))
    assert jnp.allclose(out, ref, rtol=1e-4, atol=1e-4), float(jnp.max(jnp.abs(out - ref)))

    print("KERNEL_OK")
</pallas_src>

<mosaic_0001>
module attributes {stable_mosaic.version = 11 : i64} {
  func.func @_lenet_kernel(%arg0: i32, %arg1: memref<1x32x32xf32, #tpu.memory_space<vmem>>, %arg2: memref<5x32x168xf32, #tpu.memory_space<vmem>>, %arg3: memref<1x168xf32, #tpu.memory_space<vmem>>, %arg4: memref<14x28xf32, #tpu.memory_space<vmem>>, %arg5: memref<168x84xf32, #tpu.memory_space<vmem>>, %arg6: memref<5x84x160xf32, #tpu.memory_space<vmem>>, %arg7: memref<1x160xf32, #tpu.memory_space<vmem>>, %arg8: memref<5x10xf32, #tpu.memory_space<vmem>>, %arg9: memref<160x80xf32, #tpu.memory_space<vmem>>, %arg10: memref<5x80x120xf32, #tpu.memory_space<vmem>>, %arg11: memref<1x120xf32, #tpu.memory_space<vmem>>, %arg12: memref<120x84xf32, #tpu.memory_space<vmem>>, %arg13: memref<1x84xf32, #tpu.memory_space<vmem>>, %arg14: memref<84x10xf32, #tpu.memory_space<vmem>>, %arg15: memref<1x10xf32, #tpu.memory_space<vmem>>, %arg16: memref<1x1x10xf32, #tpu.memory_space<vmem>>, %arg17: memref<14x84xf32, #tpu.memory_space<vmem>>, %arg18: memref<5x80xf32, #tpu.memory_space<vmem>>) attributes {dimension_semantics = [#tpu.dimension_semantics<parallel>], iteration_bounds = array<i64: 2>, scalar_prefetch = 0 : i64, scratch_operands = 2 : i64, tpu.core_type = #tpu.core_type<tc>, window_params = [{transform_indices = @transform_0, window_bounds = array<i64: 1, 32, 32>}, {pipeline_mode = #tpu.pipeline_mode<synchronous>, transform_indices = @transform_1, window_bounds = array<i64: 5, 32, 168>}, {pipeline_mode = #tpu.pipeline_mode<synchronous>, transform_indices = @transform_2, window_bounds = array<i64: 1, 168>}, {pipeline_mode = #tpu.pipeline_mode<synchronous>, transform_indices = @transform_3, window_bounds = array<i64: 14, 28>}, {pipeline_mode = #tpu.pipeline_mode<synchronous>, transform_indices = @transform_4, window_bounds = array<i64: 168, 84>}, {pipeline_mode = #tpu.pipeline_mode<synchronous>, transform_indices = @transform_5, window_bounds = array<i64: 5, 84, 160>}, {pipeline_mode = #tpu.pipeline_mode<synchronous>, transform_indices = @transform_6, window_bounds = array<i64: 1, 160>}, {pipeline_mode = #tpu.pipeline_mode<synchronous>, transform_indices = @transform_7, window_bounds = array<i64: 5, 10>}, {pipeline_mode = #tpu.pipeline_mode<synchronous>, transform_indices = @transform_8, window_bounds = array<i64: 160, 80>}, {pipeline_mode = #tpu.pipeline_mode<synchronous>, transform_indices = @transform_9, window_bounds = array<i64: 5, 80, 120>}, {pipeline_mode = #tpu.pipeline_mode<synchronous>, transform_indices = @transform_10, window_bounds = array<i64: 1, 120>}, {pipeline_mode = #tpu.pipeline_mode<synchronous>, transform_indices = @transform_11, window_bounds = array<i64: 120, 84>}, {pipeline_mode = #tpu.pipeline_mode<synchronous>, transform_indices = @transform_12, window_bounds = array<i64: 1, 84>}, {pipeline_mode = #tpu.pipeline_mode<synchronous>, transform_indices = @transform_13, window_bounds = array<i64: 84, 10>}, {pipeline_mode = #tpu.pipeline_mode<synchronous>, transform_indices = @transform_14, window_bounds = array<i64: 1, 10>}, {transform_indices = @transform_15, window_bounds = array<i64: 1, 1, 10>}]} {
    %c0 = arith.constant 0 : index
    %c0_0 = arith.constant 0 : index
    %c0_1 = arith.constant 0 : index
    %0 = vector.load %arg1[%c0, %c0_0, %c0_1] : memref<1x32x32xf32, #tpu.memory_space<vmem>>, vector<1x28x32xf32>
    %1 = vector.shape_cast %0 : vector<1x28x32xf32> to vector<28x32xf32>
    %c0_2 = arith.constant 0 : index
    %c0_3 = arith.constant 0 : index
    %c0_4 = arith.constant 0 : index
    %2 = vector.load %arg2[%c0_2, %c0_3, %c0_4] : memref<5x32x168xf32, #tpu.memory_space<vmem>>, vector<1x32x168xf32>
    %3 = vector.shape_cast %2 : vector<1x32x168xf32> to vector<32x168xf32>
    %cst = arith.constant dense<0.000000e+00> : vector<28x168xf32>
    %4 = tpu.matmul %1, %3, %cst {dimension_numbers = #tpu.dot_dimension_numbers<[1], [0], [0], [1], [0, 0, 1, 1], [], []>} : vector<28x32xf32>, vector<32x168xf32>, vector<28x168xf32> -> vector<28x168xf32>
    %c0_5 = arith.constant 0 : index
    %c1 = arith.constant 1 : index
    %c0_6 = arith.constant 0 : index
    %5 = vector.load %arg1[%c0_5, %c1, %c0_6] : memref<1x32x32xf32, #tpu.memory_space<vmem>>, vector<1x28x32xf32>
    %6 = vector.shape_cast %5 : vector<1x28x32xf32> to vector<28x32xf32>
    %c1_7 = arith.constant 1 : index
    %c0_8 = arith.constant 0 : index
    %c0_9 = arith.constant 0 : index
    %7 = vector.load %arg2[%c1_7, %c0_8, %c0_9] : memref<5x32x168xf32, #tpu.memory_space<vmem>>, vector<1x32x168xf32>
    %8 = vector.shape_cast %7 : vector<1x32x168xf32> to vector<32x168xf32>
    %cst_10 = arith.constant dense<0.000000e+00> : vector<28x168xf32>
    %9 = tpu.matmul %6, %8, %cst_10 {dimension_numbers = #tpu.dot_dimension_numbers<[1], [0], [0], [1], [0, 0, 1, 1], [], []>} : vector<28x32xf32>, vector<32x168xf32>, vector<28x168xf32> -> vector<28x168xf32>
    %10 = arith.addf %4, %9 : vector<28x168xf32>
    %c0_11 = arith.constant 0 : index
    %c2 = arith.constant 2 : index
    %c0_12 = arith.constant 0 : index
    %11 = vector.load %arg1[%c0_11, %c2, %c0_12] : memref<1x32x32xf32, #tpu.memory_space<vmem>>, vector<1x28x32xf32>
    %12 = vector.shape_cast %11 : vector<1x28x32xf32> to vector<28x32xf32>
    %c2_13 = arith.constant 2 : index
    %c0_14 = arith.constant 0 : index
    %c0_15 = arith.constant 0 : index
    %13 = vector.load %arg2[%c2_13, %c0_14, %c0_15] : memref<5x32x168xf32, #tpu.memory_space<vmem>>, vector<1x32x168xf32>
    %14 = vector.shape_cast %13 : vector<1x32x168xf32> to vector<32x168xf32>
    %cst_16 = arith.constant dense<0.000000e+00> : vector<28x168xf32>
    %15 = tpu.matmul %12, %14, %cst_16 {dimension_numbers = #tpu.dot_dimension_numbers<[1], [0], [0], [1], [0, 0, 1, 1], [], []>} : vector<28x32xf32>, vector<32x168xf32>, vector<28x168xf32> -> vector<28x168xf32>
    %16 = arith.addf %10, %15 : vector<28x168xf32>
    %c0_17 = arith.constant 0 : index
    %c3 = arith.constant 3 : index
    %c0_18 = arith.constant 0 : index
    %17 = vector.load %arg1[%c0_17, %c3, %c0_18] : memref<1x32x32xf32, #tpu.memory_space<vmem>>, vector<1x28x32xf32>
    %18 = vector.shape_cast %17 : vector<1x28x32xf32> to vector<28x32xf32>
    %c3_19 = arith.constant 3 : index
    %c0_20 = arith.constant 0 : index
    %c0_21 = arith.constant 0 : index
    %19 = vector.load %arg2[%c3_19, %c0_20, %c0_21] : memref<5x32x168xf32, #tpu.memory_space<vmem>>, vector<1x32x168xf32>
    %20 = vector.shape_cast %19 : vector<1x32x168xf32> to vector<32x168xf32>
    %cst_22 = arith.constant dense<0.000000e+00> : vector<28x168xf32>
    %21 = tpu.matmul %18, %20, %cst_22 {dimension_numbers = #tpu.dot_dimension_numbers<[1], [0], [0], [1], [0, 0, 1, 1], [], []>} : vector<28x32xf32>, vector<32x168xf32>, vector<28x168xf32> -> vector<28x168xf32>
    %22 = arith.addf %16, %21 : vector<28x168xf32>
    %c0_23 = arith.constant 0 : index
    %c4 = arith.constant 4 : index
    %c0_24 = arith.constant 0 : index
    %23 = vector.load %arg1[%c0_23, %c4, %c0_24] : memref<1x32x32xf32, #tpu.memory_space<vmem>>, vector<1x28x32xf32>
    %24 = vector.shape_cast %23 : vector<1x28x32xf32> to vector<28x32xf32>
    %c4_25 = arith.constant 4 : index
    %c0_26 = arith.constant 0 : index
    %c0_27 = arith.constant 0 : index
    %25 = vector.load %arg2[%c4_25, %c0_26, %c0_27] : memref<5x32x168xf32, #tpu.memory_space<vmem>>, vector<1x32x168xf32>
    %26 = vector.shape_cast %25 : vector<1x32x168xf32> to vector<32x168xf32>
    %cst_28 = arith.constant dense<0.000000e+00> : vector<28x168xf32>
    %27 = tpu.matmul %24, %26, %cst_28 {dimension_numbers = #tpu.dot_dimension_numbers<[1], [0], [0], [1], [0, 0, 1, 1], [], []>} : vector<28x32xf32>, vector<32x168xf32>, vector<28x168xf32> -> vector<28x168xf32>
    %28 = arith.addf %22, %27 : vector<28x168xf32>
    %c0_29 = arith.constant 0 : index
    %c0_30 = arith.constant 0 : index
    %29 = vector.load %arg3[%c0_29, %c0_30] : memref<1x168xf32, #tpu.memory_space<vmem>>, vector<1x168xf32>
    %30 = vector.broadcast %29 : vector<1x168xf32> to vector<28x168xf32>
    %31 = arith.addf %28, %30 : vector<28x168xf32>
    %cst_31 = arith.constant 0.000000e+00 : f32
    %32 = vector.broadcast %cst_31 : f32 to vector<28x168xf32>
    %33 = arith.maximumf %31, %32 : vector<28x168xf32>
    %c0_32 = arith.constant 0 : index
    %c0_33 = arith.constant 0 : index
    %34 = vector.load %arg4[%c0_32, %c0_33] : memref<14x28xf32, #tpu.memory_space<vmem>>, vector<14x28xf32>
    %cst_34 = arith.constant dense<0.000000e+00> : vector<14x168xf32>
    %35 = tpu.matmul %34, %33, %cst_34 {dimension_numbers = #tpu.dot_dimension_numbers<[1], [0], [0], [1], [0, 0, 1, 1], [], []>} : vector<14x28xf32>, vector<28x168xf32>, vector<14x168xf32> -> vector<14x168xf32>
    %c0_35 = arith.constant 0 : index
    %c0_36 = arith.constant 0 : index
    %36 = vector.load %arg5[%c0_35, %c0_36] : memref<168x84xf32, #tpu.memory_space<vmem>>, vector<168x84xf32>
    %cst_37 = arith.constant dense<0.000000e+00> : vector<14x84xf32>
    %37 = tpu.matmul %35, %36, %cst_37 {dimension_numbers = #tpu.dot_dimension_numbers<[1], [0], [0], [1], [0, 0, 1, 1], [], []>} : vector<14x168xf32>, vector<168x84xf32>, vector<14x84xf32> -> vector<14x84xf32>
    %c0_38 = arith.constant 0 : index
    %c0_39 = arith.constant 0 : index
    %38 = vector.load %arg17[%c0_38, %c0_39] : memref<14x84xf32, #tpu.memory_space<vmem>>, vector<14x84xf32>
    tpu.vector_store %arg17[%c0_38, %c0_39], %37 {strides = array<i32>} : memref<14x84xf32, #tpu.memory_space<vmem>>, vector<14x84xf32>,
    %c0_40 = arith.constant 0 : index
    %c0_41 = arith.constant 0 : index
    %39 = vector.load %arg17[%c0_40, %c0_41] : memref<14x84xf32, #tpu.memory_space<vmem>>, vector<10x84xf32>
    %c0_42 = arith.constant 0 : index
    %c0_43 = arith.constant 0 : index
    %c0_44 = arith.constant 0 : index
    %40 = vector.load %arg6[%c0_42, %c0_43, %c0_44] : memref<5x84x160xf32, #tpu.memory_space<vmem>>, vector<1x84x160xf32>
    %41 = vector.shape_cast %40 : vector<1x84x160xf32> to vector<84x160xf32>
    %cst_45 = arith.constant dense<0.000000e+00> : vector<10x160xf32>
    %42 = tpu.matmul %39, %41, %cst_45 {dimension_numbers = #tpu.dot_dimension_numbers<[1], [0], [0], [1], [0, 0, 1, 1], [], []>} : vector<10x84xf32>, vector<84x160xf32>, vector<10x160xf32> -> vector<10x160xf32>
    %c1_46 = arith.constant 1 : index
    %c0_47 = arith.constant 0 : index
    %43 = vector.load %arg17[%c1_46, %c0_47] : memref<14x84xf32, #tpu.memory_space<vmem>>, vector<10x84xf32>
    %c1_48 = arith.constant 1 : index
    %c0_49 = arith.constant 0 : index
    %c0_50 = arith.constant 0 : index
    %44 = vector.load %arg6[%c1_48, %c0_49, %c0_50] : memref<5x84x160xf32, #tpu.memory_space<vmem>>, vector<1x84x160xf32>
    %45 = vector.shape_cast %44 : vector<1x84x160xf32> to vector<84x160xf32>
    %cst_51 = arith.constant dense<0.000000e+00> : vector<10x160xf32>
    %46 = tpu.matmul %43, %45, %cst_51 {dimension_numbers = #tpu.dot_dimension_numbers<[1], [0], [0], [1], [0, 0, 1, 1], [], []>} : vector<10x84xf32>, vector<84x160xf32>, vector<10x160xf32> -> vector<10x160xf32>
    %47 = arith.addf %42, %46 : vector<10x160xf32>
    %c2_52 = arith.constant 2 : index
    %c0_53 = arith.constant 0 : index
    %48 = vector.load %arg17[%c2_52, %c0_53] : memref<14x84xf32, #tpu.memory_space<vmem>>, vector<10x84xf32>
    %c2_54 = arith.constant 2 : index
    %c0_55 = arith.constant 0 : index
    %c0_56 = arith.constant 0 : index
    %49 = vector.load %arg6[%c2_54, %c0_55, %c0_56] : memref<5x84x160xf32, #tpu.memory_space<vmem>>, vector<1x84x160xf32>
    %50 = vector.shape_cast %49 : vector<1x84x160xf32> to vector<84x160xf32>
    %cst_57 = arith.constant dense<0.000000e+00> : vector<10x160xf32>
    %51 = tpu.matmul %48, %50, %cst_57 {dimension_numbers = #tpu.dot_dimension_numbers<[1], [0], [0], [1], [0, 0, 1, 1], [], []>} : vector<10x84xf32>, vector<84x160xf32>, vector<10x160xf32> -> vector<10x160xf32>
    %52 = arith.addf %47, %51 : vector<10x160xf32>
    %c3_58 = arith.constant 3 : index
    %c0_59 = arith.constant 0 : index
    %53 = vector.load %arg17[%c3_58, %c0_59] : memref<14x84xf32, #tpu.memory_space<vmem>>, vector<10x84xf32>
    %c3_60 = arith.constant 3 : index
    %c0_61 = arith.constant 0 : index
    %c0_62 = arith.constant 0 : index
    %54 = vector.load %arg6[%c3_60, %c0_61, %c0_62] : memref<5x84x160xf32, #tpu.memory_space<vmem>>, vector<1x84x160xf32>
    %55 = vector.shape_cast %54 : vector<1x84x160xf32> to vector<84x160xf32>
    %cst_63 = arith.constant dense<0.000000e+00> : vector<10x160xf32>
    %56 = tpu.matmul %53, %55, %cst_63 {dimension_numbers = #tpu.dot_dimension_numbers<[1], [0], [0], [1], [0, 0, 1, 1], [], []>} : vector<10x84xf32>, vector<84x160xf32>, vector<10x160xf32> -> vector<10x160xf32>
    %57 = arith.addf %52, %56 : vector<10x160xf32>
    %c4_64 = arith.constant 4 : index
    %c0_65 = arith.constant 0 : index
    %58 = vector.load %arg17[%c4_64, %c0_65] : memref<14x84xf32, #tpu.memory_space<vmem>>, vector<10x84xf32>
    %c4_66 = arith.constant 4 : index
    %c0_67 = arith.constant 0 : index
    %c0_68 = arith.constant 0 : index
    %59 = vector.load %arg6[%c4_66, %c0_67, %c0_68] : memref<5x84x160xf32, #tpu.memory_space<vmem>>, vector<1x84x160xf32>
    %60 = vector.shape_cast %59 : vector<1x84x160xf32> to vector<84x160xf32>
    %cst_69 = arith.constant dense<0.000000e+00> : vector<10x160xf32>
    %61 = tpu.matmul %58, %60, %cst_69 {dimension_numbers = #tpu.dot_dimension_numbers<[1], [0], [0], [1], [0, 0, 1, 1], [], []>} : vector<10x84xf32>, vector<84x160xf32>, vector<10x160xf32> -> vector<10x160xf32>
    %62 = arith.addf %57, %61 : vector<10x160xf32>
    %c0_70 = arith.constant 0 : index
    %c0_71 = arith.constant 0 : index
    %63 = vector.load %arg7[%c0_70, %c0_71] : memref<1x160xf32, #tpu.memory_space<vmem>>, vector<1x160xf32>
    %64 = vector.broadcast %63 : vector<1x160xf32> to vector<10x160xf32>
    %65 = arith.addf %62, %64 : vector<10x160xf32>
    %cst_72 = arith.constant 0.000000e+00 : f32
    %66 = vector.broadcast %cst_72 : f32 to vector<10x160xf32>
    %67 = arith.maximumf %65, %66 : vector<10x160xf32>
    %c0_73 = arith.constant 0 : index
    %c0_74 = arith.constant 0 : index
    %68 = vector.load %arg8[%c0_73, %c0_74] : memref<5x10xf32, #tpu.memory_space<vmem>>, vector<5x10xf32>
    %cst_75 = arith.constant dense<0.000000e+00> : vector<5x160xf32>
    %69 = tpu.matmul %68, %67, %cst_75 {dimension_numbers = #tpu.dot_dimension_numbers<[1], [0], [0], [1], [0, 0, 1, 1], [], []>} : vector<5x10xf32>, vector<10x160xf32>, vector<5x160xf32> -> vector<5x160xf32>
    %c0_76 = arith.constant 0 : index
    %c0_77 = arith.constant 0 : index
    %70 = vector.load %arg9[%c0_76, %c0_77] : memref<160x80xf32, #tpu.memory_space<vmem>>, vector<160x80xf32>
    %cst_78 = arith.constant dense<0.000000e+00> : vector<5x80xf32>
    %71 = tpu.matmul %69, %70, %cst_78 {dimension_numbers = #tpu.dot_dimension_numbers<[1], [0], [0], [1], [0, 0, 1, 1], [], []>} : vector<5x160xf32>, vector<160x80xf32>, vector<5x80xf32> -> vector<5x80xf32>
    %c0_79 = arith.constant 0 : index
    %c0_80 = arith.constant 0 : index
    %72 = vector.load %arg18[%c0_79, %c0_80] : memref<5x80xf32, #tpu.memory_space<vmem>>, vector<5x80xf32>
    tpu.vector_store %arg18[%c0_79, %c0_80], %71 {strides = array<i32>} : memref<5x80xf32, #tpu.memory_space<vmem>>, vector<5x80xf32>,
    %c0_81 = arith.constant 0 : index
    %c0_82 = arith.constant 0 : index
    %73 = vector.load %arg18[%c0_81, %c0_82] : memref<5x80xf32, #tpu.memory_space<vmem>>, vector<1x80xf32>
    %c0_83 = arith.constant 0 : index
    %c0_84 = arith.constant 0 : index
    %c0_85 = arith.constant 0 : index
    %74 = vector.load %arg10[%c0_83, %c0_84, %c0_85] : memref<5x80x120xf32, #tpu.memory_space<vmem>>, vector<1x80x120xf32>
    %75 = vector.shape_cast %74 : vector<1x80x120xf32> to vector<80x120xf32>
    %cst_86 = arith.constant dense<0.000000e+00> : vector<1x120xf32>
    %76 = tpu.matmul %73, %75, %cst_86 {dimension_numbers = #tpu.dot_dimension_numbers<[1], [0], [0], [1], [0, 0, 1, 1], [], []>} : vector<1x80xf32>, vector<80x120xf32>, vector<1x120xf32> -> vector<1x120xf32>
    %c1_87 = arith.constant 1 : index
    %c0_88 = arith.constant 0 : index
    %77 = vector.load %arg18[%c1_87, %c0_88] : memref<5x80xf32, #tpu.memory_space<vmem>>, vector<1x80xf32>
    %c1_89 = arith.constant 1 : index
    %c0_90 = arith.constant 0 : index
    %c0_91 = arith.constant 0 : index
    %78 = vector.load %arg10[%c1_89, %c0_90, %c0_91] : memref<5x80x120xf32, #tpu.memory_space<vmem>>, vector<1x80x120xf32>
    %79 = vector.shape_cast %78 : vector<1x80x120xf32> to vector<80x120xf32>
    %cst_92 = arith.constant dense<0.000000e+00> : vector<1x120xf32>
    %80 = tpu.matmul %77, %79, %cst_92 {dimension_numbers = #tpu.dot_dimension_numbers<[1], [0], [0], [1], [0, 0, 1, 1], [], []>} : vector<1x80xf32>, vector<80x120xf32>, vector<1x120xf32> -> vector<1x120xf32>
    %81 = arith.addf %76, %80 : vector<1x120xf32>
    %c2_93 = arith.constant 2 : index
    %c0_94 = arith.constant 0 : index
    %82 = vector.load %arg18[%c2_93, %c0_94] : memref<5x80xf32, #tpu.memory_space<vmem>>, vector<1x80xf32>
    %c2_95 = arith.constant 2 : index
    %c0_96 = arith.constant 0 : index
    %c0_97 = arith.constant 0 : index
    %83 = vector.load %arg10[%c2_95, %c0_96, %c0_97] : memref<5x80x120xf32, #tpu.memory_space<vmem>>, vector<1x80x120xf32>
    %84 = vector.shape_cast %83 : vector<1x80x120xf32> to vector<80x120xf32>
    %cst_98 = arith.constant dense<0.000000e+00> : vector<1x120xf32>
    %85 = tpu.matmul %82, %84, %cst_98 {dimension_numbers = #tpu.dot_dimension_numbers<[1], [0], [0], [1], [0, 0, 1, 1], [], []>} : vector<1x80xf32>, vector<80x120xf32>, vector<1x120xf32> -> vector<1x120xf32>
    %86 = arith.addf %81, %85 : vector<1x120xf32>
    %c3_99 = arith.constant 3 : index
    %c0_100 = arith.constant 0 : index
    %87 = vector.load %arg18[%c3_99, %c0_100] : memref<5x80xf32, #tpu.memory_space<vmem>>, vector<1x80xf32>
    %c3_101 = arith.constant 3 : index
    %c0_102 = arith.constant 0 : index
    %c0_103 = arith.constant 0 : index
    %88 = vector.load %arg10[%c3_101, %c0_102, %c0_103] : memref<5x80x120xf32, #tpu.memory_space<vmem>>, vector<1x80x120xf32>
    %89 = vector.shape_cast %88 : vector<1x80x120xf32> to vector<80x120xf32>
    %cst_104 = arith.constant dense<0.000000e+00> : vector<1x120xf32>
    %90 = tpu.matmul %87, %89, %cst_104 {dimension_numbers = #tpu.dot_dimension_numbers<[1], [0], [0], [1], [0, 0, 1, 1], [], []>} : vector<1x80xf32>, vector<80x120xf32>, vector<1x120xf32> -> vector<1x120xf32>
    %91 = arith.addf %86, %90 : vector<1x120xf32>
    %c4_105 = arith.constant 4 : index
    %c0_106 = arith.constant 0 : index
    %92 = vector.load %arg18[%c4_105, %c0_106] : memref<5x80xf32, #tpu.memory_space<vmem>>, vector<1x80xf32>
    %c4_107 = arith.constant 4 : index
    %c0_108 = arith.constant 0 : index
    %c0_109 = arith.constant 0 : index
    %93 = vector.load %arg10[%c4_107, %c0_108, %c0_109] : memref<5x80x120xf32, #tpu.memory_space<vmem>>, vector<1x80x120xf32>
    %94 = vector.shape_cast %93 : vector<1x80x120xf32> to vector<80x120xf32>
    %cst_110 = arith.constant dense<0.000000e+00> : vector<1x120xf32>
    %95 = tpu.matmul %92, %94, %cst_110 {dimension_numbers = #tpu.dot_dimension_numbers<[1], [0], [0], [1], [0, 0, 1, 1], [], []>} : vector<1x80xf32>, vector<80x120xf32>, vector<1x120xf32> -> vector<1x120xf32>
    %96 = arith.addf %91, %95 : vector<1x120xf32>
    %c0_111 = arith.constant 0 : index
    %c0_112 = arith.constant 0 : index
    %97 = vector.load %arg11[%c0_111, %c0_112] : memref<1x120xf32, #tpu.memory_space<vmem>>, vector<1x120xf32>
    %98 = arith.addf %96, %97 : vector<1x120xf32>
    %cst_113 = arith.constant 0.000000e+00 : f32
    %99 = vector.broadcast %cst_113 : f32 to vector<1x120xf32>
    %100 = arith.maximumf %98, %99 : vector<1x120xf32>
    %c0_114 = arith.constant 0 : index
    %c0_115 = arith.constant 0 : index
    %101 = vector.load %arg12[%c0_114, %c0_115] : memref<120x84xf32, #tpu.memory_space<vmem>>, vector<120x84xf32>
    %cst_116 = arith.constant dense<0.000000e+00> : vector<1x84xf32>
    %102 = tpu.matmul %100, %101, %cst_116 {dimension_numbers = #tpu.dot_dimension_numbers<[1], [0], [0], [1], [0, 0, 1, 1], [], []>} : vector<1x120xf32>, vector<120x84xf32>, vector<1x84xf32> -> vector<1x84xf32>
    %c0_117 = arith.constant 0 : index
    %c0_118 = arith.constant 0 : index
    %103 = vector.load %arg13[%c0_117, %c0_118] : memref<1x84xf32, #tpu.memory_space<vmem>>, vector<1x84xf32>
    %104 = arith.addf %102, %103 : vector<1x84xf32>
    %cst_119 = arith.constant 0.000000e+00 : f32
    %105 = vector.broadcast %cst_119 : f32 to vector<1x84xf32>
    %106 = arith.maximumf %104, %105 : vector<1x84xf32>
    %c0_120 = arith.constant 0 : index
    %c0_121 = arith.constant 0 : index
    %107 = vector.load %arg14[%c0_120, %c0_121] : memref<84x10xf32, #tpu.memory_space<vmem>>, vector<84x10xf32>
    %cst_122 = arith.constant dense<0.000000e+00> : vector<1x10xf32>
    %108 = tpu.matmul %106, %107, %cst_122 {dimension_numbers = #tpu.dot_dimension_numbers<[1], [0], [0], [1], [0, 0, 1, 1], [], []>} : vector<1x84xf32>, vector<84x10xf32>, vector<1x10xf32> -> vector<1x10xf32>
    %c0_123 = arith.constant 0 : index
    %c0_124 = arith.constant 0 : index
    %109 = vector.load %arg15[%c0_123, %c0_124] : memref<1x10xf32, #tpu.memory_space<vmem>>, vector<1x10xf32>
    %110 = arith.addf %108, %109 : vector<1x10xf32>
    %c0_125 = arith.constant 0 : index
    %c0_126 = arith.constant 0 : index
    %c0_127 = arith.constant 0 : index
    %111 = vector.load %arg16[%c0_125, %c0_126, %c0_127] : memref<1x1x10xf32, #tpu.memory_space<vmem>>, vector<1x1x10xf32>
    %112 = vector.shape_cast %111 : vector<1x1x10xf32> to vector<1x10xf32>
    %113 = vector.shape_cast %110 : vector<1x10xf32> to vector<1x1x10xf32>
    tpu.vector_store %arg16[%c0_125, %c0_126, %c0_127], %113 {strides = array<i32>} : memref<1x1x10xf32, #tpu.memory_space<vmem>>, vector<1x1x10xf32>,
    return
  }
  func.func @transform_0(%arg0: i32) -> (i32, i32, i32) {
    %c0_i32 = arith.constant 0 : i32
    %c0_i32_0 = arith.constant 0 : i32
    %c0_i32_1 = arith.constant 0 : i32
    return %arg0, %c0_i32, %c0_i32_0 : i32, i32, i32
  }
  func.func @transform_1(%arg0: i32) -> (i32, i32, i32) {
    %c0_i32 = arith.constant 0 : i32
    %c0_i32_0 = arith.constant 0 : i32
    %c0_i32_1 = arith.constant 0 : i32
    %c0_i32_2 = arith.constant 0 : i32
    return %c0_i32, %c0_i32_0, %c0_i32_1 : i32, i32, i32
  }
  func.func @transform_2(%arg0: i32) -> (i32, i32) {
    %c0_i32 = arith.constant 0 : i32
    %c0_i32_0 = arith.constant 0 : i32
    %c0_i32_1 = arith.constant 0 : i32
    return %c0_i32, %c0_i32_0 : i32, i32
  }
  func.func @transform_3(%arg0: i32) -> (i32, i32) {
    %c0_i32 = arith.constant 0 : i32
    %c0_i32_0 = arith.constant 0 : i32
    %c0_i32_1 = arith.constant 0 : i32
    return %c0_i32, %c0_i32_0 : i32, i32
  }
  func.func @transform_4(%arg0: i32) -> (i32, i32) {
    %c0_i32 = arith.constant 0 : i32
    %c0_i32_0 = arith.constant 0 : i32
    %c0_i32_1 = arith.constant 0 : i32
    return %c0_i32, %c0_i32_0 : i32, i32
  }
  func.func @transform_5(%arg0: i32) -> (i32, i32, i32) {
    %c0_i32 = arith.constant 0 : i32
    %c0_i32_0 = arith.constant 0 : i32
    %c0_i32_1 = arith.constant 0 : i32
    %c0_i32_2 = arith.constant 0 : i32
    return %c0_i32, %c0_i32_0, %c0_i32_1 : i32, i32, i32
  }
  func.func @transform_6(%arg0: i32) -> (i32, i32) {
    %c0_i32 = arith.constant 0 : i32
    %c0_i32_0 = arith.constant 0 : i32
    %c0_i32_1 = arith.constant 0 : i32
    return %c0_i32, %c0_i32_0 : i32, i32
  }
  func.func @transform_7(%arg0: i32) -> (i32, i32) {
    %c0_i32 = arith.constant 0 : i32
    %c0_i32_0 = arith.constant 0 : i32
    %c0_i32_1 = arith.constant 0 : i32
    return %c0_i32, %c0_i32_0 : i32, i32
  }
  func.func @transform_8(%arg0: i32) -> (i32, i32) {
    %c0_i32 = arith.constant 0 : i32
    %c0_i32_0 = arith.constant 0 : i32
    %c0_i32_1 = arith.constant 0 : i32
    return %c0_i32, %c0_i32_0 : i32, i32
  }
  func.func @transform_9(%arg0: i32) -> (i32, i32, i32) {
    %c0_i32 = arith.constant 0 : i32
    %c0_i32_0 = arith.constant 0 : i32
    %c0_i32_1 = arith.constant 0 : i32
    %c0_i32_2 = arith.constant 0 : i32
    return %c0_i32, %c0_i32_0, %c0_i32_1 : i32, i32, i32
  }
  func.func @transform_10(%arg0: i32) -> (i32, i32) {
    %c0_i32 = arith.constant 0 : i32
    %c0_i32_0 = arith.constant 0 : i32
    %c0_i32_1 = arith.constant 0 : i32
    return %c0_i32, %c0_i32_0 : i32, i32
  }
  func.func @transform_11(%arg0: i32) -> (i32, i32) {
    %c0_i32 = arith.constant 0 : i32
    %c0_i32_0 = arith.constant 0 : i32
    %c0_i32_1 = arith.constant 0 : i32
    return %c0_i32, %c0_i32_0 : i32, i32
  }
  func.func @transform_12(%arg0: i32) -> (i32, i32) {
    %c0_i32 = arith.constant 0 : i32
    %c0_i32_0 = arith.constant 0 : i32
    %c0_i32_1 = arith.constant 0 : i32
    return %c0_i32, %c0_i32_0 : i32, i32
  }
  func.func @transform_13(%arg0: i32) -> (i32, i32) {
    %c0_i32 = arith.constant 0 : i32
    %c0_i32_0 = arith.constant 0 : i32
    %c0_i32_1 = arith.constant 0 : i32
    return %c0_i32, %c0_i32_0 : i32, i32
  }
  func.func @transform_14(%arg0: i32) -> (i32, i32) {
    %c0_i32 = arith.constant 0 : i32
    %c0_i32_0 = arith.constant 0 : i32
    %c0_i32_1 = arith.constant 0 : i32
    return %c0_i32, %c0_i32_0 : i32, i32
  }
  func.func @transform_15(%arg0: i32) -> (i32, i32, i32) {
    %c0_i32 = arith.constant 0 : i32
    %c0_i32_0 = arith.constant 0 : i32
    %c0_i32_1 = arith.constant 0 : i32
    return %arg0, %c0_i32, %c0_i32_0 : i32, i32, i32
  }
}

</mosaic_0001>

<llo_original>
// kernel: lenet_forward.1
$region0: #{lenet_forward.1}
  #allocation0 [shape = 'u32[]', space=smem, size = 0x4, offset = 0x4, fixed_abs, tag = 'smem constant byte address 0x4 - core index']
  #allocation1 [shape = 'u32[144,128]{1,0:T(1,128)}', space=vmem, size = 0x12000, scoped, tag = 'internal scratch']
  #allocation2 [shape = 'f32[14,84]{1,0:T(8,128)}', space=vmem, size = 0x2000, scoped, tag = 'scratch operand']
  #allocation3 [shape = 'f32[5,80]{1,0:T(8,128)}', space=vmem, size = 0x1000, scoped, tag = 'scratch operand']
  %s0 = inlined_call_operand.vmem [shape: f32[2,32,32], index: 0, kind: input, shape index: {}]
  %s1 = inlined_call_operand.vmem [shape: f32[5,32,168], index: 1, kind: input, shape index: {}]
  %s2 = inlined_call_operand.vmem [shape: f32[1,168], index: 2, kind: input, shape index: {}]
  %s3 = inlined_call_operand.vmem [shape: f32[14,28], index: 3, kind: input, shape index: {}]
  %s4 = inlined_call_operand.vmem [shape: f32[168,84], index: 4, kind: input, shape index: {}]
  %s5 = inlined_call_operand.vmem [shape: f32[5,84,160], index: 5, kind: input, shape index: {}]
  %s6 = inlined_call_operand.vmem [shape: f32[1,160], index: 6, kind: input, shape index: {}]
  %s7 = inlined_call_operand.vmem [shape: f32[5,10], index: 7, kind: input, shape index: {}]
  %s8 = inlined_call_operand.vmem [shape: f32[160,80], index: 8, kind: input, shape index: {}]
  %s9 = inlined_call_operand.vmem [shape: f32[5,80,120], index: 9, kind: input, shape index: {}]
  %s10 = inlined_call_operand.vmem [shape: f32[1,120], index: 10, kind: input, shape index: {}]
  %s11 = inlined_call_operand.vmem [shape: f32[120,84], index: 11, kind: input, shape index: {}]
  %s12 = inlined_call_operand.vmem [shape: f32[1,84], index: 12, kind: input, shape index: {}]
  %s13 = inlined_call_operand.vmem [shape: f32[84,10], index: 13, kind: input, shape index: {}]
  %s14 = inlined_call_operand.vmem [shape: f32[1,10], index: 14, kind: input, shape index: {}]
  %s15 = inlined_call_operand.hbm [shape: f32[2,1,10], index: 15, kind: output, shape index: {}]
  %s16 = sld [smem:[#allocation0]]
  $region93: #{lenet_forward.1} parent=0
    _
  %s18 = ssub.s32 1, %s16
  %s19 = scalar_select 0, %s18, %s16
  $region1: #{lenet_forward.1} parent=0
    #allocation4 [shape = 'u8[1024]{0}', space=vmem, size = 0x400, scoped, tag = 'output window, operand 0']
    #allocation5 [shape = 's32[2]{0}', space=sflag, size = 0x8, scoped, tag = 'scoped memory for lenet_forward.1']
    %20 = vsyncpa [#allocation5], 0
    %s21 = scalar_lea.sflag [#allocation5], 1
    %22 = vsyncpa %s21, 0
    loop: start=0, step=1, limit=4
    $region2: #{lenet_forward.1} parent=1 // loop_pre_header
      _
    $region3: #{lenet_forward.1} parent=1 // loop_header
      %s24 = sphi 0, %s28
      %p25 = scmp.ge.s32.totalorder %s24, 4
      %s34 = sphi 0, %s36
      %s37 = sphi 0, %s34
      %s38 = sphi 0, %s37
      %s54 = sphi 0, %s38
      %s58 = sphi 0, %s58
      %s60 = sphi 0, %s58
      %s61 = sphi 0, %s60
      %s75 = sphi 0, %s61
      %s79 = sphi 0, %s79
      %s81 = sphi 0, %s79
      %s82 = sphi 0, %s81
      %s96 = sphi 0, %s82
      %s100 = sphi 0, %s100
      %s102 = sphi 0, %s100
      %s103 = sphi 0, %s102
      %s117 = sphi 0, %s103
      %s121 = sphi 0, %s121
      %s123 = sphi 0, %s121
      %s124 = sphi 0, %s123
      %s138 = sphi 0, %s124
      %s142 = sphi 0, %s142
      %s144 = sphi 0, %s142
      %s145 = sphi 0, %s144
      %s159 = sphi 0, %s145
      %s163 = sphi 0, %s163
      %s165 = sphi 0, %s163
      %s166 = sphi 0, %s165
      %s180 = sphi 0, %s166
      %s184 = sphi 0, %s184
      %s186 = sphi 0, %s184
      %s187 = sphi 0, %s186
      %s201 = sphi 0, %s187
      %s205 = sphi 0, %s205
      %s207 = sphi 0, %s205
      %s208 = sphi 0, %s207
      %s222 = sphi 0, %s208
      %s226 = sphi 0, %s226
      %s228 = sphi 0, %s226
      %s229 = sphi 0, %s228
      %s243 = sphi 0, %s229
      %s247 = sphi 0, %s247
      %s249 = sphi 0, %s247
      %s250 = sphi 0, %s249
      %s264 = sphi 0, %s250
      %s268 = sphi 0, %s268
      %s270 = sphi 0, %s268
      %s271 = sphi 0, %s270
      %s285 = sphi 0, %s271
      %s289 = sphi 0, %s289
      %s291 = sphi 0, %s289
      %s292 = sphi 0, %s291
      %s306 = sphi 0, %s292
      %s310 = sphi 0, %s310
      %s312 = sphi 0, %s310
      %s313 = sphi 0, %s312
      %s327 = sphi 0, %s313
      %s331 = sphi 0, %s331
      %s333 = sphi 0, %s331
      %s334 = sphi 0, %s333
      %s348 = sphi 0, %s334
      %s354 = sphi 0, %s356
      %s357 = sphi 0, %s354
      %s358 = sphi 0, %s357
      %s374 = sphi 0, %s358
    $region4: #{lenet_forward.1} parent=1 // loop_header_branch
      %27 = sbr.rel (%p25) target = $region8
    $region5: #{lenet_forward.1} parent=1 // loop_body
      %s29 = ssub.s32 %s24, 1
      %s30 = ssub.s32 %s24, 2
      %s31 = sadd.s32 %s24, 1
      %s32 = ssub.s32 %s24, %s31
      %p33 = scmp.eq.s32.totalorder %s32, 0
      %s35 = sadd.s32 %s34, 1
      %s36 = scalar_select %p33, %s34, %s35
      %p39 = pneg %p33
      %p40 = scmp.eq.s32.totalorder %s24, 1
      %p41 = por %p39, %p40
      %p42 = scmp.ne.s32.totalorder %s34, %s37
      %p43 = scmp.eq.s32.totalorder %s24, 0
      %p44 = por %p42, %p43
      %p45 = scmp.ne.s32.totalorder %s34, %s37
      %p46 = scmp.eq.s32.totalorder %s29, 1
      %p47 = por %p45, %p46
      %p48 = scmp.ne.s32.totalorder %s37, %s38
      %p49 = scmp.eq.s32.totalorder %s29, 0
      %p50 = por %p48, %p49
      %p51 = scmp.ne.s32.totalorder %s37, %s38
      %p52 = scmp.eq.s32.totalorder %s30, 1
      %p53 = por %p51, %p52
      %p55 = scmp.ne.s32.totalorder %s38, %s54
      %p56 = scmp.eq.s32.totalorder %s30, 0
      %p57 = por %p55, %p56
      %s59 = sadd.s32 %s58, 1
      %p62 = scmp.eq.s32.totalorder %s24, 1
      %p63 = scmp.ne.s32.totalorder %s58, %s60
      %p64 = scmp.eq.s32.totalorder %s24, 0
      %p65 = por %p63, %p64
      %p66 = scmp.ne.s32.totalorder %s58, %s60
      %p67 = scmp.eq.s32.totalorder %s29, 1
      %p68 = por %p66, %p67
      %p69 = scmp.ne.s32.totalorder %s60, %s61
      %p70 = scmp.eq.s32.totalorder %s29, 0
      %p71 = por %p69, %p70
      %p72 = scmp.ne.s32.totalorder %s60, %s61
      %p73 = scmp.eq.s32.totalorder %s30, 1
      %p74 = por %p72, %p73
      %p76 = scmp.ne.s32.totalorder %s61, %s75
      %p77 = scmp.eq.s32.totalorder %s30, 0
      %p78 = por %p76, %p77
      %s80 = sadd.s32 %s79, 1
      %p83 = scmp.eq.s32.totalorder %s24, 1
      %p84 = scmp.ne.s32.totalorder %s79, %s81
      %p85 = scmp.eq.s32.totalorder %s24, 0
      %p86 = por %p84, %p85
      %p87 = scmp.ne.s32.totalorder %s79, %s81
      %p88 = scmp.eq.s32.totalorder %s29, 1
      %p89 = por %p87, %p88
      %p90 = scmp.ne.s32.totalorder %s81, %s82
      %p91 = scmp.eq.s32.totalorder %s29, 0
      %p92 = por %p90, %p91
      %p93 = scmp.ne.s32.totalorder %s81, %s82
      %p94 = scmp.eq.s32.totalorder %s30, 1
      %p95 = por %p93, %p94
      %p97 = scmp.ne.s32.totalorder %s82, %s96
      %p98 = scmp.eq.s32.totalorder %s30, 0
      %p99 = por %p97, %p98
      %s101 = sadd.s32 %s100, 1
      %p104 = scmp.eq.s32.totalorder %s24, 1
      %p105 = scmp.ne.s32.totalorder %s100, %s102
      %p106 = scmp.eq.s32.totalorder %s24, 0
      %p107 = por %p105, %p106
      %p108 = scmp.ne.s32.totalorder %s100, %s102
      %p109 = scmp.eq.s32.totalorder %s29, 1
      %p110 = por %p108, %p109
      %p111 = scmp.ne.s32.totalorder %s102, %s103
      %p112 = scmp.eq.s32.totalorder %s29, 0
      %p113 = por %p111, %p112
      %p114 = scmp.ne.s32.totalorder %s102, %s103
      %p115 = scmp.eq.s32.totalorder %s30, 1
      %p116 = por %p114, %p115
      %p118 = scmp.ne.s32.totalorder %s103, %s117
      %p119 = scmp.eq.s32.totalorder %s30, 0
      %p120 = por %p118, %p119
      %s122 = sadd.s32 %s121, 1
      %p125 = scmp.eq.s32.totalorder %s24, 1
      %p126 = scmp.ne.s32.totalorder %s121, %s123
      %p127 = scmp.eq.s32.totalorder %s24, 0
      %p128 = por %p126, %p127
      %p129 = scmp.ne.s32.totalorder %s121, %s123
      %p130 = scmp.eq.s32.totalorder %s29, 1
      %p131 = por %p129, %p130
      %p132 = scmp.ne.s32.totalorder %s123, %s124
      %p133 = scmp.eq.s32.totalorder %s29, 0
      %p134 = por %p132, %p133
      %p135 = scmp.ne.s32.totalorder %s123, %s124
      %p136 = scmp.eq.s32.totalorder %s30, 1
      %p137 = por %p135, %p136
      %p139 = scmp.ne.s32.totalorder %s124, %s138
      %p140 = scmp.eq.s32.totalorder %s30, 0
      %p141 = por %p139, %p140
      %s143 = sadd.s32 %s142, 1
      %p146 = scmp.eq.s32.totalorder %s24, 1
      %p147 = scmp.ne.s32.totalorder %s142, %s144
      %p148 = scmp.eq.s32.totalorder %s24, 0
      %p149 = por %p147, %p148
      %p150 = scmp.ne.s32.totalorder %s142, %s144
      %p151 = scmp.eq.s32.totalorder %s29, 1
      %p152 = por %p150, %p151
      %p153 = scmp.ne.s32.totalorder %s144, %s145
      %p154 = scmp.eq.s32.totalorder %s29, 0
      %p155 = por %p153, %p154
      %p156 = scmp.ne.s32.totalorder %s144, %s145
      %p157 = scmp.eq.s32.totalorder %s30, 1
      %p158 = por %p156, %p157
      %p160 = scmp.ne.s32.totalorder %s145, %s159
      %p161 = scmp.eq.s32.totalorder %s30, 0
      %p162 = por %p160, %p161
      %s164 = sadd.s32 %s163, 1
      %p167 = scmp.eq.s32.totalorder %s24, 1
      %p168 = scmp.ne.s32.totalorder %s163, %s165
      %p169 = scmp.eq.s32.totalorder %s24, 0
      %p170 = por %p168, %p169
      %p171 = scmp.ne.s32.totalorder %s163, %s165
      %p172 = scmp.eq.s32.totalorder %s29, 1
      %p173 = por %p171, %p172
      %p174 = scmp.ne.s32.totalorder %s165, %s166
      %p175 = scmp.eq.s32.totalorder %s29, 0
      %p176 = por %p174, %p175
      %p177 = scmp.ne.s32.totalorder %s165, %s166
      %p178 = scmp.eq.s32.totalorder %s30, 1
      %p179 = por %p177, %p178
      %p181 = scmp.ne.s32.totalorder %s166, %s180
      %p182 = scmp.eq.s32.totalorder %s30, 0
      %p183 = por %p181, %p182
      %s185 = sadd.s32 %s184, 1
      %p188 = scmp.eq.s32.totalorder %s24, 1
      %p189 = scmp.ne.s32.totalorder %s184, %s186
      %p190 = scmp.eq.s32.totalorder %s24, 0
      %p191 = por %p189, %p190
      %p192 = scmp.ne.s32.totalorder %s184, %s186
      %p193 = scmp.eq.s32.totalorder %s29, 1
      %p194 = por %p192, %p193
      %p195 = scmp.ne.s32.totalorder %s186, %s187
      %p196 = scmp.eq.s32.totalorder %s29, 0
      %p197 = por %p195, %p196
      %p198 = scmp.ne.s32.totalorder %s186, %s187
      %p199 = scmp.eq.s32.totalorder %s30, 1
      %p200 = por %p198, %p199
      %p202 = scmp.ne.s32.totalorder %s187, %s201
      %p203 = scmp.eq.s32.totalorder %s30, 0
      %p204 = por %p202, %p203
      %s206 = sadd.s32 %s205, 1
      %p209 = scmp.eq.s32.totalorder %s24, 1
      %p210 = scmp.ne.s32.totalorder %s205, %s207
      %p211 = scmp.eq.s32.totalorder %s24, 0
      %p212 = por %p210, %p211
      %p213 = scmp.ne.s32.totalorder %s205, %s207
      %p214 = scmp.eq.s32.totalorder %s29, 1
      %p215 = por %p213, %p214
      %p216 = scmp.ne.s32.totalorder %s207, %s208
      %p217 = scmp.eq.s32.totalorder %s29, 0
      %p218 = por %p216, %p217
      %p219 = scmp.ne.s32.totalorder %s207, %s208
      %p220 = scmp.eq.s32.totalorder %s30, 1
      %p221 = por %p219, %p220
      %p223 = scmp.ne.s32.totalorder %s208, %s222
      %p224 = scmp.eq.s32.totalorder %s30, 0
      %p225 = por %p223, %p224
      %s227 = sadd.s32 %s226, 1
      %p230 = scmp.eq.s32.totalorder %s24, 1
      %p231 = scmp.ne.s32.totalorder %s226, %s228
      %p232 = scmp.eq.s32.totalorder %s24, 0
      %p233 = por %p231, %p232
      %p234 = scmp.ne.s32.totalorder %s226, %s228
      %p235 = scmp.eq.s32.totalorder %s29, 1
      %p236 = por %p234, %p235
      %p237 = scmp.ne.s32.totalorder %s228, %s229
      %p238 = scmp.eq.s32.totalorder %s29, 0
      %p239 = por %p237, %p238
      %p240 = scmp.ne.s32.totalorder %s228, %s229
      %p241 = scmp.eq.s32.totalorder %s30, 1
      %p242 = por %p240, %p241
      %p244 = scmp.ne.s32.totalorder %s229, %s243
      %p245 = scmp.eq.s32.totalorder %s30, 0
      %p246 = por %p244, %p245
      %s248 = sadd.s32 %s247, 1
      %p251 = scmp.eq.s32.totalorder %s24, 1
      %p252 = scmp.ne.s32.totalorder %s247, %s249
      %p253 = scmp.eq.s32.totalorder %s24, 0
      %p254 = por %p252, %p253
      %p255 = scmp.ne.s32.totalorder %s247, %s249
      %p256 = scmp.eq.s32.totalorder %s29, 1
      %p257 = por %p255, %p256
      %p258 = scmp.ne.s32.totalorder %s249, %s250
      %p259 = scmp.eq.s32.totalorder %s29, 0
      %p260 = por %p258, %p259
      %p261 = scmp.ne.s32.totalorder %s249, %s250
      %p262 = scmp.eq.s32.totalorder %s30, 1
      %p263 = por %p261, %p262
      %p265 = scmp.ne.s32.totalorder %s250, %s264
      %p266 = scmp.eq.s32.totalorder %s30, 0
      %p267 = por %p265, %p266
      %s269 = sadd.s32 %s268, 1
      %p272 = scmp.eq.s32.totalorder %s24, 1
      %p273 = scmp.ne.s32.totalorder %s268, %s270
      %p274 = scmp.eq.s32.totalorder %s24, 0
      %p275 = por %p273, %p274
      %p276 = scmp.ne.s32.totalorder %s268, %s270
      %p277 = scmp.eq.s32.totalorder %s29, 1
      %p278 = por %p276, %p277
      %p279 = scmp.ne.s32.totalorder %s270, %s271
      %p280 = scmp.eq.s32.totalorder %s29, 0
      %p281 = por %p279, %p280
      %p282 = scmp.ne.s32.totalorder %s270, %s271
      %p283 = scmp.eq.s32.totalorder %s30, 1
      %p284 = por %p282, %p283
      %p286 = scmp.ne.s32.totalorder %s271, %s285
      %p287 = scmp.eq.s32.totalorder %s30, 0
      %p288 = por %p286, %p287
      %s290 = sadd.s32 %s289, 1
      %p293 = scmp.eq.s32.totalorder %s24, 1
      %p294 = scmp.ne.s32.totalorder %s289, %s291
      %p295 = scmp.eq.s32.totalorder %s24, 0
      %p296 = por %p294, %p295
      %p297 = scmp.ne.s32.totalorder %s289, %s291
      %p298 = scmp.eq.s32.totalorder %s29, 1
      %p299 = por %p297, %p298
      %p300 = scmp.ne.s32.totalorder %s291, %s292
      %p301 = scmp.eq.s32.totalorder %s29, 0
      %p302 = por %p300, %p301
      %p303 = scmp.ne.s32.totalorder %s291, %s292
      %p304 = scmp.eq.s32.totalorder %s30, 1
      %p305 = por %p303, %p304
      %p307 = scmp.ne.s32.totalorder %s292, %s306
      %p308 = scmp.eq.s32.totalorder %s30, 0
      %p309 = por %p307, %p308
      %s311 = sadd.s32 %s310, 1
      %p314 = scmp.eq.s32.totalorder %s24, 1
      %p315 = scmp.ne.s32.totalorder %s310, %s312
      %p316 = scmp.eq.s32.totalorder %s24, 0
      %p317 = por %p315, %p316
      %p318 = scmp.ne.s32.totalorder %s310, %s312
      %p319 = scmp.eq.s32.totalorder %s29, 1
      %p320 = por %p318, %p319
      %p321 = scmp.ne.s32.totalorder %s312, %s313
      %p322 = scmp.eq.s32.totalorder %s29, 0
      %p323 = por %p321, %p322
      %p324 = scmp.ne.s32.totalorder %s312, %s313
      %p325 = scmp.eq.s32.totalorder %s30, 1
      %p326 = por %p324, %p325
      %p328 = scmp.ne.s32.totalorder %s313, %s327
      %p329 = scmp.eq.s32.totalorder %s30, 0
      %p330 = por %p328, %p329
      %s332 = sadd.s32 %s331, 1
      %p335 = scmp.eq.s32.totalorder %s24, 1
      %p336 = scmp.ne.s32.totalorder %s331, %s333
      %p337 = scmp.eq.s32.totalorder %s24, 0
      %p338 = por %p336, %p337
      %p339 = scmp.ne.s32.totalorder %s331, %s333
      %p340 = scmp.eq.s32.totalorder %s29, 1
      %p341 = por %p339, %p340
      %p342 = scmp.ne.s32.totalorder %s333, %s334
      %p343 = scmp.eq.s32.totalorder %s29, 0
      %p344 = por %p342, %p343
      %p345 = scmp.ne.s32.totalorder %s333, %s334
      %p346 = scmp.eq.s32.totalorder %s30, 1
      %p347 = por %p345, %p346
      %p349 = scmp.ne.s32.totalorder %s334, %s348
      %p350 = scmp.eq.s32.totalorder %s30, 0
      %p351 = por %p349, %p350
      %s352 = ssub.s32 %s24, %s31
      %p353 = scmp.eq.s32.totalorder %s352, 0
      %s355 = sadd.s32 %s354, 1
      %s356 = scalar_select %p353, %s354, %s355
      %p359 = pneg %p353
      %p360 = scmp.eq.s32.totalorder %s24, 1
      %p361 = por %p359, %p360
      %p362 = scmp.ne.s32.totalorder %s354, %s357
      %p363 = scmp.eq.s32.totalorder %s24, 0
      %p364 = por %p362, %p363
      %p365 = scmp.ne.s32.totalorder %s354, %s357
      %p366 = scmp.eq.s32.totalorder %s29, 1
      %p367 = por %p365, %p366
      %p368 = scmp.ne.s32.totalorder %s357, %s358
      %p369 = scmp.eq.s32.totalorder %s29, 0
      %p370 = por %p368, %p369
      %p371 = scmp.ne.s32.totalorder %s357, %s358
      %p372 = scmp.eq.s32.totalorder %s30, 1
      %p373 = por %p371, %p372
      %p375 = scmp.ne.s32.totalorder %s358, %s374
      %p376 = scmp.eq.s32.totalorder %s30, 0
      %p377 = por %p375, %p376
      %p378 = scmp.le.s32.totalorder 1, %s24
      %p379 = scmp.lt.s32.totalorder %s24, 3
      %p380 = pnand %p378, %p379
      %p381 = pneg %p380
      // Predicated region
      $region9: #{lenet_forward.1} parent=5 // pred_check
        _
      $region10: #{lenet_forward.1} parent=5 // pred_check_branch
        %383 = sbr.rel (%p380) target = $region12
      $region11: #{lenet_forward.1} parent=5 // pred_region
        %s384 = ssub.s32 %s24, 1
        // Predicated region
        $region13: #{lenet_forward.1} parent=11 // pred_check
          %p385 = pneg %p71
        $region14: #{lenet_forward.1} parent=11 // pred_check_branch
          %387 = sbr.rel (%p385) target = $region16
        $region15: #{lenet_forward.1} parent=11 // pred_region
          _
        $region16: #{lenet_forward.1} parent=11 // pred_fallthru
          _
        // Predicated region
        $region17: #{lenet_forward.1} parent=11 // pred_check
          %p388 = pneg %p92
        $region18: #{lenet_forward.1} parent=11 // pred_check_branch
          %390 = sbr.rel (%p388) target = $region20
        $region19: #{lenet_forward.1} parent=11 // pred_region
          _
        $region20: #{lenet_forward.1} parent=11 // pred_fallthru
          _
        // Predicated region
        $region21: #{lenet_forward.1} parent=11 // pred_check
          %p391 = pneg %p113
        $region22: #{lenet_forward.1} parent=11 // pred_check_branch
          %393 = sbr.rel (%p391) target = $region24
        $region23: #{lenet_forward.1} parent=11 // pred_region
          _
        $region24: #{lenet_forward.1} parent=11 // pred_fallthru
          _
        // Predicated region
        $region25: #{lenet_forward.1} parent=11 // pred_check
          %p394 = pneg %p134
        $region26: #{lenet_forward.1} parent=11 // pred_check_branch
          %396 = sbr.rel (%p394) target = $region28
        $region27: #{lenet_forward.1} parent=11 // pred_region
          _
        $region28: #{lenet_forward.1} parent=11 // pred_fallthru
          _
        // Predicated region
        $region29: #{lenet_forward.1} parent=11 // pred_check
          %p397 = pneg %p155
        $region30: #{lenet_forward.1} parent=11 // pred_check_branch
          %399 = sbr.rel (%p397) target = $region32
        $region31: #{lenet_forward.1} parent=11 // pred_region
          _
        $region32: #{lenet_forward.1} parent=11 // pred_fallthru
          _
        // Predicated region
        $region33: #{lenet_forward.1} parent=11 // pred_check
          %p400 = pneg %p176
        $region34: #{lenet_forward.1} parent=11 // pred_check_branch
          %402 = sbr.rel (%p400) target = $region36
        $region35: #{lenet_forward.1} parent=11 // pred_region
          _
        $region36: #{lenet_forward.1} parent=11 // pred_fallthru
          _
        // Predicated region
        $region37: #{lenet_forward.1} parent=11 // pred_check
          %p403 = pneg %p197
        $region38: #{lenet_forward.1} parent=11 // pred_check_branch
          %405 = sbr.rel (%p403) target = $region40
        $region39: #{lenet_forward.1} parent=11 // pred_region
          _
        $region40: #{lenet_forward.1} parent=11 // pred_fallthru
          _
        // Predicated region
        $region41: #{lenet_forward.1} parent=11 // pred_check
          %p406 = pneg %p218
        $region42: #{lenet_forward.1} parent=11 // pred_check_branch
          %408 = sbr.rel (%p406) target = $region44
        $region43: #{lenet_forward.1} parent=11 // pred_region
          _
        $region44: #{lenet_forward.1} parent=11 // pred_fallthru
          _
        // Predicated region
        $region45: #{lenet_forward.1} parent=11 // pred_check
          %p409 = pneg %p239
        $region46: #{lenet_forward.1} parent=11 // pred_check_branch
          %411 = sbr.rel (%p409) target = $region48
        $region47: #{lenet_forward.1} parent=11 // pred_region
          _
        $region48: #{lenet_forward.1} parent=11 // pred_fallthru
          _
        // Predicated region
        $region49: #{lenet_forward.1} parent=11 // pred_check
          %p412 = pneg %p260
        $region50: #{lenet_forward.1} parent=11 // pred_check_branch
          %414 = sbr.rel (%p412) target = $region52
        $region51: #{lenet_forward.1} parent=11 // pred_region
          _
        $region52: #{lenet_forward.1} parent=11 // pred_fallthru
          _
        // Predicated region
        $region53: #{lenet_forward.1} parent=11 // pred_check
          %p415 = pneg %p281
        $region54: #{lenet_forward.1} parent=11 // pred_check_branch
          %417 = sbr.rel (%p415) target = $region56
        $region55: #{lenet_forward.1} parent=11 // pred_region
          _
        $region56: #{lenet_forward.1} parent=11 // pred_fallthru
          _
        // Predicated region
        $region57: #{lenet_forward.1} parent=11 // pred_check
          %p418 = pneg %p302
        $region58: #{lenet_forward.1} parent=11 // pred_check_branch
          %420 = sbr.rel (%p418) target = $region60
        $region59: #{lenet_forward.1} parent=11 // pred_region
          _
        $region60: #{lenet_forward.1} parent=11 // pred_fallthru
          _
        // Predicated region
        $region61: #{lenet_forward.1} parent=11 // pred_check
          %p421 = pneg %p323
        $region62: #{lenet_forward.1} parent=11 // pred_check_branch
          %423 = sbr.rel (%p421) target = $region64
        $region63: #{lenet_forward.1} parent=11 // pred_region
          _
        $region64: #{lenet_forward.1} parent=11 // pred_fallthru
          _
        // Predicated region
        $region65: #{lenet_forward.1} parent=11 // pred_check
          %p424 = pneg %p344
        $region66: #{lenet_forward.1} parent=11 // pred_check_branch
          %426 = sbr.rel (%p424) target = $region68
        $region67: #{lenet_forward.1} parent=11 // pred_region
          _
        $region68: #{lenet_forward.1} parent=11 // pred_fallthru
          _
      $region12: #{lenet_forward.1} parent=5 // pred_fallthru
        _
      %p427 = scmp.lt.s32.totalorder %s24, 2
      // Predicated region
      $region69: #{lenet_forward.1} parent=5 // pred_check
        %p428 = pneg %p427
      $region70: #{lenet_forward.1} parent=5 // pred_check_branch
        %430 = sbr.rel (%p428) target = $region72
      $region71: #{lenet_forward.1} parent=5 // pred_region
        // Predicated region
        $region73: #{lenet_forward.1} parent=71 // pred_check
          %p431 = pneg %p44
        $region74: #{lenet_forward.1} parent=71 // pred_check_branch
          %433 = sbr.rel (%p431) target = $region76
        $region75: #{lenet_forward.1} parent=71 // pred_region
          %p434 = scmp.lt.s32.totalorder %s24, 1
          %s435 = scalar_select %p434, %s24, 1
          %s436 = smul.addr %s435, 4
          %s437 = smul.addr %s436, 8
          %s438 = scalar_lea.vmem %s0, %s437
        $region76: #{lenet_forward.1} parent=71 // pred_fallthru
          _
      $region72: #{lenet_forward.1} parent=5 // pred_fallthru
        _
      %p439 = scmp.le.s32.totalorder 1, %s24
      %p440 = scmp.lt.s32.totalorder %s24, 3
      %p441 = pnand %p439, %p440
      %p442 = pneg %p441
      // Predicated region
      $region77: #{lenet_forward.1} parent=5 // pred_check
        _
      $region78: #{lenet_forward.1} parent=5 // pred_check_branch
        %444 = sbr.rel (%p441) target = $region80
      $region79: #{lenet_forward.1} parent=5 // pred_region
        %s445 = ssub.s32 %s24, 1
        %p446 = scmp.lt.s32.totalorder %s29, 1
        %s447 = scalar_select %p446, %s29, 1
        %s448 = smul.addr %s447, 4
        %s449 = smul.addr %s448, 8
        %s450 = scalar_lea.vmem %s0, %s449
        %p451 = pneg %p50
        %p452 = pneg %p47
        %p453 = pneg %p71
        %p454 = pneg %p68
        %p455 = pneg %p92
        %p456 = pneg %p89
        %p457 = pneg %p113
        %p458 = pneg %p110
        %p459 = pneg %p134
        %p460 = pneg %p131
        %p461 = pneg %p155
        %p462 = pneg %p152
        %p463 = pneg %p176
        %p464 = pneg %p173
        %p465 = pneg %p197
        %p466 = pneg %p194
        %p467 = pneg %p218
        %p468 = pneg %p215
        %p469 = pneg %p239
        %p470 = pneg %p236
        %p471 = pneg %p260
        %p472 = pneg %p257
        %p473 = pneg %p281
        %p474 = pneg %p278
        %p475 = pneg %p302
        %p476 = pneg %p299
        %p477 = pneg %p323
        %p478 = pneg %p320
        %p479 = pneg %p344
        %p480 = pneg %p341
        %p481 = pneg %p370
        %p482 = pneg %p367
        %s483 = sand.u32 %s357, 1
        %s484 = scalar_lea.sflag [#allocation5], %s483
        %s485 = sand.u32 %s357, 1
        %s486 = scalar_lea.vmem [#allocation4], %s485
        %p487 = scmp.lt.s32.totalorder %s29, 1
        %s488 = scalar_select %p487, %s29, 1
        %s489 = smul.addr %s488, 4
        %s490 = smul.addr %s489, 8
        %s491 = scalar_lea.vmem %s0, %s490
        %v492 = vld [vmem:[%s491] sm:$0xff]
        %v493 = vld [vmem:[%s491 + $0x8] sm:$0xff]
        %v494 = vld [vmem:[%s491 + $0x10] sm:$0xff]
        %v495 = vld [vmem:[%s491 + $0x18] sm:$0xf]
        %v496 = vld [vmem:[%s1] sm:$0xff]
        %v497 = vld [vmem:[%s1 + $0x8] sm:$0xff]
        %v498 = vld [vmem:[%s1 + $0x10] sm:$0xff]
        %v499 = vld [vmem:[%s1 + $0x18] sm:$0xff]
        %v500 = vld [vmem:[%s1 + $0x20] sm:$0xff]
        %v501 = vld [vmem:[%s1 + $0x28] sm:$0xff]
        %v502 = vld [vmem:[%s1 + $0x30] sm:$0xff]
        %v503 = vld [vmem:[%s1 + $0x38] sm:$0xff]
        %v504 = vld [vmem:[%s491 + $0x1] sm:$0xff]
        %v505 = vld [vmem:[%s491 + $0x9] sm:$0xff]
        %v506 = vld [vmem:[%s491 + $0x11] sm:$0xff]
        %v507 = vld [vmem:[%s491 + $0x19] sm:$0xf]
        %s508 = scalar_lea.vmem %s1, 64
        %v509 = vld [vmem:[%s508] sm:$0xff]
        %v510 = vld [vmem:[%s508 + $0x8] sm:$0xff]
        %v511 = vld [vmem:[%s508 + $0x10] sm:$0xff]
        %v512 = vld [vmem:[%s508 + $0x18] sm:$0xff]
        %v513 = vld [vmem:[%s508 + $0x20] sm:$0xff]
        %v514 = vld [vmem:[%s508 + $0x28] sm:$0xff]
        %v515 = vld [vmem:[%s508 + $0x30] sm:$0xff]
        %v516 = vld [vmem:[%s508 + $0x38] sm:$0xff]
        %vm517 = vcmask 261120
        %v519 = vsel %vm517, %v504, 0
        %v522 = vsel %vm517, %v505, 0
        %v525 = vsel %vm517, %v506, 0
        %v528 = vsel %vm517, %v507, 0
        %530 = vmatprep.subr.mxu0 0.0
        %531 = vmatpush1.msra.mxu0 0.0
        %532 = vmatprep.subr.mxu0 0.0
        %533 = vmatpush1.msra.mxu0 0.0
        %534 = vmatprep.subr.mxu0 0.0
        %535 = vmatpush1.msra.mxu0 0.0
        %536 = vmatprep.subr.mxu0 0.0
        %537 = vmatpush1.msra.mxu0 0.0
        %538 = vmatprep.subr.mxu0 0.0
        %539 = vmatpush1.msra.mxu0 0.0
        %540 = vmatprep.subr.mxu0 0.0
        %541 = vmatpush1.msra.mxu0 0.0
        %542 = vmatprep.subr.mxu0 0.0
        %543 = vmatpush1.msra.mxu0 0.0
        %544 = vmatprep.subr.mxu0 0.0
        %545 = vmatpush1.msra.mxu0 0.0
        %546 = vmatprep.subr.mxu0 0.0
        %547 = vmatpush1.msra.mxu0 0.0
        %548 = vmatprep.subr.mxu0 0.0
        %549 = vmatpush1.msra.mxu0 0.0
        %550 = vmatprep.subr.mxu0 0.0
        %551 = vmatpush1.msra.mxu0 0.0
        %552 = vmatprep.subr.mxu0 0.0
        %553 = vmatpush1.msra.mxu0 0.0
        %554 = vmatprep.subr.mxu0 %v516
        %555 = vmatpush1.msra.mxu0 %v515
        %556 = vmatprep.subr.mxu0 %v514
        %557 = vmatpush1.msra.mxu0 %v513
        %558 = vmatprep.subr.mxu0 %v512
        %559 = vmatpush1.msra.mxu0 %v511
        %560 = vmatprep.subr.mxu0 %v510
        %561 = vmatpush1.msra.mxu0 %v509
        %562 = vmatprep.subr.mxu0 0.0
        %563 = vmatpush2.msra.mxu0 0.0
        %564 = vmatprep.subr.mxu0 0.0
        %565 = vmatpush2.msra.mxu0 0.0
        %566 = vmatprep.subr.mxu0 0.0
        %567 = vmatpush2.msra.mxu0 0.0
        %568 = vmatprep.subr.mxu0 0.0
        %569 = vmatpush2.msra.mxu0 0.0
        %570 = vmatprep.subr.mxu0 0.0
        %571 = vmatpush2.msra.mxu0 0.0
        %572 = vmatprep.subr.mxu0 0.0
        %573 = vmatpush2.msra.mxu0 0.0
        %574 = vmatprep.subr.mxu0 0.0
        %575 = vmatpush2.msra.mxu0 0.0
        %576 = vmatprep.subr.mxu0 0.0
        %577 = vmatpush2.msra.mxu0 0.0
        %578 = vmatprep.subr.mxu0 0.0
        %579 = vmatpush2.msra.mxu0 0.0
        %580 = vmatprep.subr.mxu0 0.0
        %581 = vmatpush2.msra.mxu0 0.0
        %582 = vmatprep.subr.mxu0 0.0
        %583 = vmatpush2.msra.mxu0 0.0
        %584 = vmatprep.subr.mxu0 0.0
        %585 = vmatpush2.msra.mxu0 0.0
        %586 = vmatprep.subr.mxu0 0.0
        %587 = vmatpush2.msra.mxu0 0.0
        %588 = vmatprep.subr.mxu0 0.0
        %589 = vmatpush2.msra.mxu0 0.0
        %590 = vmatprep.subr.mxu0 0.0
        %591 = vmatpush2.msra.mxu0 0.0
        %592 = vmatprep.subr.mxu0 0.0
        %593 = vmatpush2.msra.mxu0 0.0
        %594 = vmatprep.mubr.f32.mxu0 0.0
        %595 = vmatmul.mubr.f32.gmra.mxu0 %v519
        %v596 = vpop.f32.mrf.mxu0
        %v597 = vadd.f32 0.0, %v596
        %v598 = vpop.f32.mrf.mxu0
        %v599 = vadd.f32 0.0, %v598
        %600 = vmatprep.mubr.f32.mxu0 0.0
        %601 = vmatmul.mubr.f32.gmra.mxu0 %v522
        %v602 = vpop.f32.mrf.mxu0
        %v603 = vadd.f32 0.0, %v602
        %v604 = vpop.f32.mrf.mxu0
        %v605 = vadd.f32 0.0, %v604
        %606 = vmatprep.mubr.f32.mxu0 0.0
        %607 = vmatmul.mubr.f32.gmra.mxu0 %v525
        %v608 = vpop.f32.mrf.mxu0
        %v609 = vadd.f32 0.0, %v608
        %v610 = vpop.f32.mrf.mxu0
        %v611 = vadd.f32 0.0, %v610
        %612 = vmatprep.mubr.f32.mxu0 0.0
        %613 = vmatmul.mubr.f32.gmra.mxu0 %v528
        %v614 = vpop.f32.mrf.mxu0
        %v615 = vadd.f32 0.0, %v614
        %v616 = vpop.f32.mrf.mxu0
        %v617 = vadd.f32 0.0, %v616
        %618 = vdwg.mxu0
        %v620 = vsel %vm517, %v492, 0
        %v623 = vsel %vm517, %v493, 0
        %v626 = vsel %vm517, %v494, 0
        %v629 = vsel %vm517, %v495, 0
        %631 = vmatprep.subr.mxu0 0.0
        %632 = vmatpush1.msra.mxu0 0.0
        %633 = vmatprep.subr.mxu0 0.0
        %634 = vmatpush1.msra.mxu0 0.0
        %635 = vmatprep.subr.mxu0 0.0
        %636 = vmatpush1.msra.mxu0 0.0
        %637 = vmatprep.subr.mxu0 0.0
        %638 = vmatpush1.msra.mxu0 0.0
        %639 = vmatprep.subr.mxu0 0.0
        %640 = vmatpush1.msra.mxu0 0.0
        %641 = vmatprep.subr.mxu0 0.0
        %642 = vmatpush1.msra.mxu0 0.0
        %643 = vmatprep.subr.mxu0 0.0
        %644 = vmatpush1.msra.mxu0 0.0
        %645 = vmatprep.subr.mxu0 0.0
        %646 = vmatpush1.msra.mxu0 0.0
        %647 = vmatprep.subr.mxu0 0.0
        %648 = vmatpush1.msra.mxu0 0.0
        %649 = vmatprep.subr.mxu0 0.0
        %650 = vmatpush1.msra.mxu0 0.0
        %651 = vmatprep.subr.mxu0 0.0
        %652 = vmatpush1.msra.mxu0 0.0
        %653 = vmatprep.subr.mxu0 0.0
        %654 = vmatpush1.msra.mxu0 0.0
        %655 = vmatprep.subr.mxu0 %v503
        %656 = vmatpush1.msra.mxu0 %v502
        %657 = vmatprep.subr.mxu0 %v501
        %658 = vmatpush1.msra.mxu0 %v500
        %659 = vmatprep.subr.mxu0 %v499
        %660 = vmatpush1.msra.mxu0 %v498
        %661 = vmatprep.subr.mxu0 %v497
        %662 = vmatpush1.msra.mxu0 %v496
        %663 = vmatprep.subr.mxu0 0.0
        %664 = vmatpush2.msra.mxu0 0.0
        %665 = vmatprep.subr.mxu0 0.0
        %666 = vmatpush2.msra.mxu0 0.0
        %667 = vmatprep.subr.mxu0 0.0
        %668 = vmatpush2.msra.mxu0 0.0
        %669 = vmatprep.subr.mxu0 0.0
        %670 = vmatpush2.msra.mxu0 0.0
        %671 = vmatprep.subr.mxu0 0.0
        %672 = vmatpush2.msra.mxu0 0.0
        %673 = vmatprep.subr.mxu0 0.0
        %674 = vmatpush2.msra.mxu0 0.0
        %675 = vmatprep.subr.mxu0 0.0
        %676 = vmatpush2.msra.mxu0 0.0
        %677 = vmatprep.subr.mxu0 0.0
        %678 = vmatpush2.msra.mxu0 0.0
        %679 = vmatprep.subr.mxu0 0.0
        %680 = vmatpush2.msra.mxu0 0.0
        %681 = vmatprep.subr.mxu0 0.0
        %682 = vmatpush2.msra.mxu0 0.0
        %683 = vmatprep.subr.mxu0 0.0
        %684 = vmatpush2.msra.mxu0 0.0
        %685 = vmatprep.subr.mxu0 0.0
        %686 = vmatpush2.msra.mxu0 0.0
        %687 = vmatprep.subr.mxu0 0.0
        %688 = vmatpush2.msra.mxu0 0.0
        %689 = vmatprep.subr.mxu0 0.0
        %690 = vmatpush2.msra.mxu0 0.0
        %691 = vmatprep.subr.mxu0 0.0
        %692 = vmatpush2.msra.mxu0 0.0
        %693 = vmatprep.subr.mxu0 0.0
        %694 = vmatpush2.msra.mxu0 0.0
        %695 = vmatprep.mubr.f32.mxu0 0.0
        %696 = vmatmul.mubr.f32.gmra.mxu0 %v620
        %v697 = vpop.f32.mrf.mxu0
        %v698 = vadd.f32 %v597, %v697
        %v699 = vpop.f32.mrf.mxu0
        %v700 = vadd.f32 %v599, %v699
        %701 = vmatprep.mubr.f32.mxu0 0.0
        %702 = vmatmul.mubr.f32.gmra.mxu0 %v623
        %v703 = vpop.f32.mrf.mxu0
        %v704 = vadd.f32 %v603, %v703
        %v705 = vpop.f32.mrf.mxu0
        %v706 = vadd.f32 %v605, %v705
        %707 = vmatprep.mubr.f32.mxu0 0.0
        %708 = vmatmul.mubr.f32.gmra.mxu0 %v626
        %v709 = vpop.f32.mrf.mxu0
        %v710 = vadd.f32 %v609, %v709
        %v711 = vpop.f32.mrf.mxu0
        %v712 = vadd.f32 %v611, %v711
        %713 = vmatprep.mubr.f32.mxu0 0.0
        %714 = vmatmul.mubr.f32.gmra.mxu0 %v629
        %v715 = vpop.f32.mrf.mxu0
        %v716 = vadd.f32 %v615, %v715
        %v717 = vpop.f32.mrf.mxu0
        %v718 = vadd.f32 %v617, %v717
        %719 = vdwg.mxu0
        %v720 = vld [vmem:[%s491 + $0x2] sm:$0xff]
        %v721 = vld [vmem:[%s491 + $0xa] sm:$0xff]
        %v722 = vld [vmem:[%s491 + $0x12] sm:$0xff]
        %v723 = vld [vmem:[%s491 + $0x1a] sm:$0xf]
        %s724 = scalar_lea.vmem %s1, 128
        %v725 = vld [vmem:[%s724] sm:$0xff]
        %v726 = vld [vmem:[%s724 + $0x8] sm:$0xff]
        %v727 = vld [vmem:[%s724 + $0x10] sm:$0xff]
        %v728 = vld [vmem:[%s724 + $0x18] sm:$0xff]
        %v729 = vld [vmem:[%s724 + $0x20] sm:$0xff]
        %v730 = vld [vmem:[%s724 + $0x28] sm:$0xff]
        %v731 = vld [vmem:[%s724 + $0x30] sm:$0xff]
        %v732 = vld [vmem:[%s724 + $0x38] sm:$0xff]
        %v734 = vsel %vm517, %v720, 0
        %v737 = vsel %vm517, %v721, 0
        %v740 = vsel %vm517, %v722, 0
        %v743 = vsel %vm517, %v723, 0
        %745 = vmatprep.subr.mxu0 0.0
        %746 = vmatpush1.msra.mxu0 0.0
        %747 = vmatprep.subr.mxu0 0.0
        %748 = vmatpush1.msra.mxu0 0.0
        %749 = vmatprep.subr.mxu0 0.0
        %750 = vmatpush1.msra.mxu0 0.0
        %751 = vmatprep.subr.mxu0 0.0
        %752 = vmatpush1.msra.mxu0 0.0
        %753 = vmatprep.subr.mxu0 0.0
        %754 = vmatpush1.msra.mxu0 0.0
        %755 = vmatprep.subr.mxu0 0.0
        %756 = vmatpush1.msra.mxu0 0.0
        %757 = vmatprep.subr.mxu0 0.0
        %758 = vmatpush1.msra.mxu0 0.0
        %759 = vmatprep.subr.mxu0 0.0
        %760 = vmatpush1.msra.mxu0 0.0
        %761 = vmatprep.subr.mxu0 0.0
        %762 = vmatpush1.msra.mxu0 0.0
        %763 = vmatprep.subr.mxu0 0.0
        %764 = vmatpush1.msra.mxu0 0.0
        %765 = vmatprep.subr.mxu0 0.0
        %766 = vmatpush1.msra.mxu0 0.0
        %767 = vmatprep.subr.mxu0 0.0
        %768 = vmatpush1.msra.mxu0 0.0
        %769 = vmatprep.subr.mxu0 %v732
        %770 = vmatpush1.msra.mxu0 %v731
        %771 = vmatprep.subr.mxu0 %v730
        %772 = vmatpush1.msra.mxu0 %v729
        %773 = vmatprep.subr.mxu0 %v728
        %774 = vmatpush1.msra.mxu0 %v727
        %775 = vmatprep.subr.mxu0 %v726
        %776 = vmatpush1.msra.mxu0 %v725
        %777 = vmatprep.subr.mxu0 0.0
        %778 = vmatpush2.msra.mxu0 0.0
        %779 = vmatprep.subr.mxu0 0.0
        %780 = vmatpush2.msra.mxu0 0.0
        %781 = vmatprep.subr.mxu0 0.0
        %782 = vmatpush2.msra.mxu0 0.0
        %783 = vmatprep.subr.mxu0 0.0
        %784 = vmatpush2.msra.mxu0 0.0
        %785 = vmatprep.subr.mxu0 0.0
        %786 = vmatpush2.msra.mxu0 0.0
        %787 = vmatprep.subr.mxu0 0.0
        %788 = vmatpush2.msra.mxu0 0.0
        %789 = vmatprep.subr.mxu0 0.0
        %790 = vmatpush2.msra.mxu0 0.0
        %791 = vmatprep.subr.mxu0 0.0
        %792 = vmatpush2.msra.mxu0 0.0
        %793 = vmatprep.subr.mxu0 0.0
        %794 = vmatpush2.msra.mxu0 0.0
        %795 = vmatprep.subr.mxu0 0.0
        %796 = vmatpush2.msra.mxu0 0.0
        %797 = vmatprep.subr.mxu0 0.0
        %798 = vmatpush2.msra.mxu0 0.0
        %799 = vmatprep.subr.mxu0 0.0
        %800 = vmatpush2.msra.mxu0 0.0
        %801 = vmatprep.subr.mxu0 0.0
        %802 = vmatpush2.msra.mxu0 0.0
        %803 = vmatprep.subr.mxu0 0.0
        %804 = vmatpush2.msra.mxu0 0.0
        %805 = vmatprep.subr.mxu0 0.0
        %806 = vmatpush2.msra.mxu0 0.0
        %807 = vmatprep.subr.mxu0 0.0
        %808 = vmatpush2.msra.mxu0 0.0
        %809 = vmatprep.mubr.f32.mxu0 0.0
        %810 = vmatmul.mubr.f32.gmra.mxu0 %v734
        %v811 = vpop.f32.mrf.mxu0
        %v812 = vadd.f32 0.0, %v811
        %v813 = vpop.f32.mrf.mxu0
        %v814 = vadd.f32 0.0, %v813
        %815 = vmatprep.mubr.f32.mxu0 0.0
        %816 = vmatmul.mubr.f32.gmra.mxu0 %v737
        %v817 = vpop.f32.mrf.mxu0
        %v818 = vadd.f32 0.0, %v817
        %v819 = vpop.f32.mrf.mxu0
        %v820 = vadd.f32 0.0, %v819
        %821 = vmatprep.mubr.f32.mxu0 0.0
        %822 = vmatmul.mubr.f32.gmra.mxu0 %v740
        %v823 = vpop.f32.mrf.mxu0
        %v824 = vadd.f32 0.0, %v823
        %v825 = vpop.f32.mrf.mxu0
        %v826 = vadd.f32 0.0, %v825
        %827 = vmatprep.mubr.f32.mxu0 0.0
        %828 = vmatmul.mubr.f32.gmra.mxu0 %v743
        %v829 = vpop.f32.mrf.mxu0
        %v830 = vadd.f32 0.0, %v829
        %v831 = vpop.f32.mrf.mxu0
        %v832 = vadd.f32 0.0, %v831
        %833 = vdwg.mxu0
        %v834 = vadd.f32 %v698, %v812
        %v835 = vadd.f32 %v700, %v814
        %v836 = vadd.f32 %v704, %v818
        %v837 = vadd.f32 %v706, %v820
        %v838 = vadd.f32 %v710, %v824
        %v839 = vadd.f32 %v712, %v826
        %v840 = vadd.f32 %v716, %v830
        %v841 = vadd.f32 %v718, %v832
        %v842 = vld [vmem:[%s491 + $0x3] sm:$0xff]
        %v843 = vld [vmem:[%s491 + $0xb] sm:$0xff]
        %v844 = vld [vmem:[%s491 + $0x13] sm:$0xff]
        %v845 = vld [vmem:[%s491 + $0x1b] sm:$0xf]
        %s846 = scalar_lea.vmem %s1, 192
        %v847 = vld [vmem:[%s846] sm:$0xff]
        %v848 = vld [vmem:[%s846 + $0x8] sm:$0xff]
        %v849 = vld [vmem:[%s846 + $0x10] sm:$0xff]
        %v850 = vld [vmem:[%s846 + $0x18] sm:$0xff]
        %v851 = vld [vmem:[%s846 + $0x20] sm:$0xff]
        %v852 = vld [vmem:[%s846 + $0x28] sm:$0xff]
        %v853 = vld [vmem:[%s846 + $0x30] sm:$0xff]
        %v854 = vld [vmem:[%s846 + $0x38] sm:$0xff]
        %v856 = vsel %vm517, %v842, 0
        %v859 = vsel %vm517, %v843, 0
        %v862 = vsel %vm517, %v844, 0
        %v865 = vsel %vm517, %v845, 0
        %867 = vmatprep.subr.mxu0 0.0
        %868 = vmatpush1.msra.mxu0 0.0
        %869 = vmatprep.subr.mxu0 0.0
        %870 = vmatpush1.msra.mxu0 0.0
        %871 = vmatprep.subr.mxu0 0.0
        %872 = vmatpush1.msra.mxu0 0.0
        %873 = vmatprep.subr.mxu0 0.0
        %874 = vmatpush1.msra.mxu0 0.0
        %875 = vmatprep.subr.mxu0 0.0
        %876 = vmatpush1.msra.mxu0 0.0
        %877 = vmatprep.subr.mxu0 0.0
        %878 = vmatpush1.msra.mxu0 0.0
        %879 = vmatprep.subr.mxu0 0.0
        %880 = vmatpush1.msra.mxu0 0.0
        %881 = vmatprep.subr.mxu0 0.0
        %882 = vmatpush1.msra.mxu0 0.0
        %883 = vmatprep.subr.mxu0 0.0
        %884 = vmatpush1.msra.mxu0 0.0
        %885 = vmatprep.subr.mxu0 0.0
        %886 = vmatpush1.msra.mxu0 0.0
        %887 = vmatprep.subr.mxu0 0.0
        %888 = vmatpush1.msra.mxu0 0.0
        %889 = vmatprep.subr.mxu0 0.0
        %890 = vmatpush1.msra.mxu0 0.0
        %891 = vmatprep.subr.mxu0 %v854
        %892 = vmatpush1.msra.mxu0 %v853
        %893 = vmatprep.subr.mxu0 %v852
        %894 = vmatpush1.msra.mxu0 %v851
        %895 = vmatprep.subr.mxu0 %v850
        %896 = vmatpush1.msra.mxu0 %v849
        %897 = vmatprep.subr.mxu0 %v848
        %898 = vmatpush1.msra.mxu0 %v847
        %899 = vmatprep.subr.mxu0 0.0
        %900 = vmatpush2.msra.mxu0 0.0
        %901 = vmatprep.subr.mxu0 0.0
        %902 = vmatpush2.msra.mxu0 0.0
        %903 = vmatprep.subr.mxu0 0.0
        %904 = vmatpush2.msra.mxu0 0.0
        %905 = vmatprep.subr.mxu0 0.0
        %906 = vmatpush2.msra.mxu0 0.0
        %907 = vmatprep.subr.mxu0 0.0
        %908 = vmatpush2.msra.mxu0 0.0
        %909 = vmatprep.subr.mxu0 0.0
        %910 = vmatpush2.msra.mxu0 0.0
        %911 = vmatprep.subr.mxu0 0.0
        %912 = vmatpush2.msra.mxu0 0.0
        %913 = vmatprep.subr.mxu0 0.0
        %914 = vmatpush2.msra.mxu0 0.0
        %915 = vmatprep.subr.mxu0 0.0
        %916 = vmatpush2.msra.mxu0 0.0
        %917 = vmatprep.subr.mxu0 0.0
        %918 = vmatpush2.msra.mxu0 0.0
        %919 = vmatprep.subr.mxu0 0.0
        %920 = vmatpush2.msra.mxu0 0.0
        %921 = vmatprep.subr.mxu0 0.0
        %922 = vmatpush2.msra.mxu0 0.0
        %923 = vmatprep.subr.mxu0 0.0
        %924 = vmatpush2.msra.mxu0 0.0
        %925 = vmatprep.subr.mxu0 0.0
        %926 = vmatpush2.msra.mxu0 0.0
        %927 = vmatprep.subr.mxu0 0.0
        %928 = vmatpush2.msra.mxu0 0.0
        %929 = vmatprep.subr.mxu0 0.0
        %930 = vmatpush2.msra.mxu0 0.0
        %931 = vmatprep.mubr.f32.mxu0 0.0
        %932 = vmatmul.mubr.f32.gmra.mxu0 %v856
        %v933 = vpop.f32.mrf.mxu0
        %v934 = vadd.f32 0.0, %v933
        %v935 = vpop.f32.mrf.mxu0
        %v936 = vadd.f32 0.0, %v935
        %937 = vmatprep.mubr.f32.mxu0 0.0
        %938 = vmatmul.mubr.f32.gmra.mxu0 %v859
        %v939 = vpop.f32.mrf.mxu0
        %v940 = vadd.f32 0.0, %v939
        %v941 = vpop.f32.mrf.mxu0
        %v942 = vadd.f32 0.0, %v941
        %943 = vmatprep.mubr.f32.mxu0 0.0
        %944 = vmatmul.mubr.f32.gmra.mxu0 %v862
        %v945 = vpop.f32.mrf.mxu0
        %v946 = vadd.f32 0.0, %v945
        %v947 = vpop.f32.mrf.mxu0
        %v948 = vadd.f32 0.0, %v947
        %949 = vmatprep.mubr.f32.mxu0 0.0
        %950 = vmatmul.mubr.f32.gmra.mxu0 %v865
        %v951 = vpop.f32.mrf.mxu0
        %v952 = vadd.f32 0.0, %v951
        %v953 = vpop.f32.mrf.mxu0
        %v954 = vadd.f32 0.0, %v953
        %955 = vdwg.mxu0
        %v956 = vadd.f32 %v834, %v934
        %v957 = vadd.f32 %v835, %v936
        %v958 = vadd.f32 %v836, %v940
        %v959 = vadd.f32 %v837, %v942
        %v960 = vadd.f32 %v838, %v946
        %v961 = vadd.f32 %v839, %v948
        %v962 = vadd.f32 %v840, %v952
        %v963 = vadd.f32 %v841, %v954
        %v964 = vld [vmem:[%s491 + $0x4] sm:$0xff]
        %v965 = vld [vmem:[%s491 + $0xc] sm:$0xff]
        %v966 = vld [vmem:[%s491 + $0x14] sm:$0xff]
        %v967 = vld [vmem:[%s491 + $0x1c] sm:$0xf]
        %s968 = scalar_lea.vmem %s1, 256
        %v969 = vld [vmem:[%s968] sm:$0xff]
        %v970 = vld [vmem:[%s968 + $0x8] sm:$0xff]
        %v971 = vld [vmem:[%s968 + $0x10] sm:$0xff]
        %v972 = vld [vmem:[%s968 + $0x18] sm:$0xff]
        %v973 = vld [vmem:[%s968 + $0x20] sm:$0xff]
        %v974 = vld [vmem:[%s968 + $0x28] sm:$0xff]
        %v975 = vld [vmem:[%s968 + $0x30] sm:$0xff]
        %v976 = vld [vmem:[%s968 + $0x38] sm:$0xff]
        %v978 = vsel %vm517, %v964, 0
        %v981 = vsel %vm517, %v965, 0
        %v984 = vsel %vm517, %v966, 0
        %v987 = vsel %vm517, %v967, 0
        %989 = vmatprep.subr.mxu0 0.0
        %990 = vmatpush1.msra.mxu0 0.0
        %991 = vmatprep.subr.mxu0 0.0
        %992 = vmatpush1.msra.mxu0 0.0
        %993 = vmatprep.subr.mxu0 0.0
        %994 = vmatpush1.msra.mxu0 0.0
        %995 = vmatprep.subr.mxu0 0.0
        %996 = vmatpush1.msra.mxu0 0.0
        %997 = vmatprep.subr.mxu0 0.0
        %998 = vmatpush1.msra.mxu0 0.0
        %999 = vmatprep.subr.mxu0 0.0
        %1000 = vmatpush1.msra.mxu0 0.0
        %1001 = vmatprep.subr.mxu0 0.0
        %1002 = vmatpush1.msra.mxu0 0.0
        %1003 = vmatprep.subr.mxu0 0.0
        %1004 = vmatpush1.msra.mxu0 0.0
        %1005 = vmatprep.subr.mxu0 0.0
        %1006 = vmatpush1.msra.mxu0 0.0
        %1007 = vmatprep.subr.mxu0 0.0
        %1008 = vmatpush1.msra.mxu0 0.0
        %1009 = vmatprep.subr.mxu0 0.0
        %1010 = vmatpush1.msra.mxu0 0.0
        %1011 = vmatprep.subr.mxu0 0.0
        %1012 = vmatpush1.msra.mxu0 0.0
        %1013 = vmatprep.subr.mxu0 %v976
        %1014 = vmatpush1.msra.mxu0 %v975
        %1015 = vmatprep.subr.mxu0 %v974
        %1016 = vmatpush1.msra.mxu0 %v973
        %1017 = vmatprep.subr.mxu0 %v972
        %1018 = vmatpush1.msra.mxu0 %v971
        %1019 = vmatprep.subr.mxu0 %v970
        %1020 = vmatpush1.msra.mxu0 %v969
        %1021 = vmatprep.subr.mxu0 0.0
        %1022 = vmatpush2.msra.mxu0 0.0
        %1023 = vmatprep.subr.mxu0 0.0
        %1024 = vmatpush2.msra.mxu0 0.0
        %1025 = vmatprep.subr.mxu0 0.0
        %1026 = vmatpush2.msra.mxu0 0.0
        %1027 = vmatprep.subr.mxu0 0.0
        %1028 = vmatpush2.msra.mxu0 0.0
        %1029 = vmatprep.subr.mxu0 0.0
        %1030 = vmatpush2.msra.mxu0 0.0
        %1031 = vmatprep.subr.mxu0 0.0
        %1032 = vmatpush2.msra.mxu0 0.0
        %1033 = vmatprep.subr.mxu0 0.0
        %1034 = vmatpush2.msra.mxu0 0.0
        %1035 = vmatprep.subr.mxu0 0.0
        %1036 = vmatpush2.msra.mxu0 0.0
        %1037 = vmatprep.subr.mxu0 0.0
        %1038 = vmatpush2.msra.mxu0 0.0
        %1039 = vmatprep.subr.mxu0 0.0
        %1040 = vmatpush2.msra.mxu0 0.0
        %1041 = vmatprep.subr.mxu0 0.0
        %1042 = vmatpush2.msra.mxu0 0.0
        %1043 = vmatprep.subr.mxu0 0.0
        %1044 = vmatpush2.msra.mxu0 0.0
        %1045 = vmatprep.subr.mxu0 0.0
        %1046 = vmatpush2.msra.mxu0 0.0
        %1047 = vmatprep.subr.mxu0 0.0
        %1048 = vmatpush2.msra.mxu0 0.0
        %1049 = vmatprep.subr.mxu0 0.0
        %1050 = vmatpush2.msra.mxu0 0.0
        %1051 = vmatprep.subr.mxu0 0.0
        %1052 = vmatpush2.msra.mxu0 0.0
        %1053 = vmatprep.mubr.f32.mxu0 0.0
        %1054 = vmatmul.mubr.f32.gmra.mxu0 %v978
        %v1055 = vpop.f32.mrf.mxu0
        %v1056 = vadd.f32 0.0, %v1055
        %v1057 = vpop.f32.mrf.mxu0
        %v1058 = vadd.f32 0.0, %v1057
        %1059 = vmatprep.mubr.f32.mxu0 0.0
        %1060 = vmatmul.mubr.f32.gmra.mxu0 %v981
        %v1061 = vpop.f32.mrf.mxu0
        %v1062 = vadd.f32 0.0, %v1061
        %v1063 = vpop.f32.mrf.mxu0
        %v1064 = vadd.f32 0.0, %v1063
        %1065 = vmatprep.mubr.f32.mxu0 0.0
        %1066 = vmatmul.mubr.f32.gmra.mxu0 %v984
        %v1067 = vpop.f32.mrf.mxu0
        %v1068 = vadd.f32 0.0, %v1067
        %v1069 = vpop.f32.mrf.mxu0
        %v1070 = vadd.f32 0.0, %v1069
        %1071 = vmatprep.mubr.f32.mxu0 0.0
        %1072 = vmatmul.mubr.f32.gmra.mxu0 %v987
        %v1073 = vpop.f32.mrf.mxu0
        %v1074 = vadd.f32 0.0, %v1073
        %v1075 = vpop.f32.mrf.mxu0
        %v1076 = vadd.f32 0.0, %v1075
        %1077 = vdwg.mxu0
        %v1078 = vadd.f32 %v956, %v1056
        %v1079 = vadd.f32 %v957, %v1058
        %v1080 = vadd.f32 %v958, %v1062
        %v1081 = vadd.f32 %v959, %v1064
        %v1082 = vadd.f32 %v960, %v1068
        %v1083 = vadd.f32 %v961, %v1070
        %v1084 = vadd.f32 %v962, %v1074
        %v1085 = vadd.f32 %v963, %v1076
        %v1086 = vld [vmem:[%s2] sm:$0x3]
        %v1088 = vlaneseq
        %v1089 = vshrl.u32 %v1088, 7
        %v1090 = vsub.s32 0, %v1089
        %v1091 = vrot.slane %v1086, %v1090
        %v1092 = vlaneseq
        %v1093 = vshrl.u32 %v1092, 7
        %v1094 = vsub.s32 1, %v1093
        %v1095 = vrot.slane %v1086, %v1094
        %v1098 = vadd.f32 %v1078, %v1091
        %v1099 = vadd.f32 %v1079, %v1095
        %v1100 = vadd.f32 %v1080, %v1091
        %v1101 = vadd.f32 %v1081, %v1095
        %v1102 = vadd.f32 %v1082, %v1091
        %v1103 = vadd.f32 %v1083, %v1095
        %v1104 = vadd.f32 %v1084, %v1091
        %v1105 = vadd.f32 %v1085, %v1095
        %v1106 = vmax.f32 %v1098, 0.0
        %v1107 = vmax.f32 %v1099, 0.0
        %v1108 = vmax.f32 %v1100, 0.0
        %v1109 = vmax.f32 %v1101, 0.0
        %v1110 = vmax.f32 %v1102, 0.0
        %v1111 = vmax.f32 %v1103, 0.0
        %v1112 = vmax.f32 %v1104, 0.0
        %v1113 = vmax.f32 %v1105, 0.0
        %v1114 = vld [vmem:[%s3] sm:$0xff]
        %v1115 = vld [vmem:[%s3 + $0x8] sm:$0x3f]
        %vm1116 = vcmask 228352
        %v1118 = vsel %vm1116, %v1114, 0
        %v1121 = vsel %vm1116, %v1115, 0
        %vm1123 = vcmask 1043456
        %v1125 = vsel %vm1123, %v1112, 0
        %v1128 = vsel %vm1123, %v1113, 0
        %1130 = vmatprep.subr.mxu0 0.0
        %1131 = vmatpush1.msra.mxu0 0.0
        %1132 = vmatprep.subr.mxu0 0.0
        %1133 = vmatpush1.msra.mxu0 0.0
        %1134 = vmatprep.subr.mxu0 0.0
        %1135 = vmatpush1.msra.mxu0 0.0
        %1136 = vmatprep.subr.mxu0 0.0
        %1137 = vmatpush1.msra.mxu0 0.0
        %1138 = vmatprep.subr.mxu0 0.0
        %1139 = vmatpush1.msra.mxu0 0.0
        %1140 = vmatprep.subr.mxu0 0.0
        %1141 = vmatpush1.msra.mxu0 0.0
        %1142 = vmatprep.subr.mxu0 0.0
        %1143 = vmatpush1.msra.mxu0 0.0
        %1144 = vmatprep.subr.mxu0 0.0
        %1145 = vmatpush1.msra.mxu0 0.0
        %1146 = vmatprep.subr.mxu0 0.0
        %1147 = vmatpush1.msra.mxu0 0.0
        %1148 = vmatprep.subr.mxu0 0.0
        %1149 = vmatpush1.msra.mxu0 0.0
        %1150 = vmatprep.subr.mxu0 0.0
        %1151 = vmatpush1.msra.mxu0 0.0
        %1152 = vmatprep.subr.mxu0 0.0
        %1153 = vmatpush1.msra.mxu0 0.0
        %1154 = vmatprep.subr.mxu0 %v1128
        %1155 = vmatpush1.msra.mxu0 %v1125
        %1156 = vmatprep.subr.mxu0 %v1111
        %1157 = vmatpush1.msra.mxu0 %v1110
        %1158 = vmatprep.subr.mxu0 %v1109
        %1159 = vmatpush1.msra.mxu0 %v1108
        %1160 = vmatprep.subr.mxu0 %v1107
        %1161 = vmatpush1.msra.mxu0 %v1106
        %1162 = vmatprep.subr.mxu0 0.0
        %1163 = vmatpush2.msra.mxu0 0.0
        %1164 = vmatprep.subr.mxu0 0.0
        %1165 = vmatpush2.msra.mxu0 0.0
        %1166 = vmatprep.subr.mxu0 0.0
        %1167 = vmatpush2.msra.mxu0 0.0
        %1168 = vmatprep.subr.mxu0 0.0
        %1169 = vmatpush2.msra.mxu0 0.0
        %1170 = vmatprep.subr.mxu0 0.0
        %1171 = vmatpush2.msra.mxu0 0.0
        %1172 = vmatprep.subr.mxu0 0.0
        %1173 = vmatpush2.msra.mxu0 0.0
        %1174 = vmatprep.subr.mxu0 0.0
        %1175 = vmatpush2.msra.mxu0 0.0
        %1176 = vmatprep.subr.mxu0 0.0
        %1177 = vmatpush2.msra.mxu0 0.0
        %1178 = vmatprep.subr.mxu0 0.0
        %1179 = vmatpush2.msra.mxu0 0.0
        %1180 = vmatprep.subr.mxu0 0.0
        %1181 = vmatpush2.msra.mxu0 0.0
        %1182 = vmatprep.subr.mxu0 0.0
        %1183 = vmatpush2.msra.mxu0 0.0
        %1184 = vmatprep.subr.mxu0 0.0
        %1185 = vmatpush2.msra.mxu0 0.0
        %1186 = vmatprep.subr.mxu0 0.0
        %1187 = vmatpush2.msra.mxu0 0.0
        %1188 = vmatprep.subr.mxu0 0.0
        %1189 = vmatpush2.msra.mxu0 0.0
        %1190 = vmatprep.subr.mxu0 0.0
        %1191 = vmatpush2.msra.mxu0 0.0
        %1192 = vmatprep.subr.mxu0 0.0
        %1193 = vmatpush2.msra.mxu0 0.0
        %1194 = vmatprep.mubr.f32.mxu0 0.0
        %1195 = vmatmul.mubr.f32.gmra.mxu0 %v1118
        %v1196 = vpop.f32.mrf.mxu0
        %v1197 = vadd.f32 0.0, %v1196
        %v1198 = vpop.f32.mrf.mxu0
        %v1199 = vadd.f32 0.0, %v1198
        %1200 = vmatprep.mubr.f32.mxu0 0.0
        %1201 = vmatmul.mubr.f32.gmra.mxu0 %v1121
        %v1202 = vpop.f32.mrf.mxu0
        %v1203 = vadd.f32 0.0, %v1202
        %v1204 = vpop.f32.mrf.mxu0
        %v1205 = vadd.f32 0.0, %v1204
        %1206 = vdwg.mxu0
        %v1207 = vld [vmem:[%s4] sm:$0xff]
        %v1208 = vld [vmem:[%s4 + $0x8] sm:$0xff]
        %v1209 = vld [vmem:[%s4 + $0x10] sm:$0xff]
        %v1210 = vld [vmem:[%s4 + $0x18] sm:$0xff]
        %v1211 = vld [vmem:[%s4 + $0x20] sm:$0xff]
        %v1212 = vld [vmem:[%s4 + $0x28] sm:$0xff]
        %v1213 = vld [vmem:[%s4 + $0x30] sm:$0xff]
        %v1214 = vld [vmem:[%s4 + $0x38] sm:$0xff]
        %v1215 = vld [vmem:[%s4 + $0x40] sm:$0xff]
        %v1216 = vld [vmem:[%s4 + $0x48] sm:$0xff]
        %v1217 = vld [vmem:[%s4 + $0x50] sm:$0xff]
        %v1218 = vld [vmem:[%s4 + $0x58] sm:$0xff]
        %v1219 = vld [vmem:[%s4 + $0x60] sm:$0xff]
        %v1220 = vld [vmem:[%s4 + $0x68] sm:$0xff]
        %v1221 = vld [vmem:[%s4 + $0x70] sm:$0xff]
        %v1222 = vld [vmem:[%s4 + $0x78] sm:$0xff]
        %v1223 = vld [vmem:[%s4 + $0x80] sm:$0xff]
        %v1224 = vld [vmem:[%s4 + $0x88] sm:$0xff]
        %v1225 = vld [vmem:[%s4 + $0x90] sm:$0xff]
        %v1226 = vld [vmem:[%s4 + $0x98] sm:$0xff]
        %v1227 = vld [vmem:[%s4 + $0xa0] sm:$0xff]
        %vm1228 = vcmask 326656
        %v1230 = vsel %vm1228, %v1199, 0
        %v1233 = vsel %vm1228, %v1205, 0
        %1235 = vmatprep.subr.mxu0 0.0
        %1236 = vmatpush1.msra.mxu0 %v1222
        %1237 = vmatprep.subr.mxu0 0.0
        %1238 = vmatpush1.msra.mxu0 %v1221
        %1239 = vmatprep.subr.mxu0 0.0
        %1240 = vmatpush1.msra.mxu0 %v1220
        %1241 = vmatprep.subr.mxu0 0.0
        %1242 = vmatpush1.msra.mxu0 %v1219
        %1243 = vmatprep.subr.mxu0 0.0
        %1244 = vmatpush1.msra.mxu0 %v1218
        %1245 = vmatprep.subr.mxu0 0.0
        %1246 = vmatpush1.msra.mxu0 %v1217
        %1247 = vmatprep.subr.mxu0 0.0
        %1248 = vmatpush1.msra.mxu0 %v1216
        %1249 = vmatprep.subr.mxu0 0.0
        %1250 = vmatpush1.msra.mxu0 %v1215
        %1251 = vmatprep.subr.mxu0 0.0
        %1252 = vmatpush1.msra.mxu0 %v1214
        %1253 = vmatprep.subr.mxu0 0.0
        %1254 = vmatpush1.msra.mxu0 %v1213
        %1255 = vmatprep.subr.mxu0 0.0
        %1256 = vmatpush1.msra.mxu0 %v1212
        %1257 = vmatprep.subr.mxu0 0.0
        %1258 = vmatpush1.msra.mxu0 %v1211
        %1259 = vmatprep.subr.mxu0 0.0
        %1260 = vmatpush1.msra.mxu0 %v1210
        %1261 = vmatprep.subr.mxu0 0.0
        %1262 = vmatpush1.msra.mxu0 %v1209
        %1263 = vmatprep.subr.mxu0 0.0
        %1264 = vmatpush1.msra.mxu0 %v1208
        %1265 = vmatprep.subr.mxu0 0.0
        %1266 = vmatpush1.msra.mxu0 %v1207
        %1267 = vmatprep.subr.mxu0 0.0
        %1268 = vmatpush2.msra.mxu0 0.0
        %1269 = vmatprep.subr.mxu0 0.0
        %1270 = vmatpush2.msra.mxu0 0.0
        %1271 = vmatprep.subr.mxu0 0.0
        %1272 = vmatpush2.msra.mxu0 0.0
        %1273 = vmatprep.subr.mxu0 0.0
        %1274 = vmatpush2.msra.mxu0 0.0
        %1275 = vmatprep.subr.mxu0 0.0
        %1276 = vmatpush2.msra.mxu0 0.0
        %1277 = vmatprep.subr.mxu0 0.0
        %1278 = vmatpush2.msra.mxu0 0.0
        %1279 = vmatprep.subr.mxu0 0.0
        %1280 = vmatpush2.msra.mxu0 0.0
        %1281 = vmatprep.subr.mxu0 0.0
        %1282 = vmatpush2.msra.mxu0 0.0
        %1283 = vmatprep.subr.mxu0 0.0
        %1284 = vmatpush2.msra.mxu0 0.0
        %1285 = vmatprep.subr.mxu0 0.0
        %1286 = vmatpush2.msra.mxu0 0.0
        %1287 = vmatprep.subr.mxu0 0.0
        %1288 = vmatpush2.msra.mxu0 0.0
        %1289 = vmatprep.subr.mxu0 0.0
        %1290 = vmatpush2.msra.mxu0 %v1227
        %1291 = vmatprep.subr.mxu0 0.0
        %1292 = vmatpush2.msra.mxu0 %v1226
        %1293 = vmatprep.subr.mxu0 0.0
        %1294 = vmatpush2.msra.mxu0 %v1225
        %1295 = vmatprep.subr.mxu0 0.0
        %1296 = vmatpush2.msra.mxu0 %v1224
        %1297 = vmatprep.subr.mxu0 0.0
        %1298 = vmatpush2.msra.mxu0 %v1223
        %1299 = vmatprep.mubr.f32.mxu0 %v1230
        %1300 = vmatmul.mubr.f32.gmra.mxu0 %v1197
        %v1301 = vpop.f32.mrf.mxu0
        %v1302 = vadd.f32 0.0, %v1301
        %v1303 = vpop.f32.mrf.mxu0
        %1304 = vmatprep.mubr.f32.mxu0 %v1233
        %1305 = vmatmul.mubr.f32.gmra.mxu0 %v1203
        %v1306 = vpop.f32.mrf.mxu0
        %v1307 = vadd.f32 0.0, %v1306
        %v1308 = vpop.f32.mrf.mxu0
        %1309 = vdwg.mxu0
        %vm1310 = vcmask 687104
        %1311 = vst.msk [vmem:[#allocation2] sm:$0xff] %vm1310, %v1302
        %vm1312 = vcmask 685056
        %1313 = vst.msk [vmem:[#allocation2 + $0x8] sm:$0x3f] %vm1312, %v1307
        %v1314 = vld [vmem:[#allocation2] sm:$0xff]
        %v1315 = vld [vmem:[#allocation2 + $0x8] sm:$0x3]
        %v1316 = vld [vmem:[%s5] sm:$0xff]
        %v1317 = vld [vmem:[%s5 + $0x8] sm:$0xff]
        %v1318 = vld [vmem:[%s5 + $0x10] sm:$0xff]
        %v1319 = vld [vmem:[%s5 + $0x18] sm:$0xff]
        %v1320 = vld [vmem:[%s5 + $0x20] sm:$0xff]
        %v1321 = vld [vmem:[%s5 + $0x28] sm:$0xff]
        %v1322 = vld [vmem:[%s5 + $0x30] sm:$0xff]
        %v1323 = vld [vmem:[%s5 + $0x38] sm:$0xff]
        %v1324 = vld [vmem:[%s5 + $0x40] sm:$0xff]
        %v1325 = vld [vmem:[%s5 + $0x48] sm:$0xff]
        %v1326 = vld [vmem:[%s5 + $0x50] sm:$0xff]
        %v1327 = vld [vmem:[%s5 + $0x58] sm:$0xff]
        %v1328 = vld [vmem:[%s5 + $0x60] sm:$0xff]
        %v1329 = vld [vmem:[%s5 + $0x68] sm:$0xff]
        %v1330 = vld [vmem:[%s5 + $0x70] sm:$0xff]
        %v1331 = vld [vmem:[%s5 + $0x78] sm:$0xff]
        %v1332 = vld [vmem:[%s5 + $0x80] sm:$0xff]
        %v1333 = vld [vmem:[%s5 + $0x88] sm:$0xff]
        %v1334 = vld [vmem:[%s5 + $0x90] sm:$0xff]
        %v1335 = vld [vmem:[%s5 + $0x98] sm:$0xff]
        %v1336 = vld [vmem:[%s5 + $0xa0] sm:$0xf]
        %v1337 = vld [vmem:[%s5 + $0xa8] sm:$0xf]
        %v1338 = vld [vmem:[#allocation2 + $0x1] sm:$0xff]
        %v1339 = vld [vmem:[#allocation2 + $0x9] sm:$0x3]
        %s1340 = scalar_lea.vmem %s5, 176
        %v1341 = vld [vmem:[%s1340] sm:$0xff]
        %v1342 = vld [vmem:[%s1340 + $0x8] sm:$0xff]
        %v1343 = vld [vmem:[%s1340 + $0x10] sm:$0xff]
        %v1344 = vld [vmem:[%s1340 + $0x18] sm:$0xff]
        %v1345 = vld [vmem:[%s1340 + $0x20] sm:$0xff]
        %v1346 = vld [vmem:[%s1340 + $0x28] sm:$0xff]
        %v1347 = vld [vmem:[%s1340 + $0x30] sm:$0xff]
        %v1348 = vld [vmem:[%s1340 + $0x38] sm:$0xff]
        %v1349 = vld [vmem:[%s1340 + $0x40] sm:$0xff]
        %v1350 = vld [vmem:[%s1340 + $0x48] sm:$0xff]
        %v1351 = vld [vmem:[%s1340 + $0x50] sm:$0xff]
        %v1352 = vld [vmem:[%s1340 + $0x58] sm:$0xff]
        %v1353 = vld [vmem:[%s1340 + $0x60] sm:$0xff]
        %v1354 = vld [vmem:[%s1340 + $0x68] sm:$0xff]
        %v1355 = vld [vmem:[%s1340 + $0x70] sm:$0xff]
        %v1356 = vld [vmem:[%s1340 + $0x78] sm:$0xff]
        %v1357 = vld [vmem:[%s1340 + $0x80] sm:$0xff]
        %v1358 = vld [vmem:[%s1340 + $0x88] sm:$0xff]
        %v1359 = vld [vmem:[%s1340 + $0x90] sm:$0xff]
        %v1360 = vld [vmem:[%s1340 + $0x98] sm:$0xff]
        %v1361 = vld [vmem:[%s1340 + $0xa0] sm:$0xf]
        %v1362 = vld [vmem:[%s1340 + $0xa8] sm:$0xf]
        %v1364 = vsel %vm1310, %v1338, 0
        %v1367 = vsel %vm1310, %v1339, 0
        %v1370 = vsel %vm1123, %v1361, 0
        %v1373 = vsel %vm1123, %v1362, 0
        %1375 = vmatprep.subr.mxu0 0.0
        %1376 = vmatpush1.msra.mxu0 0.0
        %1377 = vmatprep.subr.mxu0 0.0
        %1378 = vmatpush1.msra.mxu0 0.0
        %1379 = vmatprep.subr.mxu0 0.0
        %1380 = vmatpush1.msra.mxu0 0.0
        %1381 = vmatprep.subr.mxu0 0.0
        %1382 = vmatpush1.msra.mxu0 0.0
        %1383 = vmatprep.subr.mxu0 0.0
        %1384 = vmatpush1.msra.mxu0 0.0
        %1385 = vmatprep.subr.mxu0 %v1373
        %1386 = vmatpush1.msra.mxu0 %v1370
        %1387 = vmatprep.subr.mxu0 %v1360
        %1388 = vmatpush1.msra.mxu0 %v1359
        %1389 = vmatprep.subr.mxu0 %v1358
        %1390 = vmatpush1.msra.mxu0 %v1357
        %1391 = vmatprep.subr.mxu0 %v1356
        %1392 = vmatpush1.msra.mxu0 %v1355
        %1393 = vmatprep.subr.mxu0 %v1354
        %1394 = vmatpush1.msra.mxu0 %v1353
        %1395 = vmatprep.subr.mxu0 %v1352
        %1396 = vmatpush1.msra.mxu0 %v1351
        %1397 = vmatprep.subr.mxu0 %v1350
        %1398 = vmatpush1.msra.mxu0 %v1349
        %1399 = vmatprep.subr.mxu0 %v1348
        %1400 = vmatpush1.msra.mxu0 %v1347
        %1401 = vmatprep.subr.mxu0 %v1346
        %1402 = vmatpush1.msra.mxu0 %v1345
        %1403 = vmatprep.subr.mxu0 %v1344
        %1404 = vmatpush1.msra.mxu0 %v1343
        %1405 = vmatprep.subr.mxu0 %v1342
        %1406 = vmatpush1.msra.mxu0 %v1341
        %1407 = vmatprep.subr.mxu0 0.0
        %1408 = vmatpush2.msra.mxu0 0.0
        %1409 = vmatprep.subr.mxu0 0.0
        %1410 = vmatpush2.msra.mxu0 0.0
        %1411 = vmatprep.subr.mxu0 0.0
        %1412 = vmatpush2.msra.mxu0 0.0
        %1413 = vmatprep.subr.mxu0 0.0
        %1414 = vmatpush2.msra.mxu0 0.0
        %1415 = vmatprep.subr.mxu0 0.0
        %1416 = vmatpush2.msra.mxu0 0.0
        %1417 = vmatprep.subr.mxu0 0.0
        %1418 = vmatpush2.msra.mxu0 0.0
        %1419 = vmatprep.subr.mxu0 0.0
        %1420 = vmatpush2.msra.mxu0 0.0
        %1421 = vmatprep.subr.mxu0 0.0
        %1422 = vmatpush2.msra.mxu0 0.0
        %1423 = vmatprep.subr.mxu0 0.0
        %1424 = vmatpush2.msra.mxu0 0.0
        %1425 = vmatprep.subr.mxu0 0.0
        %1426 = vmatpush2.msra.mxu0 0.0
        %1427 = vmatprep.subr.mxu0 0.0
        %1428 = vmatpush2.msra.mxu0 0.0
        %1429 = vmatprep.subr.mxu0 0.0
        %1430 = vmatpush2.msra.mxu0 0.0
        %1431 = vmatprep.subr.mxu0 0.0
        %1432 = vmatpush2.msra.mxu0 0.0
        %1433 = vmatprep.subr.mxu0 0.0
        %1434 = vmatpush2.msra.mxu0 0.0
        %1435 = vmatprep.subr.mxu0 0.0
        %1436 = vmatpush2.msra.mxu0 0.0
        %1437 = vmatprep.subr.mxu0 0.0
        %1438 = vmatpush2.msra.mxu0 0.0
        %1439 = vmatprep.mubr.f32.mxu0 0.0
        %1440 = vmatmul.mubr.f32.gmra.mxu0 %v1364
        %v1441 = vpop.f32.mrf.mxu0
        %v1442 = vadd.f32 0.0, %v1441
        %v1443 = vpop.f32.mrf.mxu0
        %v1444 = vadd.f32 0.0, %v1443
        %1445 = vmatprep.mubr.f32.mxu0 0.0
        %1446 = vmatmul.mubr.f32.gmra.mxu0 %v1367
        %v1447 = vpop.f32.mrf.mxu0
        %v1448 = vadd.f32 0.0, %v1447
        %v1449 = vpop.f32.mrf.mxu0
        %v1450 = vadd.f32 0.0, %v1449
        %1451 = vdwg.mxu0
        %v1453 = vsel %vm1310, %v1314, 0
        %v1456 = vsel %vm1310, %v1315, 0
        %v1459 = vsel %vm1123, %v1336, 0
        %v1462 = vsel %vm1123, %v1337, 0
        %1464 = vmatprep.subr.mxu0 0.0
        %1465 = vmatpush1.msra.mxu0 0.0
        %1466 = vmatprep.subr.mxu0 0.0
        %1467 = vmatpush1.msra.mxu0 0.0
        %1468 = vmatprep.subr.mxu0 0.0
        %1469 = vmatpush1.msra.mxu0 0.0
        %1470 = vmatprep.subr.mxu0 0.0
        %1471 = vmatpush1.msra.mxu0 0.0
        %1472 = vmatprep.subr.mxu0 0.0
        %1473 = vmatpush1.msra.mxu0 0.0
        %1474 = vmatprep.subr.mxu0 %v1462
        %1475 = vmatpush1.msra.mxu0 %v1459
        %1476 = vmatprep.subr.mxu0 %v1335
        %1477 = vmatpush1.msra.mxu0 %v1334
        %1478 = vmatprep.subr.mxu0 %v1333
        %1479 = vmatpush1.msra.mxu0 %v1332
        %1480 = vmatprep.subr.mxu0 %v1331
        %1481 = vmatpush1.msra.mxu0 %v1330
        %1482 = vmatprep.subr.mxu0 %v1329
        %1483 = vmatpush1.msra.mxu0 %v1328
        %1484 = vmatprep.subr.mxu0 %v1327
        %1485 = vmatpush1.msra.mxu0 %v1326
        %1486 = vmatprep.subr.mxu0 %v1325
        %1487 = vmatpush1.msra.mxu0 %v1324
        %1488 = vmatprep.subr.mxu0 %v1323
        %1489 = vmatpush1.msra.mxu0 %v1322
        %1490 = vmatprep.subr.mxu0 %v1321
        %1491 = vmatpush1.msra.mxu0 %v1320
        %1492 = vmatprep.subr.mxu0 %v1319
        %1493 = vmatpush1.msra.mxu0 %v1318
        %1494 = vmatprep.subr.mxu0 %v1317
        %1495 = vmatpush1.msra.mxu0 %v1316
        %1496 = vmatprep.subr.mxu0 0.0
        %1497 = vmatpush2.msra.mxu0 0.0
        %1498 = vmatprep.subr.mxu0 0.0
        %1499 = vmatpush2.msra.mxu0 0.0
        %1500 = vmatprep.subr.mxu0 0.0
        %1501 = vmatpush2.msra.mxu0 0.0
        %1502 = vmatprep.subr.mxu0 0.0
        %1503 = vmatpush2.msra.mxu0 0.0
        %1504 = vmatprep.subr.mxu0 0.0
        %1505 = vmatpush2.msra.mxu0 0.0
        %1506 = vmatprep.subr.mxu0 0.0
        %1507 = vmatpush2.msra.mxu0 0.0
        %1508 = vmatprep.subr.mxu0 0.0
        %1509 = vmatpush2.msra.mxu0 0.0
        %1510 = vmatprep.subr.mxu0 0.0
        %1511 = vmatpush2.msra.mxu0 0.0
        %1512 = vmatprep.subr.mxu0 0.0
        %1513 = vmatpush2.msra.mxu0 0.0
        %1514 = vmatprep.subr.mxu0 0.0
        %1515 = vmatpush2.msra.mxu0 0.0
        %1516 = vmatprep.subr.mxu0 0.0
        %1517 = vmatpush2.msra.mxu0 0.0
        %1518 = vmatprep.subr.mxu0 0.0
        %1519 = vmatpush2.msra.mxu0 0.0
        %1520 = vmatprep.subr.mxu0 0.0
        %1521 = vmatpush2.msra.mxu0 0.0
        %1522 = vmatprep.subr.mxu0 0.0
        %1523 = vmatpush2.msra.mxu0 0.0
        %1524 = vmatprep.subr.mxu0 0.0
        %1525 = vmatpush2.msra.mxu0 0.0
        %1526 = vmatprep.subr.mxu0 0.0
        %1527 = vmatpush2.msra.mxu0 0.0
        %1528 = vmatprep.mubr.f32.mxu0 0.0
        %1529 = vmatmul.mubr.f32.gmra.mxu0 %v1453
        %v1530 = vpop.f32.mrf.mxu0
        %v1531 = vadd.f32 %v1442, %v1530
        %v1532 = vpop.f32.mrf.mxu0
        %v1533 = vadd.f32 %v1444, %v1532
        %1534 = vmatprep.mubr.f32.mxu0 0.0
        %1535 = vmatmul.mubr.f32.gmra.mxu0 %v1456
        %v1536 = vpop.f32.mrf.mxu0
        %v1537 = vadd.f32 %v1448, %v1536
        %v1538 = vpop.f32.mrf.mxu0
        %v1539 = vadd.f32 %v1450, %v1538
        %1540 = vdwg.mxu0
        %v1541 = vld [vmem:[#allocation2 + $0x2] sm:$0xff]
        %v1542 = vld [vmem:[#allocation2 + $0xa] sm:$0x3]
        %s1543 = scalar_lea.vmem %s5, 352
        %v1544 = vld [vmem:[%s1543] sm:$0xff]
        %v1545 = vld [vmem:[%s1543 + $0x8] sm:$0xff]
        %v1546 = vld [vmem:[%s1543 + $0x10] sm:$0xff]
        %v1547 = vld [vmem:[%s1543 + $0x18] sm:$0xff]
        %v1548 = vld [vmem:[%s1543 + $0x20] sm:$0xff]
        %v1549 = vld [vmem:[%s1543 + $0x28] sm:$0xff]
        %v1550 = vld [vmem:[%s1543 + $0x30] sm:$0xff]
        %v1551 = vld [vmem:[%s1543 + $0x38] sm:$0xff]
        %v1552 = vld [vmem:[%s1543 + $0x40] sm:$0xff]
        %v1553 = vld [vmem:[%s1543 + $0x48] sm:$0xff]
        %v1554 = vld [vmem:[%s1543 + $0x50] sm:$0xff]
        %v1555 = vld [vmem:[%s1543 + $0x58] sm:$0xff]
        %v1556 = vld [vmem:[%s1543 + $0x60] sm:$0xff]
        %v1557 = vld [vmem:[%s1543 + $0x68] sm:$0xff]
        %v1558 = vld [vmem:[%s1543 + $0x70] sm:$0xff]
        %v1559 = vld [vmem:[%s1543 + $0x78] sm:$0xff]
        %v1560 = vld [vmem:[%s1543 + $0x80] sm:$0xff]
        %v1561 = vld [vmem:[%s1543 + $0x88] sm:$0xff]
        %v1562 = vld [vmem:[%s1543 + $0x90] sm:$0xff]
        %v1563 = vld [vmem:[%s1543 + $0x98] sm:$0xff]
        %v1564 = vld [vmem:[%s1543 + $0xa0] sm:$0xf]
        %v1565 = vld [vmem:[%s1543 + $0xa8] sm:$0xf]
        %v1567 = vsel %vm1310, %v1541, 0
        %v1570 = vsel %vm1310, %v1542, 0
        %v1573 = vsel %vm1123, %v1564, 0
        %v1576 = vsel %vm1123, %v1565, 0
        %1578 = vmatprep.subr.mxu0 0.0
        %1579 = vmatpush1.msra.mxu0 0.0
        %1580 = vmatprep.subr.mxu0 0.0
        %1581 = vmatpush1.msra.mxu0 0.0
        %1582 = vmatprep.subr.mxu0 0.0
        %1583 = vmatpush1.msra.mxu0 0.0
        %1584 = vmatprep.subr.mxu0 0.0
        %1585 = vmatpush1.msra.mxu0 0.0
        %1586 = vmatprep.subr.mxu0 0.0
        %1587 = vmatpush1.msra.mxu0 0.0
        %1588 = vmatprep.subr.mxu0 %v1576
        %1589 = vmatpush1.msra.mxu0 %v1573
        %1590 = vmatprep.subr.mxu0 %v1563
        %1591 = vmatpush1.msra.mxu0 %v1562
        %1592 = vmatprep.subr.mxu0 %v1561
        %1593 = vmatpush1.msra.mxu0 %v1560
        %1594 = vmatprep.subr.mxu0 %v1559
        %1595 = vmatpush1.msra.mxu0 %v1558
        %1596 = vmatprep.subr.mxu0 %v1557
        %1597 = vmatpush1.msra.mxu0 %v1556
        %1598 = vmatprep.subr.mxu0 %v1555
        %1599 = vmatpush1.msra.mxu0 %v1554
        %1600 = vmatprep.subr.mxu0 %v1553
        %1601 = vmatpush1.msra.mxu0 %v1552
        %1602 = vmatprep.subr.mxu0 %v1551
        %1603 = vmatpush1.msra.mxu0 %v1550
        %1604 = vmatprep.subr.mxu0 %v1549
        %1605 = vmatpush1.msra.mxu0 %v1548
        %1606 = vmatprep.subr.mxu0 %v1547
        %1607 = vmatpush1.msra.mxu0 %v1546
        %1608 = vmatprep.subr.mxu0 %v1545
        %1609 = vmatpush1.msra.mxu0 %v1544
        %1610 = vmatprep.subr.mxu0 0.0
        %1611 = vmatpush2.msra.mxu0 0.0
        %1612 = vmatprep.subr.mxu0 0.0
        %1613 = vmatpush2.msra.mxu0 0.0
        %1614 = vmatprep.subr.mxu0 0.0
        %1615 = vmatpush2.msra.mxu0 0.0
        %1616 = vmatprep.subr.mxu0 0.0
        %1617 = vmatpush2.msra.mxu0 0.0
        %1618 = vmatprep.subr.mxu0 0.0
        %1619 = vmatpush2.msra.mxu0 0.0
        %1620 = vmatprep.subr.mxu0 0.0
        %1621 = vmatpush2.msra.mxu0 0.0
        %1622 = vmatprep.subr.mxu0 0.0
        %1623 = vmatpush2.msra.mxu0 0.0
        %1624 = vmatprep.subr.mxu0 0.0
        %1625 = vmatpush2.msra.mxu0 0.0
        %1626 = vmatprep.subr.mxu0 0.0
        %1627 = vmatpush2.msra.mxu0 0.0
        %1628 = vmatprep.subr.mxu0 0.0
        %1629 = vmatpush2.msra.mxu0 0.0
        %1630 = vmatprep.subr.mxu0 0.0
        %1631 = vmatpush2.msra.mxu0 0.0
        %1632 = vmatprep.subr.mxu0 0.0
        %1633 = vmatpush2.msra.mxu0 0.0
        %1634 = vmatprep.subr.mxu0 0.0
        %1635 = vmatpush2.msra.mxu0 0.0
        %1636 = vmatprep.subr.mxu0 0.0
        %1637 = vmatpush2.msra.mxu0 0.0
        %1638 = vmatprep.subr.mxu0 0.0
        %1639 = vmatpush2.msra.mxu0 0.0
        %1640 = vmatprep.subr.mxu0 0.0
        %1641 = vmatpush2.msra.mxu0 0.0
        %1642 = vmatprep.mubr.f32.mxu0 0.0
        %1643 = vmatmul.mubr.f32.gmra.mxu0 %v1567
        %v1644 = vpop.f32.mrf.mxu0
        %v1645 = vadd.f32 0.0, %v1644
        %v1646 = vpop.f32.mrf.mxu0
        %v1647 = vadd.f32 0.0, %v1646
        %1648 = vmatprep.mubr.f32.mxu0 0.0
        %1649 = vmatmul.mubr.f32.gmra.mxu0 %v1570
        %v1650 = vpop.f32.mrf.mxu0
        %v1651 = vadd.f32 0.0, %v1650
        %v1652 = vpop.f32.mrf.mxu0
        %v1653 = vadd.f32 0.0, %v1652
        %1654 = vdwg.mxu0
        %v1655 = vadd.f32 %v1531, %v1645
        %v1656 = vadd.f32 %v1533, %v1647
        %v1657 = vadd.f32 %v1537, %v1651
        %v1658 = vadd.f32 %v1539, %v1653
        %v1659 = vld [vmem:[#allocation2 + $0x3] sm:$0xff]
        %v1660 = vld [vmem:[#allocation2 + $0xb] sm:$0x3]
        %s1661 = scalar_lea.vmem %s5, 528
        %v1662 = vld [vmem:[%s1661] sm:$0xff]
        %v1663 = vld [vmem:[%s1661 + $0x8] sm:$0xff]
        %v1664 = vld [vmem:[%s1661 + $0x10] sm:$0xff]
        %v1665 = vld [vmem:[%s1661 + $0x18] sm:$0xff]
        %v1666 = vld [vmem:[%s1661 + $0x20] sm:$0xff]
        %v1667 = vld [vmem:[%s1661 + $0x28] sm:$0xff]
        %v1668 = vld [vmem:[%s1661 + $0x30] sm:$0xff]
        %v1669 = vld [vmem:[%s1661 + $0x38] sm:$0xff]
        %v1670 = vld [vmem:[%s1661 + $0x40] sm:$0xff]
        %v1671 = vld [vmem:[%s1661 + $0x48] sm:$0xff]
        %v1672 = vld [vmem:[%s1661 + $0x50] sm:$0xff]
        %v1673 = vld [vmem:[%s1661 + $0x58] sm:$0xff]
        %v1674 = vld [vmem:[%s1661 + $0x60] sm:$0xff]
        %v1675 = vld [vmem:[%s1661 + $0x68] sm:$0xff]
        %v1676 = vld [vmem:[%s1661 + $0x70] sm:$0xff]
        %v1677 = vld [vmem:[%s1661 + $0x78] sm:$0xff]
        %v1678 = vld [vmem:[%s1661 + $0x80] sm:$0xff]
        %v1679 = vld [vmem:[%s1661 + $0x88] sm:$0xff]
        %v1680 = vld [vmem:[%s1661 + $0x90] sm:$0xff]
        %v1681 = vld [vmem:[%s1661 + $0x98] sm:$0xff]
        %v1682 = vld [vmem:[%s1661 + $0xa0] sm:$0xf]
        %v1683 = vld [vmem:[%s1661 + $0xa8] sm:$0xf]
        %v1685 = vsel %vm1310, %v1659, 0
        %v1688 = vsel %vm1310, %v1660, 0
        %v1691 = vsel %vm1123, %v1682, 0
        %v1694 = vsel %vm1123, %v1683, 0
        %1696 = vmatprep.subr.mxu0 0.0
        %1697 = vmatpush1.msra.mxu0 0.0
        %1698 = vmatprep.subr.mxu0 0.0
        %1699 = vmatpush1.msra.mxu0 0.0
        %1700 = vmatprep.subr.mxu0 0.0
        %1701 = vmatpush1.msra.mxu0 0.0
        %1702 = vmatprep.subr.mxu0 0.0
        %1703 = vmatpush1.msra.mxu0 0.0
        %1704 = vmatprep.subr.mxu0 0.0
        %1705 = vmatpush1.msra.mxu0 0.0
        %1706 = vmatprep.subr.mxu0 %v1694
        %1707 = vmatpush1.msra.mxu0 %v1691
        %1708 = vmatprep.subr.mxu0 %v1681
        %1709 = vmatpush1.msra.mxu0 %v1680
        %1710 = vmatprep.subr.mxu0 %v1679
        %1711 = vmatpush1.msra.mxu0 %v1678
        %1712 = vmatprep.subr.mxu0 %v1677
        %1713 = vmatpush1.msra.mxu0 %v1676
        %1714 = vmatprep.subr.mxu0 %v1675
        %1715 = vmatpush1.msra.mxu0 %v1674
        %1716 = vmatprep.subr.mxu0 %v1673
        %1717 = vmatpush1.msra.mxu0 %v1672
        %1718 = vmatprep.subr.mxu0 %v1671
        %1719 = vmatpush1.msra.mxu0 %v1670
        %1720 = vmatprep.subr.mxu0 %v1669
        %1721 = vmatpush1.msra.mxu0 %v1668
        %1722 = vmatprep.subr.mxu0 %v1667
        %1723 = vmatpush1.msra.mxu0 %v1666
        %1724 = vmatprep.subr.mxu0 %v1665
        %1725 = vmatpush1.msra.mxu0 %v1664
        %1726 = vmatprep.subr.mxu0 %v1663
        %1727 = vmatpush1.msra.mxu0 %v1662
        %1728 = vmatprep.subr.mxu0 0.0
        %1729 = vmatpush2.msra.mxu0 0.0
        %1730 = vmatprep.subr.mxu0 0.0
        %1731 = vmatpush2.msra.mxu0 0.0
        %1732 = vmatprep.subr.mxu0 0.0
        %1733 = vmatpush2.msra.mxu0 0.0
        %1734 = vmatprep.subr.mxu0 0.0
        %1735 = vmatpush2.msra.mxu0 0.0
        %1736 = vmatprep.subr.mxu0 0.0
        %1737 = vmatpush2.msra.mxu0 0.0
        %1738 = vmatprep.subr.mxu0 0.0
        %1739 = vmatpush2.msra.mxu0 0.0
        %1740 = vmatprep.subr.mxu0 0.0
        %1741 = vmatpush2.msra.mxu0 0.0
        %1742 = vmatprep.subr.mxu0 0.0
        %1743 = vmatpush2.msra.mxu0 0.0
        %1744 = vmatprep.subr.mxu0 0.0
        %1745 = vmatpush2.msra.mxu0 0.0
        %1746 = vmatprep.subr.mxu0 0.0
        %1747 = vmatpush2.msra.mxu0 0.0
        %1748 = vmatprep.subr.mxu0 0.0
        %1749 = vmatpush2.msra.mxu0 0.0
        %1750 = vmatprep.subr.mxu0 0.0
        %1751 = vmatpush2.msra.mxu0 0.0
        %1752 = vmatprep.subr.mxu0 0.0
        %1753 = vmatpush2.msra.mxu0 0.0
        %1754 = vmatprep.subr.mxu0 0.0
        %1755 = vmatpush2.msra.mxu0 0.0
        %1756 = vmatprep.subr.mxu0 0.0
        %1757 = vmatpush2.msra.mxu0 0.0
        %1758 = vmatprep.subr.mxu0 0.0
        %1759 = vmatpush2.msra.mxu0 0.0
        %1760 = vmatprep.mubr.f32.mxu0 0.0
        %1761 = vmatmul.mubr.f32.gmra.mxu0 %v1685
        %v1762 = vpop.f32.mrf.mxu0
        %v1763 = vadd.f32 0.0, %v1762
        %v1764 = vpop.f32.mrf.mxu0
        %v1765 = vadd.f32 0.0, %v1764
        %1766 = vmatprep.mubr.f32.mxu0 0.0
        %1767 = vmatmul.mubr.f32.gmra.mxu0 %v1688
        %v1768 = vpop.f32.mrf.mxu0
        %v1769 = vadd.f32 0.0, %v1768
        %v1770 = vpop.f32.mrf.mxu0
        %v1771 = vadd.f32 0.0, %v1770
        %1772 = vdwg.mxu0
        %v1773 = vadd.f32 %v1655, %v1763
        %v1774 = vadd.f32 %v1656, %v1765
        %v1775 = vadd.f32 %v1657, %v1769
        %v1776 = vadd.f32 %v1658, %v1771
        %v1777 = vld [vmem:[#allocation2 + $0x4] sm:$0xff]
        %v1778 = vld [vmem:[#allocation2 + $0xc] sm:$0x3]
        %s1779 = scalar_lea.vmem %s5, 704
        %v1780 = vld [vmem:[%s1779] sm:$0xff]
        %v1781 = vld [vmem:[%s1779 + $0x8] sm:$0xff]
        %v1782 = vld [vmem:[%s1779 + $0x10] sm:$0xff]
        %v1783 = vld [vmem:[%s1779 + $0x18] sm:$0xff]
        %v1784 = vld [vmem:[%s1779 + $0x20] sm:$0xff]
        %v1785 = vld [vmem:[%s1779 + $0x28] sm:$0xff]
        %v1786 = vld [vmem:[%s1779 + $0x30] sm:$0xff]
        %v1787 = vld [vmem:[%s1779 + $0x38] sm:$0xff]
        %v1788 = vld [vmem:[%s1779 + $0x40] sm:$0xff]
        %v1789 = vld [vmem:[%s1779 + $0x48] sm:$0xff]
        %v1790 = vld [vmem:[%s1779 + $0x50] sm:$0xff]
        %v1791 = vld [vmem:[%s1779 + $0x58] sm:$0xff]
        %v1792 = vld [vmem:[%s1779 + $0x60] sm:$0xff]
        %v1793 = vld [vmem:[%s1779 + $0x68] sm:$0xff]
        %v1794 = vld [vmem:[%s1779 + $0x70] sm:$0xff]
        %v1795 = vld [vmem:[%s1779 + $0x78] sm:$0xff]
        %v1796 = vld [vmem:[%s1779 + $0x80] sm:$0xff]
        %v1797 = vld [vmem:[%s1779 + $0x88] sm:$0xff]
        %v1798 = vld [vmem:[%s1779 + $0x90] sm:$0xff]
        %v1799 = vld [vmem:[%s1779 + $0x98] sm:$0xff]
        %v1800 = vld [vmem:[%s1779 + $0xa0] sm:$0xf]
        %v1801 = vld [vmem:[%s1779 + $0xa8] sm:$0xf]
        %v1803 = vsel %vm1310, %v1777, 0
        %v1806 = vsel %vm1310, %v1778, 0
        %v1809 = vsel %vm1123, %v1800, 0
        %v1812 = vsel %vm1123, %v1801, 0
        %1814 = vmatprep.subr.mxu0 0.0
        %1815 = vmatpush1.msra.mxu0 0.0
        %1816 = vmatprep.subr.mxu0 0.0
        %1817 = vmatpush1.msra.mxu0 0.0
        %1818 = vmatprep.subr.mxu0 0.0
        %1819 = vmatpush1.msra.mxu0 0.0
        %1820 = vmatprep.subr.mxu0 0.0
        %1821 = vmatpush1.msra.mxu0 0.0
        %1822 = vmatprep.subr.mxu0 0.0
        %1823 = vmatpush1.msra.mxu0 0.0
        %1824 = vmatprep.subr.mxu0 %v1812
        %1825 = vmatpush1.msra.mxu0 %v1809
        %1826 = vmatprep.subr.mxu0 %v1799
        %1827 = vmatpush1.msra.mxu0 %v1798
        %1828 = vmatprep.subr.mxu0 %v1797
        %1829 = vmatpush1.msra.mxu0 %v1796
        %1830 = vmatprep.subr.mxu0 %v1795
        %1831 = vmatpush1.msra.mxu0 %v1794
        %1832 = vmatprep.subr.mxu0 %v1793
        %1833 = vmatpush1.msra.mxu0 %v1792
        %1834 = vmatprep.subr.mxu0 %v1791
        %1835 = vmatpush1.msra.mxu0 %v1790
        %1836 = vmatprep.subr.mxu0 %v1789
        %1837 = vmatpush1.msra.mxu0 %v1788
        %1838 = vmatprep.subr.mxu0 %v1787
        %1839 = vmatpush1.msra.mxu0 %v1786
        %1840 = vmatprep.subr.mxu0 %v1785
        %1841 = vmatpush1.msra.mxu0 %v1784
        %1842 = vmatprep.subr.mxu0 %v1783
        %1843 = vmatpush1.msra.mxu0 %v1782
        %1844 = vmatprep.subr.mxu0 %v1781
        %1845 = vmatpush1.msra.mxu0 %v1780
        %1846 = vmatprep.subr.mxu0 0.0
        %1847 = vmatpush2.msra.mxu0 0.0
        %1848 = vmatprep.subr.mxu0 0.0
        %1849 = vmatpush2.msra.mxu0 0.0
        %1850 = vmatprep.subr.mxu0 0.0
        %1851 = vmatpush2.msra.mxu0 0.0
        %1852 = vmatprep.subr.mxu0 0.0
        %1853 = vmatpush2.msra.mxu0 0.0
        %1854 = vmatprep.subr.mxu0 0.0
        %1855 = vmatpush2.msra.mxu0 0.0
        %1856 = vmatprep.subr.mxu0 0.0
        %1857 = vmatpush2.msra.mxu0 0.0
        %1858 = vmatprep.subr.mxu0 0.0
        %1859 = vmatpush2.msra.mxu0 0.0
        %1860 = vmatprep.subr.mxu0 0.0
        %1861 = vmatpush2.msra.mxu0 0.0
        %1862 = vmatprep.subr.mxu0 0.0
        %1863 = vmatpush2.msra.mxu0 0.0
        %1864 = vmatprep.subr.mxu0 0.0
        %1865 = vmatpush2.msra.mxu0 0.0
        %1866 = vmatprep.subr.mxu0 0.0
        %1867 = vmatpush2.msra.mxu0 0.0
        %1868 = vmatprep.subr.mxu0 0.0
        %1869 = vmatpush2.msra.mxu0 0.0
        %1870 = vmatprep.subr.mxu0 0.0
        %1871 = vmatpush2.msra.mxu0 0.0
        %1872 = vmatprep.subr.mxu0 0.0
        %1873 = vmatpush2.msra.mxu0 0.0
        %1874 = vmatprep.subr.mxu0 0.0
        %1875 = vmatpush2.msra.mxu0 0.0
        %1876 = vmatprep.subr.mxu0 0.0
        %1877 = vmatpush2.msra.mxu0 0.0
        %1878 = vmatprep.mubr.f32.mxu0 0.0
        %1879 = vmatmul.mubr.f32.gmra.mxu0 %v1803
        %v1880 = vpop.f32.mrf.mxu0
        %v1881 = vadd.f32 0.0, %v1880
        %v1882 = vpop.f32.mrf.mxu0
        %v1883 = vadd.f32 0.0, %v1882
        %1884 = vmatprep.mubr.f32.mxu0 0.0
        %1885 = vmatmul.mubr.f32.gmra.mxu0 %v1806
        %v1886 = vpop.f32.mrf.mxu0
        %v1887 = vadd.f32 0.0, %v1886
        %v1888 = vpop.f32.mrf.mxu0
        %v1889 = vadd.f32 0.0, %v1888
        %1890 = vdwg.mxu0
        %v1891 = vadd.f32 %v1773, %v1881
        %v1892 = vadd.f32 %v1774, %v1883
        %v1893 = vadd.f32 %v1775, %v1887
        %v1894 = vadd.f32 %v1776, %v1889
        %v1895 = vld [vmem:[%s6] sm:$0x3]
        %v1897 = vlaneseq
        %v1898 = vshrl.u32 %v1897, 7
        %v1899 = vsub.s32 0, %v1898
        %v1900 = vrot.slane %v1895, %v1899
        %v1901 = vlaneseq
        %v1902 = vshrl.u32 %v1901, 7
        %v1903 = vsub.s32 1, %v1902
        %v1904 = vrot.slane %v1895, %v1903
        %v1907 = vadd.f32 %v1891, %v1900
        %v1908 = vadd.f32 %v1892, %v1904
        %v1909 = vadd.f32 %v1893, %v1900
        %v1910 = vadd.f32 %v1894, %v1904
        %v1911 = vmax.f32 %v1907, 0.0
        %v1912 = vmax.f32 %v1908, 0.0
        %v1913 = vmax.f32 %v1909, 0.0
        %v1914 = vmax.f32 %v1910, 0.0
        %v1915 = vld [vmem:[%s7] sm:$0x1f]
        %vm1916 = vcmask 80896
        %v1918 = vsel %vm1916, %v1915, 0
        %vm1920 = vcmask 1041408
        %v1922 = vsel %vm1920, %v1913, 0
        %v1925 = vsel %vm1920, %v1914, 0
        %1927 = vmatprep.subr.mxu0 0.0
        %1928 = vmatpush1.msra.mxu0 0.0
        %1929 = vmatprep.subr.mxu0 0.0
        %1930 = vmatpush1.msra.mxu0 0.0
        %1931 = vmatprep.subr.mxu0 0.0
        %1932 = vmatpush1.msra.mxu0 0.0
        %1933 = vmatprep.subr.mxu0 0.0
        %1934 = vmatpush1.msra.mxu0 0.0
        %1935 = vmatprep.subr.mxu0 0.0
        %1936 = vmatpush1.msra.mxu0 0.0
        %1937 = vmatprep.subr.mxu0 0.0
        %1938 = vmatpush1.msra.mxu0 0.0
        %1939 = vmatprep.subr.mxu0 0.0
        %1940 = vmatpush1.msra.mxu0 0.0
        %1941 = vmatprep.subr.mxu0 0.0
        %1942 = vmatpush1.msra.mxu0 0.0
        %1943 = vmatprep.subr.mxu0 0.0
        %1944 = vmatpush1.msra.mxu0 0.0
        %1945 = vmatprep.subr.mxu0 0.0
        %1946 = vmatpush1.msra.mxu0 0.0
        %1947 = vmatprep.subr.mxu0 0.0
        %1948 = vmatpush1.msra.mxu0 0.0
        %1949 = vmatprep.subr.mxu0 0.0
        %1950 = vmatpush1.msra.mxu0 0.0
        %1951 = vmatprep.subr.mxu0 0.0
        %1952 = vmatpush1.msra.mxu0 0.0
        %1953 = vmatprep.subr.mxu0 0.0
        %1954 = vmatpush1.msra.mxu0 0.0
        %1955 = vmatprep.subr.mxu0 %v1925
        %1956 = vmatpush1.msra.mxu0 %v1922
        %1957 = vmatprep.subr.mxu0 %v1912
        %1958 = vmatpush1.msra.mxu0 %v1911
        %1959 = vmatprep.subr.mxu0 0.0
        %1960 = vmatpush2.msra.mxu0 0.0
        %1961 = vmatprep.subr.mxu0 0.0
        %1962 = vmatpush2.msra.mxu0 0.0
        %1963 = vmatprep.subr.mxu0 0.0
        %1964 = vmatpush2.msra.mxu0 0.0
        %1965 = vmatprep.subr.mxu0 0.0
        %1966 = vmatpush2.msra.mxu0 0.0
        %1967 = vmatprep.subr.mxu0 0.0
        %1968 = vmatpush2.msra.mxu0 0.0
        %1969 = vmatprep.subr.mxu0 0.0
        %1970 = vmatpush2.msra.mxu0 0.0
        %1971 = vmatprep.subr.mxu0 0.0
        %1972 = vmatpush2.msra.mxu0 0.0
        %1973 = vmatprep.subr.mxu0 0.0
        %1974 = vmatpush2.msra.mxu0 0.0
        %1975 = vmatprep.subr.mxu0 0.0
        %1976 = vmatpush2.msra.mxu0 0.0
        %1977 = vmatprep.subr.mxu0 0.0
        %1978 = vmatpush2.msra.mxu0 0.0
        %1979 = vmatprep.subr.mxu0 0.0
        %1980 = vmatpush2.msra.mxu0 0.0
        %1981 = vmatprep.subr.mxu0 0.0
        %1982 = vmatpush2.msra.mxu0 0.0
        %1983 = vmatprep.subr.mxu0 0.0
        %1984 = vmatpush2.msra.mxu0 0.0
        %1985 = vmatprep.subr.mxu0 0.0
        %1986 = vmatpush2.msra.mxu0 0.0
        %1987 = vmatprep.subr.mxu0 0.0
        %1988 = vmatpush2.msra.mxu0 0.0
        %1989 = vmatprep.subr.mxu0 0.0
        %1990 = vmatpush2.msra.mxu0 0.0
        %1991 = vmatprep.mubr.f32.mxu0 0.0
        %1992 = vmatmul.mubr.f32.gmra.mxu0 %v1918
        %v1993 = vpop.f32.mrf.mxu0
        %v1994 = vadd.f32 0.0, %v1993
        %v1995 = vpop.f32.mrf.mxu0
        %v1996 = vadd.f32 0.0, %v1995
        %1997 = vdwg.mxu0
        %v1998 = vld [vmem:[%s8] sm:$0xff]
        %v1999 = vld [vmem:[%s8 + $0x8] sm:$0xff]
        %v2000 = vld [vmem:[%s8 + $0x10] sm:$0xff]
        %v2001 = vld [vmem:[%s8 + $0x18] sm:$0xff]
        %v2002 = vld [vmem:[%s8 + $0x20] sm:$0xff]
        %v2003 = vld [vmem:[%s8 + $0x28] sm:$0xff]
        %v2004 = vld [vmem:[%s8 + $0x30] sm:$0xff]
        %v2005 = vld [vmem:[%s8 + $0x38] sm:$0xff]
        %v2006 = vld [vmem:[%s8 + $0x40] sm:$0xff]
        %v2007 = vld [vmem:[%s8 + $0x48] sm:$0xff]
        %v2008 = vld [vmem:[%s8 + $0x50] sm:$0xff]
        %v2009 = vld [vmem:[%s8 + $0x58] sm:$0xff]
        %v2010 = vld [vmem:[%s8 + $0x60] sm:$0xff]
        %v2011 = vld [vmem:[%s8 + $0x68] sm:$0xff]
        %v2012 = vld [vmem:[%s8 + $0x70] sm:$0xff]
        %v2013 = vld [vmem:[%s8 + $0x78] sm:$0xff]
        %v2014 = vld [vmem:[%s8 + $0x80] sm:$0xff]
        %v2015 = vld [vmem:[%s8 + $0x88] sm:$0xff]
        %v2016 = vld [vmem:[%s8 + $0x90] sm:$0xff]
        %v2017 = vld [vmem:[%s8 + $0x98] sm:$0xff]
        %v2019 = vsel %vm517, %v1996, 0
        %2021 = vmatprep.subr.mxu0 0.0
        %2022 = vmatpush1.msra.mxu0 %v2013
        %2023 = vmatprep.subr.mxu0 0.0
        %2024 = vmatpush1.msra.mxu0 %v2012
        %2025 = vmatprep.subr.mxu0 0.0
        %2026 = vmatpush1.msra.mxu0 %v2011
        %2027 = vmatprep.subr.mxu0 0.0
        %2028 = vmatpush1.msra.mxu0 %v2010
        %2029 = vmatprep.subr.mxu0 0.0
        %2030 = vmatpush1.msra.mxu0 %v2009
        %2031 = vmatprep.subr.mxu0 0.0
        %2032 = vmatpush1.msra.mxu0 %v2008
        %2033 = vmatprep.subr.mxu0 0.0
        %2034 = vmatpush1.msra.mxu0 %v2007
        %2035 = vmatprep.subr.mxu0 0.0
        %2036 = vmatpush1.msra.mxu0 %v2006
        %2037 = vmatprep.subr.mxu0 0.0
        %2038 = vmatpush1.msra.mxu0 %v2005
        %2039 = vmatprep.subr.mxu0 0.0
        %2040 = vmatpush1.msra.mxu0 %v2004
        %2041 = vmatprep.subr.mxu0 0.0
        %2042 = vmatpush1.msra.mxu0 %v2003
        %2043 = vmatprep.subr.mxu0 0.0
        %2044 = vmatpush1.msra.mxu0 %v2002
        %2045 = vmatprep.subr.mxu0 0.0
        %2046 = vmatpush1.msra.mxu0 %v2001
        %2047 = vmatprep.subr.mxu0 0.0
        %2048 = vmatpush1.msra.mxu0 %v2000
        %2049 = vmatprep.subr.mxu0 0.0
        %2050 = vmatpush1.msra.mxu0 %v1999
        %2051 = vmatprep.subr.mxu0 0.0
        %2052 = vmatpush1.msra.mxu0 %v1998
        %2053 = vmatprep.subr.mxu0 0.0
        %2054 = vmatpush2.msra.mxu0 0.0
        %2055 = vmatprep.subr.mxu0 0.0
        %2056 = vmatpush2.msra.mxu0 0.0
        %2057 = vmatprep.subr.mxu0 0.0
        %2058 = vmatpush2.msra.mxu0 0.0
        %2059 = vmatprep.subr.mxu0 0.0
        %2060 = vmatpush2.msra.mxu0 0.0
        %2061 = vmatprep.subr.mxu0 0.0
        %2062 = vmatpush2.msra.mxu0 0.0
        %2063 = vmatprep.subr.mxu0 0.0
        %2064 = vmatpush2.msra.mxu0 0.0
        %2065 = vmatprep.subr.mxu0 0.0
        %2066 = vmatpush2.msra.mxu0 0.0
        %2067 = vmatprep.subr.mxu0 0.0
        %2068 = vmatpush2.msra.mxu0 0.0
        %2069 = vmatprep.subr.mxu0 0.0
        %2070 = vmatpush2.msra.mxu0 0.0
        %2071 = vmatprep.subr.mxu0 0.0
        %2072 = vmatpush2.msra.mxu0 0.0
        %2073 = vmatprep.subr.mxu0 0.0
        %2074 = vmatpush2.msra.mxu0 0.0
        %2075 = vmatprep.subr.mxu0 0.0
        %2076 = vmatpush2.msra.mxu0 0.0
        %2077 = vmatprep.subr.mxu0 0.0
        %2078 = vmatpush2.msra.mxu0 %v2017
        %2079 = vmatprep.subr.mxu0 0.0
        %2080 = vmatpush2.msra.mxu0 %v2016
        %2081 = vmatprep.subr.mxu0 0.0
        %2082 = vmatpush2.msra.mxu0 %v2015
        %2083 = vmatprep.subr.mxu0 0.0
        %2084 = vmatpush2.msra.mxu0 %v2014
        %2085 = vmatprep.mubr.f32.mxu0 %v2019
        %2086 = vmatmul.mubr.f32.gmra.mxu0 %v1994
        %v2087 = vpop.f32.mrf.mxu0
        %v2088 = vadd.f32 0.0, %v2087
        %v2089 = vpop.f32.mrf.mxu0
        %2090 = vdwg.mxu0
        %vm2091 = vcmask 651264
        %2092 = vst.msk [vmem:[#allocation3] sm:$0x1f] %vm2091, %v2088
        %v2093 = vld [vmem:[#allocation3] sm:$0x1]
        %v2094 = vld [vmem:[%s9] sm:$0xff]
        %v2095 = vld [vmem:[%s9 + $0x8] sm:$0xff]
        %v2096 = vld [vmem:[%s9 + $0x10] sm:$0xff]
        %v2097 = vld [vmem:[%s9 + $0x18] sm:$0xff]
        %v2098 = vld [vmem:[%s9 + $0x20] sm:$0xff]
        %v2099 = vld [vmem:[%s9 + $0x28] sm:$0xff]
        %v2100 = vld [vmem:[%s9 + $0x30] sm:$0xff]
        %v2101 = vld [vmem:[%s9 + $0x38] sm:$0xff]
        %v2102 = vld [vmem:[%s9 + $0x40] sm:$0xff]
        %v2103 = vld [vmem:[%s9 + $0x48] sm:$0xff]
        %v2104 = vld [vmem:[#allocation3 + $0x1] sm:$0x1]
        %s2105 = scalar_lea.vmem %s9, 80
        %v2106 = vld [vmem:[%s2105] sm:$0xff]
        %v2107 = vld [vmem:[%s2105 + $0x8] sm:$0xff]
        %v2108 = vld [vmem:[%s2105 + $0x10] sm:$0xff]
        %v2109 = vld [vmem:[%s2105 + $0x18] sm:$0xff]
        %v2110 = vld [vmem:[%s2105 + $0x20] sm:$0xff]
        %v2111 = vld [vmem:[%s2105 + $0x28] sm:$0xff]
        %v2112 = vld [vmem:[%s2105 + $0x30] sm:$0xff]
        %v2113 = vld [vmem:[%s2105 + $0x38] sm:$0xff]
        %v2114 = vld [vmem:[%s2105 + $0x40] sm:$0xff]
        %v2115 = vld [vmem:[%s2105 + $0x48] sm:$0xff]
        %vm2116 = vcmask 654336
        %v2118 = vsel %vm2116, %v2104, 0
        %2120 = vmatprep.subr.mxu0 0.0
        %2121 = vmatpush1.msra.mxu0 0.0
        %2122 = vmatprep.subr.mxu0 0.0
        %2123 = vmatpush1.msra.mxu0 0.0
        %2124 = vmatprep.subr.mxu0 0.0
        %2125 = vmatpush1.msra.mxu0 0.0
        %2126 = vmatprep.subr.mxu0 0.0
        %2127 = vmatpush1.msra.mxu0 0.0
        %2128 = vmatprep.subr.mxu0 0.0
        %2129 = vmatpush1.msra.mxu0 0.0
        %2130 = vmatprep.subr.mxu0 0.0
        %2131 = vmatpush1.msra.mxu0 0.0
        %2132 = vmatprep.subr.mxu0 0.0
        %2133 = vmatpush1.msra.mxu0 %v2115
        %2134 = vmatprep.subr.mxu0 0.0
        %2135 = vmatpush1.msra.mxu0 %v2114
        %2136 = vmatprep.subr.mxu0 0.0
        %2137 = vmatpush1.msra.mxu0 %v2113
        %2138 = vmatprep.subr.mxu0 0.0
        %2139 = vmatpush1.msra.mxu0 %v2112
        %2140 = vmatprep.subr.mxu0 0.0
        %2141 = vmatpush1.msra.mxu0 %v2111
        %2142 = vmatprep.subr.mxu0 0.0
        %2143 = vmatpush1.msra.mxu0 %v2110
        %2144 = vmatprep.subr.mxu0 0.0
        %2145 = vmatpush1.msra.mxu0 %v2109
        %2146 = vmatprep.subr.mxu0 0.0
        %2147 = vmatpush1.msra.mxu0 %v2108
        %2148 = vmatprep.subr.mxu0 0.0
        %2149 = vmatpush1.msra.mxu0 %v2107
        %2150 = vmatprep.subr.mxu0 0.0
        %2151 = vmatpush1.msra.mxu0 %v2106
        %2152 = vmatprep.subr.mxu0 0.0
        %2153 = vmatpush2.msra.mxu0 0.0
        %2154 = vmatprep.subr.mxu0 0.0
        %2155 = vmatpush2.msra.mxu0 0.0
        %2156 = vmatprep.subr.mxu0 0.0
        %2157 = vmatpush2.msra.mxu0 0.0
        %2158 = vmatprep.subr.mxu0 0.0
        %2159 = vmatpush2.msra.mxu0 0.0
        %2160 = vmatprep.subr.mxu0 0.0
        %2161 = vmatpush2.msra.mxu0 0.0
        %2162 = vmatprep.subr.mxu0 0.0
        %2163 = vmatpush2.msra.mxu0 0.0
        %2164 = vmatprep.subr.mxu0 0.0
        %2165 = vmatpush2.msra.mxu0 0.0
        %2166 = vmatprep.subr.mxu0 0.0
        %2167 = vmatpush2.msra.mxu0 0.0
        %2168 = vmatprep.subr.mxu0 0.0
        %2169 = vmatpush2.msra.mxu0 0.0
        %2170 = vmatprep.subr.mxu0 0.0
        %2171 = vmatpush2.msra.mxu0 0.0
        %2172 = vmatprep.subr.mxu0 0.0
        %2173 = vmatpush2.msra.mxu0 0.0
        %2174 = vmatprep.subr.mxu0 0.0
        %2175 = vmatpush2.msra.mxu0 0.0
        %2176 = vmatprep.subr.mxu0 0.0
        %2177 = vmatpush2.msra.mxu0 0.0
        %2178 = vmatprep.subr.mxu0 0.0
        %2179 = vmatpush2.msra.mxu0 0.0
        %2180 = vmatprep.subr.mxu0 0.0
        %2181 = vmatpush2.msra.mxu0 0.0
        %2182 = vmatprep.subr.mxu0 0.0
        %2183 = vmatpush2.msra.mxu0 0.0
        %2184 = vmatprep.mubr.f32.mxu0 0.0
        %2185 = vmatmul.mubr.f32.gmra.mxu0 %v2118
        %v2186 = vpop.f32.mrf.mxu0
        %v2187 = vadd.f32 0.0, %v2186
        %v2188 = vpop.f32.mrf.mxu0
        %2189 = vdwg.mxu0
        %v2191 = vsel %vm2116, %v2093, 0
        %2193 = vmatprep.subr.mxu0 0.0
        %2194 = vmatpush1.msra.mxu0 0.0
        %2195 = vmatprep.subr.mxu0 0.0
        %2196 = vmatpush1.msra.mxu0 0.0
        %2197 = vmatprep.subr.mxu0 0.0
        %2198 = vmatpush1.msra.mxu0 0.0
        %2199 = vmatprep.subr.mxu0 0.0
        %2200 = vmatpush1.msra.mxu0 0.0
        %2201 = vmatprep.subr.mxu0 0.0
        %2202 = vmatpush1.msra.mxu0 0.0
        %2203 = vmatprep.subr.mxu0 0.0
        %2204 = vmatpush1.msra.mxu0 0.0
        %2205 = vmatprep.subr.mxu0 0.0
        %2206 = vmatpush1.msra.mxu0 %v2103
        %2207 = vmatprep.subr.mxu0 0.0
        %2208 = vmatpush1.msra.mxu0 %v2102
        %2209 = vmatprep.subr.mxu0 0.0
        %2210 = vmatpush1.msra.mxu0 %v2101
        %2211 = vmatprep.subr.mxu0 0.0
        %2212 = vmatpush1.msra.mxu0 %v2100
        %2213 = vmatprep.subr.mxu0 0.0
        %2214 = vmatpush1.msra.mxu0 %v2099
        %2215 = vmatprep.subr.mxu0 0.0
        %2216 = vmatpush1.msra.mxu0 %v2098
        %2217 = vmatprep.subr.mxu0 0.0
        %2218 = vmatpush1.msra.mxu0 %v2097
        %2219 = vmatprep.subr.mxu0 0.0
        %2220 = vmatpush1.msra.mxu0 %v2096
        %2221 = vmatprep.subr.mxu0 0.0
        %2222 = vmatpush1.msra.mxu0 %v2095
        %2223 = vmatprep.subr.mxu0 0.0
        %2224 = vmatpush1.msra.mxu0 %v2094
        %2225 = vmatprep.subr.mxu0 0.0
        %2226 = vmatpush2.msra.mxu0 0.0
        %2227 = vmatprep.subr.mxu0 0.0
        %2228 = vmatpush2.msra.mxu0 0.0
        %2229 = vmatprep.subr.mxu0 0.0
        %2230 = vmatpush2.msra.mxu0 0.0
        %2231 = vmatprep.subr.mxu0 0.0
        %2232 = vmatpush2.msra.mxu0 0.0
        %2233 = vmatprep.subr.mxu0 0.0
        %2234 = vmatpush2.msra.mxu0 0.0
        %2235 = vmatprep.subr.mxu0 0.0
        %2236 = vmatpush2.msra.mxu0 0.0
        %2237 = vmatprep.subr.mxu0 0.0
        %2238 = vmatpush2.msra.mxu0 0.0
        %2239 = vmatprep.subr.mxu0 0.0
        %2240 = vmatpush2.msra.mxu0 0.0
        %2241 = vmatprep.subr.mxu0 0.0
        %2242 = vmatpush2.msra.mxu0 0.0
        %2243 = vmatprep.subr.mxu0 0.0
        %2244 = vmatpush2.msra.mxu0 0.0
        %2245 = vmatprep.subr.mxu0 0.0
        %2246 = vmatpush2.msra.mxu0 0.0
        %2247 = vmatprep.subr.mxu0 0.0
        %2248 = vmatpush2.msra.mxu0 0.0
        %2249 = vmatprep.subr.mxu0 0.0
        %2250 = vmatpush2.msra.mxu0 0.0
        %2251 = vmatprep.subr.mxu0 0.0
        %2252 = vmatpush2.msra.mxu0 0.0
        %2253 = vmatprep.subr.mxu0 0.0
        %2254 = vmatpush2.msra.mxu0 0.0
        %2255 = vmatprep.subr.mxu0 0.0
        %2256 = vmatpush2.msra.mxu0 0.0
        %2257 = vmatprep.mubr.f32.mxu0 0.0
        %2258 = vmatmul.mubr.f32.gmra.mxu0 %v2191
        %v2259 = vpop.f32.mrf.mxu0
        %v2260 = vadd.f32 %v2187, %v2259
        %v2261 = vpop.f32.mrf.mxu0
        %2262 = vdwg.mxu0
        %v2263 = vld [vmem:[#allocation3 + $0x2] sm:$0x1]
        %s2264 = scalar_lea.vmem %s9, 160
        %v2265 = vld [vmem:[%s2264] sm:$0xff]
        %v2266 = vld [vmem:[%s2264 + $0x8] sm:$0xff]
        %v2267 = vld [vmem:[%s2264 + $0x10] sm:$0xff]
        %v2268 = vld [vmem:[%s2264 + $0x18] sm:$0xff]
        %v2269 = vld [vmem:[%s2264 + $0x20] sm:$0xff]
        %v2270 = vld [vmem:[%s2264 + $0x28] sm:$0xff]
        %v2271 = vld [vmem:[%s2264 + $0x30] sm:$0xff]
        %v2272 = vld [vmem:[%s2264 + $0x38] sm:$0xff]
        %v2273 = vld [vmem:[%s2264 + $0x40] sm:$0xff]
        %v2274 = vld [vmem:[%s2264 + $0x48] sm:$0xff]
        %v2276 = vsel %vm2116, %v2263, 0
        %2278 = vmatprep.subr.mxu0 0.0
        %2279 = vmatpush1.msra.mxu0 0.0
        %2280 = vmatprep.subr.mxu0 0.0
        %2281 = vmatpush1.msra.mxu0 0.0
        %2282 = vmatprep.subr.mxu0 0.0
        %2283 = vmatpush1.msra.mxu0 0.0
        %2284 = vmatprep.subr.mxu0 0.0
        %2285 = vmatpush1.msra.mxu0 0.0
        %2286 = vmatprep.subr.mxu0 0.0
        %2287 = vmatpush1.msra.mxu0 0.0
        %2288 = vmatprep.subr.mxu0 0.0
        %2289 = vmatpush1.msra.mxu0 0.0
        %2290 = vmatprep.subr.mxu0 0.0
        %2291 = vmatpush1.msra.mxu0 %v2274
        %2292 = vmatprep.subr.mxu0 0.0
        %2293 = vmatpush1.msra.mxu0 %v2273
        %2294 = vmatprep.subr.mxu0 0.0
        %2295 = vmatpush1.msra.mxu0 %v2272
        %2296 = vmatprep.subr.mxu0 0.0
        %2297 = vmatpush1.msra.mxu0 %v2271
        %2298 = vmatprep.subr.mxu0 0.0
        %2299 = vmatpush1.msra.mxu0 %v2270
        %2300 = vmatprep.subr.mxu0 0.0
        %2301 = vmatpush1.msra.mxu0 %v2269
        %2302 = vmatprep.subr.mxu0 0.0
        %2303 = vmatpush1.msra.mxu0 %v2268
        %2304 = vmatprep.subr.mxu0 0.0
        %2305 = vmatpush1.msra.mxu0 %v2267
        %2306 = vmatprep.subr.mxu0 0.0
        %2307 = vmatpush1.msra.mxu0 %v2266
        %2308 = vmatprep.subr.mxu0 0.0
        %2309 = vmatpush1.msra.mxu0 %v2265
        %2310 = vmatprep.subr.mxu0 0.0
        %2311 = vmatpush2.msra.mxu0 0.0
        %2312 = vmatprep.subr.mxu0 0.0
        %2313 = vmatpush2.msra.mxu0 0.0
        %2314 = vmatprep.subr.mxu0 0.0
        %2315 = vmatpush2.msra.mxu0 0.0
        %2316 = vmatprep.subr.mxu0 0.0
        %2317 = vmatpush2.msra.mxu0 0.0
        %2318 = vmatprep.subr.mxu0 0.0
        %2319 = vmatpush2.msra.mxu0 0.0
        %2320 = vmatprep.subr.mxu0 0.0
        %2321 = vmatpush2.msra.mxu0 0.0
        %2322 = vmatprep.subr.mxu0 0.0
        %2323 = vmatpush2.msra.mxu0 0.0
        %2324 = vmatprep.subr.mxu0 0.0
        %2325 = vmatpush2.msra.mxu0 0.0
        %2326 = vmatprep.subr.mxu0 0.0
        %2327 = vmatpush2.msra.mxu0 0.0
        %2328 = vmatprep.subr.mxu0 0.0
        %2329 = vmatpush2.msra.mxu0 0.0
        %2330 = vmatprep.subr.mxu0 0.0
        %2331 = vmatpush2.msra.mxu0 0.0
        %2332 = vmatprep.subr.mxu0 0.0
        %2333 = vmatpush2.msra.mxu0 0.0
        %2334 = vmatprep.subr.mxu0 0.0
        %2335 = vmatpush2.msra.mxu0 0.0
        %2336 = vmatprep.subr.mxu0 0.0
        %2337 = vmatpush2.msra.mxu0 0.0
        %2338 = vmatprep.subr.mxu0 0.0
        %2339 = vmatpush2.msra.mxu0 0.0
        %2340 = vmatprep.subr.mxu0 0.0
        %2341 = vmatpush2.msra.mxu0 0.0
        %2342 = vmatprep.mubr.f32.mxu0 0.0
        %2343 = vmatmul.mubr.f32.gmra.mxu0 %v2276
        %v2344 = vpop.f32.mrf.mxu0
        %v2345 = vadd.f32 0.0, %v2344
        %v2346 = vpop.f32.mrf.mxu0
        %2347 = vdwg.mxu0
        %v2348 = vadd.f32 %v2260, %v2345
        %v2349 = vld [vmem:[#allocation3 + $0x3] sm:$0x1]
        %s2350 = scalar_lea.vmem %s9, 240
        %v2351 = vld [vmem:[%s2350] sm:$0xff]
        %v2352 = vld [vmem:[%s2350 + $0x8] sm:$0xff]
        %v2353 = vld [vmem:[%s2350 + $0x10] sm:$0xff]
        %v2354 = vld [vmem:[%s2350 + $0x18] sm:$0xff]
        %v2355 = vld [vmem:[%s2350 + $0x20] sm:$0xff]
        %v2356 = vld [vmem:[%s2350 + $0x28] sm:$0xff]
        %v2357 = vld [vmem:[%s2350 + $0x30] sm:$0xff]
        %v2358 = vld [vmem:[%s2350 + $0x38] sm:$0xff]
        %v2359 = vld [vmem:[%s2350 + $0x40] sm:$0xff]
        %v2360 = vld [vmem:[%s2350 + $0x48] sm:$0xff]
        %v2362 = vsel %vm2116, %v2349, 0
        %2364 = vmatprep.subr.mxu0 0.0
        %2365 = vmatpush1.msra.mxu0 0.0
        %2366 = vmatprep.subr.mxu0 0.0
        %2367 = vmatpush1.msra.mxu0 0.0
        %2368 = vmatprep.subr.mxu0 0.0
        %2369 = vmatpush1.msra.mxu0 0.0
        %2370 = vmatprep.subr.mxu0 0.0
        %2371 = vmatpush1.msra.mxu0 0.0
        %2372 = vmatprep.subr.mxu0 0.0
        %2373 = vmatpush1.msra.mxu0 0.0
        %2374 = vmatprep.subr.mxu0 0.0
        %2375 = vmatpush1.msra.mxu0 0.0
        %2376 = vmatprep.subr.mxu0 0.0
        %2377 = vmatpush1.msra.mxu0 %v2360
        %2378 = vmatprep.subr.mxu0 0.0
        %2379 = vmatpush1.msra.mxu0 %v2359
        %2380 = vmatprep.subr.mxu0 0.0
        %2381 = vmatpush1.msra.mxu0 %v2358
        %2382 = vmatprep.subr.mxu0 0.0
        %2383 = vmatpush1.msra.mxu0 %v2357
        %2384 = vmatprep.subr.mxu0 0.0
        %2385 = vmatpush1.msra.mxu0 %v2356
        %2386 = vmatprep.subr.mxu0 0.0
        %2387 = vmatpush1.msra.mxu0 %v2355
        %2388 = vmatprep.subr.mxu0 0.0
        %2389 = vmatpush1.msra.mxu0 %v2354
        %2390 = vmatprep.subr.mxu0 0.0
        %2391 = vmatpush1.msra.mxu0 %v2353
        %2392 = vmatprep.subr.mxu0 0.0
        %2393 = vmatpush1.msra.mxu0 %v2352
        %2394 = vmatprep.subr.mxu0 0.0
        %2395 = vmatpush1.msra.mxu0 %v2351
        %2396 = vmatprep.subr.mxu0 0.0
        %2397 = vmatpush2.msra.mxu0 0.0
        %2398 = vmatprep.subr.mxu0 0.0
        %2399 = vmatpush2.msra.mxu0 0.0
        %2400 = vmatprep.subr.mxu0 0.0
        %2401 = vmatpush2.msra.mxu0 0.0
        %2402 = vmatprep.subr.mxu0 0.0
        %2403 = vmatpush2.msra.mxu0 0.0
        %2404 = vmatprep.subr.mxu0 0.0
        %2405 = vmatpush2.msra.mxu0 0.0
        %2406 = vmatprep.subr.mxu0 0.0
        %2407 = vmatpush2.msra.mxu0 0.0
        %2408 = vmatprep.subr.mxu0 0.0
        %2409 = vmatpush2.msra.mxu0 0.0
        %2410 = vmatprep.subr.mxu0 0.0
        %2411 = vmatpush2.msra.mxu0 0.0
        %2412 = vmatprep.subr.mxu0 0.0
        %2413 = vmatpush2.msra.mxu0 0.0
        %2414 = vmatprep.subr.mxu0 0.0
        %2415 = vmatpush2.msra.mxu0 0.0
        %2416 = vmatprep.subr.mxu0 0.0
        %2417 = vmatpush2.msra.mxu0 0.0
        %2418 = vmatprep.subr.mxu0 0.0
        %2419 = vmatpush2.msra.mxu0 0.0
        %2420 = vmatprep.subr.mxu0 0.0
        %2421 = vmatpush2.msra.mxu0 0.0
        %2422 = vmatprep.subr.mxu0 0.0
        %2423 = vmatpush2.msra.mxu0 0.0
        %2424 = vmatprep.subr.mxu0 0.0
        %2425 = vmatpush2.msra.mxu0 0.0
        %2426 = vmatprep.subr.mxu0 0.0
        %2427 = vmatpush2.msra.mxu0 0.0
        %2428 = vmatprep.mubr.f32.mxu0 0.0
        %2429 = vmatmul.mubr.f32.gmra.mxu0 %v2362
        %v2430 = vpop.f32.mrf.mxu0
        %v2431 = vadd.f32 0.0, %v2430
        %v2432 = vpop.f32.mrf.mxu0
        %2433 = vdwg.mxu0
        %v2434 = vadd.f32 %v2348, %v2431
        %v2435 = vld [vmem:[#allocation3 + $0x4] sm:$0x1]
        %s2436 = scalar_lea.vmem %s9, 320
        %v2437 = vld [vmem:[%s2436] sm:$0xff]
        %v2438 = vld [vmem:[%s2436 + $0x8] sm:$0xff]
        %v2439 = vld [vmem:[%s2436 + $0x10] sm:$0xff]
        %v2440 = vld [vmem:[%s2436 + $0x18] sm:$0xff]
        %v2441 = vld [vmem:[%s2436 + $0x20] sm:$0xff]
        %v2442 = vld [vmem:[%s2436 + $0x28] sm:$0xff]
        %v2443 = vld [vmem:[%s2436 + $0x30] sm:$0xff]
        %v2444 = vld [vmem:[%s2436 + $0x38] sm:$0xff]
        %v2445 = vld [vmem:[%s2436 + $0x40] sm:$0xff]
        %v2446 = vld [vmem:[%s2436 + $0x48] sm:$0xff]
        %v2448 = vsel %vm2116, %v2435, 0
        %2450 = vmatprep.subr.mxu0 0.0
        %2451 = vmatpush1.msra.mxu0 0.0
        %2452 = vmatprep.subr.mxu0 0.0
        %2453 = vmatpush1.msra.mxu0 0.0
        %2454 = vmatprep.subr.mxu0 0.0
        %2455 = vmatpush1.msra.mxu0 0.0
        %2456 = vmatprep.subr.mxu0 0.0
        %2457 = vmatpush1.msra.mxu0 0.0
        %2458 = vmatprep.subr.mxu0 0.0
        %2459 = vmatpush1.msra.mxu0 0.0
        %2460 = vmatprep.subr.mxu0 0.0
        %2461 = vmatpush1.msra.mxu0 0.0
        %2462 = vmatprep.subr.mxu0 0.0
        %2463 = vmatpush1.msra.mxu0 %v2446
        %2464 = vmatprep.subr.mxu0 0.0
        %2465 = vmatpush1.msra.mxu0 %v2445
        %2466 = vmatprep.subr.mxu0 0.0
        %2467 = vmatpush1.msra.mxu0 %v2444
        %2468 = vmatprep.subr.mxu0 0.0
        %2469 = vmatpush1.msra.mxu0 %v2443
        %2470 = vmatprep.subr.mxu0 0.0
        %2471 = vmatpush1.msra.mxu0 %v2442
        %2472 = vmatprep.subr.mxu0 0.0
        %2473 = vmatpush1.msra.mxu0 %v2441
        %2474 = vmatprep.subr.mxu0 0.0
        %2475 = vmatpush1.msra.mxu0 %v2440
        %2476 = vmatprep.subr.mxu0 0.0
        %2477 = vmatpush1.msra.mxu0 %v2439
        %2478 = vmatprep.subr.mxu0 0.0
        %2479 = vmatpush1.msra.mxu0 %v2438
        %2480 = vmatprep.subr.mxu0 0.0
        %2481 = vmatpush1.msra.mxu0 %v2437
        %2482 = vmatprep.subr.mxu0 0.0
        %2483 = vmatpush2.msra.mxu0 0.0
        %2484 = vmatprep.subr.mxu0 0.0
        %2485 = vmatpush2.msra.mxu0 0.0
        %2486 = vmatprep.subr.mxu0 0.0
        %2487 = vmatpush2.msra.mxu0 0.0
        %2488 = vmatprep.subr.mxu0 0.0
        %2489 = vmatpush2.msra.mxu0 0.0
        %2490 = vmatprep.subr.mxu0 0.0
        %2491 = vmatpush2.msra.mxu0 0.0
        %2492 = vmatprep.subr.mxu0 0.0
        %2493 = vmatpush2.msra.mxu0 0.0
        %2494 = vmatprep.subr.mxu0 0.0
        %2495 = vmatpush2.msra.mxu0 0.0
        %2496 = vmatprep.subr.mxu0 0.0
        %2497 = vmatpush2.msra.mxu0 0.0
        %2498 = vmatprep.subr.mxu0 0.0
        %2499 = vmatpush2.msra.mxu0 0.0
        %2500 = vmatprep.subr.mxu0 0.0
        %2501 = vmatpush2.msra.mxu0 0.0
        %2502 = vmatprep.subr.mxu0 0.0
        %2503 = vmatpush2.msra.mxu0 0.0
        %2504 = vmatprep.subr.mxu0 0.0
        %2505 = vmatpush2.msra.mxu0 0.0
        %2506 = vmatprep.subr.mxu0 0.0
        %2507 = vmatpush2.msra.mxu0 0.0
        %2508 = vmatprep.subr.mxu0 0.0
        %2509 = vmatpush2.msra.mxu0 0.0
        %2510 = vmatprep.subr.mxu0 0.0
        %2511 = vmatpush2.msra.mxu0 0.0
        %2512 = vmatprep.subr.mxu0 0.0
        %2513 = vmatpush2.msra.mxu0 0.0
        %2514 = vmatprep.mubr.f32.mxu0 0.0
        %2515 = vmatmul.mubr.f32.gmra.mxu0 %v2448
        %v2516 = vpop.f32.mrf.mxu0
        %v2517 = vadd.f32 0.0, %v2516
        %v2518 = vpop.f32.mrf.mxu0
        %2519 = vdwg.mxu0
        %v2520 = vadd.f32 %v2434, %v2517
        %v2521 = vld [vmem:[%s10] sm:$0x1]
        %v2522 = vadd.f32 %v2520, %v2521
        %v2523 = vmax.f32 %v2522, 0.0
        %v2524 = vld [vmem:[%s11] sm:$0xff]
        %v2525 = vld [vmem:[%s11 + $0x8] sm:$0xff]
        %v2526 = vld [vmem:[%s11 + $0x10] sm:$0xff]
        %v2527 = vld [vmem:[%s11 + $0x18] sm:$0xff]
        %v2528 = vld [vmem:[%s11 + $0x20] sm:$0xff]
        %v2529 = vld [vmem:[%s11 + $0x28] sm:$0xff]
        %v2530 = vld [vmem:[%s11 + $0x30] sm:$0xff]
        %v2531 = vld [vmem:[%s11 + $0x38] sm:$0xff]
        %v2532 = vld [vmem:[%s11 + $0x40] sm:$0xff]
        %v2533 = vld [vmem:[%s11 + $0x48] sm:$0xff]
        %v2534 = vld [vmem:[%s11 + $0x50] sm:$0xff]
        %v2535 = vld [vmem:[%s11 + $0x58] sm:$0xff]
        %v2536 = vld [vmem:[%s11 + $0x60] sm:$0xff]
        %v2537 = vld [vmem:[%s11 + $0x68] sm:$0xff]
        %v2538 = vld [vmem:[%s11 + $0x70] sm:$0xff]
        %v2539 = vld [vmem:[%s12] sm:$0x1]
        %vm2540 = vcmask 982016
        %v2542 = vsel %vm2540, %v2523, 0
        %2544 = vmatprep.subr.mxu0 0.0
        %2545 = vmatpush1.msra.mxu0 0.0
        %2546 = vmatprep.subr.mxu0 0.0
        %2547 = vmatpush1.msra.mxu0 %v2538
        %2548 = vmatprep.subr.mxu0 0.0
        %2549 = vmatpush1.msra.mxu0 %v2537
        %2550 = vmatprep.subr.mxu0 0.0
        %2551 = vmatpush1.msra.mxu0 %v2536
        %2552 = vmatprep.subr.mxu0 0.0
        %2553 = vmatpush1.msra.mxu0 %v2535
        %2554 = vmatprep.subr.mxu0 0.0
        %2555 = vmatpush1.msra.mxu0 %v2534
        %2556 = vmatprep.subr.mxu0 0.0
        %2557 = vmatpush1.msra.mxu0 %v2533
        %2558 = vmatprep.subr.mxu0 0.0
        %2559 = vmatpush1.msra.mxu0 %v2532
        %2560 = vmatprep.subr.mxu0 0.0
        %2561 = vmatpush1.msra.mxu0 %v2531
        %2562 = vmatprep.subr.mxu0 0.0
        %2563 = vmatpush1.msra.mxu0 %v2530
        %2564 = vmatprep.subr.mxu0 0.0
        %2565 = vmatpush1.msra.mxu0 %v2529
        %2566 = vmatprep.subr.mxu0 0.0
        %2567 = vmatpush1.msra.mxu0 %v2528
        %2568 = vmatprep.subr.mxu0 0.0
        %2569 = vmatpush1.msra.mxu0 %v2527
        %2570 = vmatprep.subr.mxu0 0.0
        %2571 = vmatpush1.msra.mxu0 %v2526
        %2572 = vmatprep.subr.mxu0 0.0
        %2573 = vmatpush1.msra.mxu0 %v2525
        %2574 = vmatprep.subr.mxu0 0.0
        %2575 = vmatpush1.msra.mxu0 %v2524
        %2576 = vmatprep.subr.mxu0 0.0
        %2577 = vmatpush2.msra.mxu0 0.0
        %2578 = vmatprep.subr.mxu0 0.0
        %2579 = vmatpush2.msra.mxu0 0.0
        %2580 = vmatprep.subr.mxu0 0.0
        %2581 = vmatpush2.msra.mxu0 0.0
        %2582 = vmatprep.subr.mxu0 0.0
        %2583 = vmatpush2.msra.mxu0 0.0
        %2584 = vmatprep.subr.mxu0 0.0
        %2585 = vmatpush2.msra.mxu0 0.0
        %2586 = vmatprep.subr.mxu0 0.0
        %2587 = vmatpush2.msra.mxu0 0.0
        %2588 = vmatprep.subr.mxu0 0.0
        %2589 = vmatpush2.msra.mxu0 0.0
        %2590 = vmatprep.subr.mxu0 0.0
        %2591 = vmatpush2.msra.mxu0 0.0
        %2592 = vmatprep.subr.mxu0 0.0
        %2593 = vmatpush2.msra.mxu0 0.0
        %2594 = vmatprep.subr.mxu0 0.0
        %2595 = vmatpush2.msra.mxu0 0.0
        %2596 = vmatprep.subr.mxu0 0.0
        %2597 = vmatpush2.msra.mxu0 0.0
        %2598 = vmatprep.subr.mxu0 0.0
        %2599 = vmatpush2.msra.mxu0 0.0
        %2600 = vmatprep.subr.mxu0 0.0
        %2601 = vmatpush2.msra.mxu0 0.0
        %2602 = vmatprep.subr.mxu0 0.0
        %2603 = vmatpush2.msra.mxu0 0.0
        %2604 = vmatprep.subr.mxu0 0.0
        %2605 = vmatpush2.msra.mxu0 0.0
        %2606 = vmatprep.subr.mxu0 0.0
        %2607 = vmatpush2.msra.mxu0 0.0
        %2608 = vmatprep.mubr.f32.mxu0 0.0
        %2609 = vmatmul.mubr.f32.gmra.mxu0 %v2542
        %v2610 = vpop.f32.mrf.mxu0
        %v2611 = vadd.f32 %v2539, %v2610
        %v2612 = vpop.f32.mrf.mxu0
        %2613 = vdwg.mxu0
        %v2614 = vmax.f32 %v2611, 0.0
        %v2615 = vld [vmem:[%s13] sm:$0xff]
        %v2616 = vld [vmem:[%s13 + $0x8] sm:$0xff]
        %v2617 = vld [vmem:[%s13 + $0x10] sm:$0xff]
        %v2618 = vld [vmem:[%s13 + $0x18] sm:$0xff]
        %v2619 = vld [vmem:[%s13 + $0x20] sm:$0xff]
        %v2620 = vld [vmem:[%s13 + $0x28] sm:$0xff]
        %v2621 = vld [vmem:[%s13 + $0x30] sm:$0xff]
        %v2622 = vld [vmem:[%s13 + $0x38] sm:$0xff]
        %v2623 = vld [vmem:[%s13 + $0x40] sm:$0xff]
        %v2624 = vld [vmem:[%s13 + $0x48] sm:$0xff]
        %v2625 = vld [vmem:[%s13 + $0x50] sm:$0xf]
        %v2626 = vld [vmem:[%s14] sm:$0x1]
        %v2628 = vsel %vm1310, %v2614, 0
        %v2631 = vsel %vm1123, %v2625, 0
        %2633 = vmatprep.subr.mxu0 0.0
        %2634 = vmatpush1.msra.mxu0 0.0
        %2635 = vmatprep.subr.mxu0 0.0
        %2636 = vmatpush1.msra.mxu0 0.0
        %2637 = vmatprep.subr.mxu0 0.0
        %2638 = vmatpush1.msra.mxu0 0.0
        %2639 = vmatprep.subr.mxu0 0.0
        %2640 = vmatpush1.msra.mxu0 0.0
        %2641 = vmatprep.subr.mxu0 0.0
        %2642 = vmatpush1.msra.mxu0 0.0
        %2643 = vmatprep.subr.mxu0 0.0
        %2644 = vmatpush1.msra.mxu0 %v2631
        %2645 = vmatprep.subr.mxu0 0.0
        %2646 = vmatpush1.msra.mxu0 %v2624
        %2647 = vmatprep.subr.mxu0 0.0
        %2648 = vmatpush1.msra.mxu0 %v2623
        %2649 = vmatprep.subr.mxu0 0.0
        %2650 = vmatpush1.msra.mxu0 %v2622
        %2651 = vmatprep.subr.mxu0 0.0
        %2652 = vmatpush1.msra.mxu0 %v2621
        %2653 = vmatprep.subr.mxu0 0.0
        %2654 = vmatpush1.msra.mxu0 %v2620
        %2655 = vmatprep.subr.mxu0 0.0
        %2656 = vmatpush1.msra.mxu0 %v2619
        %2657 = vmatprep.subr.mxu0 0.0
        %2658 = vmatpush1.msra.mxu0 %v2618
        %2659 = vmatprep.subr.mxu0 0.0
        %2660 = vmatpush1.msra.mxu0 %v2617
        %2661 = vmatprep.subr.mxu0 0.0
        %2662 = vmatpush1.msra.mxu0 %v2616
        %2663 = vmatprep.subr.mxu0 0.0
        %2664 = vmatpush1.msra.mxu0 %v2615
        %2665 = vmatprep.subr.mxu0 0.0
        %2666 = vmatpush2.msra.mxu0 0.0
        %2667 = vmatprep.subr.mxu0 0.0
        %2668 = vmatpush2.msra.mxu0 0.0
        %2669 = vmatprep.subr.mxu0 0.0
        %2670 = vmatpush2.msra.mxu0 0.0
        %2671 = vmatprep.subr.mxu0 0.0
        %2672 = vmatpush2.msra.mxu0 0.0
        %2673 = vmatprep.subr.mxu0 0.0
        %2674 = vmatpush2.msra.mxu0 0.0
        %2675 = vmatprep.subr.mxu0 0.0
        %2676 = vmatpush2.msra.mxu0 0.0
        %2677 = vmatprep.subr.mxu0 0.0
        %2678 = vmatpush2.msra.mxu0 0.0
        %2679 = vmatprep.subr.mxu0 0.0
        %2680 = vmatpush2.msra.mxu0 0.0
        %2681 = vmatprep.subr.mxu0 0.0
        %2682 = vmatpush2.msra.mxu0 0.0
        %2683 = vmatprep.subr.mxu0 0.0
        %2684 = vmatpush2.msra.mxu0 0.0
        %2685 = vmatprep.subr.mxu0 0.0
        %2686 = vmatpush2.msra.mxu0 0.0
        %2687 = vmatprep.subr.mxu0 0.0
        %2688 = vmatpush2.msra.mxu0 0.0
        %2689 = vmatprep.subr.mxu0 0.0
        %2690 = vmatpush2.msra.mxu0 0.0
        %2691 = vmatprep.subr.mxu0 0.0
        %2692 = vmatpush2.msra.mxu0 0.0
        %2693 = vmatprep.subr.mxu0 0.0
        %2694 = vmatpush2.msra.mxu0 0.0
        %2695 = vmatprep.subr.mxu0 0.0
        %2696 = vmatpush2.msra.mxu0 0.0
        %2697 = vmatprep.mubr.f32.mxu0 0.0
        %2698 = vmatmul.mubr.f32.gmra.mxu0 %v2628
        %v2699 = vpop.f32.mrf.mxu0
        %v2700 = vadd.f32 %v2626, %v2699
        %v2701 = vpop.f32.mrf.mxu0
        %2702 = vdwg.mxu0
        %vm2703 = vcmask 73728
        %2704 = vst.msk [vmem:[%s486] sm:$0x1] %vm2703, %v2700
        %s2705 = sand.u32 %s357, 1
        %s2706 = scalar_lea.sflag [#allocation5], %s2705
        %s2707 = sand.u32 %s357, 1
        %s2708 = scalar_lea.vmem [#allocation4], %s2707
        // Predicated region
        $region81: #{lenet_forward.1} parent=79 // pred_check
          %p2709 = pneg %p367
        $region82: #{lenet_forward.1} parent=79 // pred_check_branch
          %2711 = sbr.rel (%p2709) target = $region84
        $region83: #{lenet_forward.1} parent=79 // pred_region
          %s2713 = ssub.s32 16, 16
          %2714 = vsyncadd %s2706, %s2713
          %s2715 = smul.addr %s29, 16
          %s2716 = scalar_lea.hbm %s15, %s2715
          %s2718 = sshll.u32 %s2708, 4
          %s2719 = int_to_ptr.vmem [resolvable:$true] %s2718
          %2721 = dma.vmem_to_hbm [thread:$0]  %s2719, 16, %s2716, %s2706
        $region84: #{lenet_forward.1} parent=79 // pred_fallthru
          _
      $region80: #{lenet_forward.1} parent=5 // pred_fallthru
        _
      %p2722 = scmp.le.s32.totalorder 2, %s24
      // Predicated region
      $region85: #{lenet_forward.1} parent=5 // pred_check
        %p2723 = pneg %p2722
      $region86: #{lenet_forward.1} parent=5 // pred_check_branch
        %2725 = sbr.rel (%p2723) target = $region88
      $region87: #{lenet_forward.1} parent=5 // pred_region
        %s2726 = ssub.s32 %s24, 2
        // Predicated region
        $region89: #{lenet_forward.1} parent=87 // pred_check
          %p2727 = pneg %p373
        $region90: #{lenet_forward.1} parent=87 // pred_check_branch
          %2729 = sbr.rel (%p2727) target = $region92
        $region91: #{lenet_forward.1} parent=87 // pred_region
          %s2730 = sand.u32 %s358, 1
          %s2731 = scalar_lea.sflag [#allocation5], %s2730
          %s2732 = sand.u32 %s358, 1
          %s2733 = scalar_lea.vmem [#allocation4], %s2732
          %2734 = dma.done %s2731, 16
        $region92: #{lenet_forward.1} parent=87 // pred_fallthru
          _
      $region88: #{lenet_forward.1} parent=5 // pred_fallthru
        _
    $region6: #{lenet_forward.1} parent=1 // loop_footer
      %s28 = sadd.s32 1, %s24
    $region7: #{lenet_forward.1} parent=1 // loop_footer_branch
      %23 = sbr.rel target = $region3
    $region8: #{lenet_forward.1} parent=1 // loop_exit
      _
    %2735 = vsyncpa [#allocation5], 1
    %s2736 = scalar_lea.sflag [#allocation5], 1
    %2737 = vsyncpa %s2736, 1

</llo_original>
